<compile_context>
chip_gen: v7x
topology: tpu7x:2x2x1
jax: 0.10.0
libtpu: 0.0.40
codegen_flags: <defaults>
</compile_context>

<pallas_src>
import functools

import jax
import jax.numpy as jnp
from jax.experimental import pallas as pl
from jax.experimental.pallas import tpu as pltpu

LANE = 128
NEG_INF = -1e30  # bias for padded atom lanes -> exp() underflows to exactly 0


def _round_up(x, m):
    return (x + m - 1) // m * m


def _cdiv(a, b):
    return (a + b - 1) // b


def qnetwork_kernel(x_ref, w1_ref, b1_ref, w2_ref, b2_ref, w3_ref, b3_ref,
                    red_ref, action_ref, pmf_ref, *, act_dim, n_pad):
    x = x_ref[...]                                   # (TB, obs) f32

    # MLP: Linear -> ReLU -> Linear -> ReLU -> Linear (MXU, f32 accumulation).
    h1 = jnp.maximum(
        jnp.dot(x, w1_ref[...], preferred_element_type=jnp.float32) + b1_ref[...], 0.0)
    h2 = jnp.maximum(
        jnp.dot(h1, w2_ref[...], preferred_element_type=jnp.float32) + b2_ref[...], 0.0)
    logits = jnp.dot(h2, w3_ref[...], preferred_element_type=jnp.float32) + b3_ref[...]
    # logits: (TB, act_dim * n_pad); padded atom lanes carry bias -1e30.

    red = red_ref[...]                               # (n_pad, 128): col0=mask, col1=atoms

    # Per-action work on static 128-lane slices (free vreg views, no reshape
    # crossing the (8,128) tile boundary, so no relayout copies).
    e_list, den_list, num_list = [], [], []
    for c in range(act_dim):
        lg_c = logits[:, c * n_pad:(c + 1) * n_pad]  # (TB, 128) lane-aligned view
        m_c = jnp.max(lg_c, axis=1, keepdims=True)   # XLU lane reduce (stability)
        e_c = jnp.exp(lg_c - m_c)                    # EUP; pad lanes -> exactly 0
        # Softmax denominator and q numerator via one MXU dot (offloads the two
        # cross-lane sums from the XLU to the nearly idle MXU).
        r_c = jnp.dot(e_c, red, preferred_element_type=jnp.float32)  # (TB, 128)
        e_list.append(e_c)
        den_list.append(r_c[:, 0:1])                 # sum_j e_c[:, j]
        num_list.append(r_c[:, 1:2])                 # sum_j e_c[:, j] * atom_j

    # Q-values and argmax (first-max-index on ties, matching torch.argmax).
    q_list = [num_list[c] * pl.reciprocal(den_list[c], approx=False)
              for c in range(act_dim)]
    best_q = q_list[0]
    best_a = jnp.zeros_like(best_q, dtype=jnp.int32)
    for c in range(1, act_dim):
        better = q_list[c] > best_q
        best_q = jnp.where(better, q_list[c], best_q)
        best_a = jnp.where(better, jnp.int32(c), best_a)

    # Select only the winning action's unnormalized pmf and denominator, then
    # normalize once (the full per-action pmf is never materialized).
    sel_e = jnp.zeros_like(e_list[0])
    sel_den = jnp.zeros_like(den_list[0])
    for c in range(act_dim):
        is_c = (best_a == c).astype(jnp.float32)     # (TB, 1) one-hot column
        sel_e = sel_e + e_list[c] * is_c
        sel_den = sel_den + den_list[c] * is_c

    pmf_ref[...] = sel_e * pl.reciprocal(sel_den, approx=False)   # (TB, 128), lane-dense
    action_ref[...] = best_a                                      # (TB, 1) int32


def qnetwork_forward(x, padded_params, reduce_mat, *, act_dim, n_atoms):
    B, obs_dim = x.shape
    w1, b1, w2, b2, w3, b3 = padded_params
    n_pad = reduce_mat.shape[0]

    # Batch tiling: large tiles amortize the ~0.35us/step grid overhead; target
    # >= 2 grid steps so both v7x TensorCores get work; cap at 2048 rows so the
    # ~16-20 MB of live f32 intermediates fit v7x's 64 MiB VMEM with headroom.
    max_tile_b = 2048
    tile_b = min(max_tile_b, max(LANE, _round_up(_cdiv(B, 2), LANE)))
    b_pad = _round_up(B, tile_b)
    if b_pad != B:
        x = jnp.pad(x, ((0, b_pad - B), (0, 0)))

    grid = (_cdiv(b_pad, tile_b),)
    const2 = lambda i: (0, 0)                         # weights stay VMEM-resident

    kernel = functools.partial(qnetwork_kernel, act_dim=act_dim, n_pad=n_pad)
    action_pad, pmf_pad = pl.pallas_call(
        kernel,
        out_shape=(
            jax.ShapeDtypeStruct((b_pad, 1), jnp.int32),      # no 128-lane slab
            jax.ShapeDtypeStruct((b_pad, n_pad), jnp.float32),
        ),
        grid=grid,
        in_specs=[
            pl.BlockSpec((tile_b, obs_dim), lambda i: (i, 0)),
            pl.BlockSpec(w1.shape, const2),
            pl.BlockSpec(b1.shape, const2),
            pl.BlockSpec(w2.shape, const2),
            pl.BlockSpec(b2.shape, const2),
            pl.BlockSpec(w3.shape, const2),
            pl.BlockSpec(b3.shape, const2),
            pl.BlockSpec(reduce_mat.shape, const2),
        ],
        out_specs=(
            pl.BlockSpec((tile_b, 1), lambda i: (i, 0)),
            pl.BlockSpec((tile_b, n_pad), lambda i: (i, 0)),
        ),
        compiler_params=pltpu.CompilerParams(
            dimension_semantics=("parallel",),
            vmem_limit_bytes=48 * 1024 * 1024,        # fits v7x's 64 MiB VMEM
        ),
    )(x, w1, b1, w2, b2, w3, b3, reduce_mat)

    # Slice back to the module's logical shapes.
    return action_pad[:B, 0], pmf_pad[:B, :n_atoms]


def init_params(key, obs_dim, hidden_dim, act_dim, n_atoms):
    """Deterministic init mimicking nn.Linear's U(-1/sqrt(fan_in), 1/sqrt(fan_in))."""
    def linear(k, fan_in, fan_out):
        kw, kb = jax.random.split(k)
        bound = 1.0 / jnp.sqrt(fan_in)
        w = jax.random.uniform(kw, (fan_in, fan_out), jnp.float32, -bound, bound)
        b = jax.random.uniform(kb, (1, fan_out), jnp.float32, -bound, bound)
        return w, b

    k1, k2, k3 = jax.random.split(key, 3)
    w1, b1 = linear(k1, obs_dim, hidden_dim)
    w2, b2 = linear(k2, hidden_dim, hidden_dim)
    w3, b3 = linear(k3, hidden_dim, act_dim * n_atoms)
    return (w1, b1, w2, b2, w3, b3)


def pad_params(params, *, act_dim, n_atoms):
    """Lane-aligned kernel layout: hidden -> multiple of 128 (zeros), atoms ->
    128 (zero weight columns, -1e30 bias). Forward math is unchanged."""
    w1, b1, w2, b2, w3, b3 = params
    obs_dim, hidden = w1.shape
    h_pad = _round_up(hidden, LANE)
    n_pad = _round_up(n_atoms, LANE)

    w1p = jnp.zeros((obs_dim, h_pad), jnp.float32).at[:, :hidden].set(w1)
    b1p = jnp.zeros((1, h_pad), jnp.float32).at[:, :hidden].set(b1)
    w2p = jnp.zeros((h_pad, h_pad), jnp.float32).at[:hidden, :hidden].set(w2)
    b2p = jnp.zeros((1, h_pad), jnp.float32).at[:, :hidden].set(b2)

    w3r = w3.reshape(hidden, act_dim, n_atoms)
    w3p = (jnp.zeros((h_pad, act_dim, n_pad), jnp.float32)
           .at[:hidden, :, :n_atoms].set(w3r)).reshape(h_pad, act_dim * n_pad)
    b3r = b3.reshape(1, act_dim, n_atoms)
    b3p = (jnp.full((1, act_dim, n_pad), NEG_INF, jnp.float32)
           .at[:, :, :n_atoms].set(b3r)).reshape(1, act_dim * n_pad)
    return (w1p, b1p, w2p, b2p, w3p, b3p)


def make_reduce_matrix(atoms, n_atoms):
    """(n_pad, 128) MXU reduce matrix: col 0 = real-atom mask (softmax denom),
    col 1 = padded atoms (q numerator), remaining columns zero."""
    n_pad = _round_up(n_atoms, LANE)
    r = jnp.zeros((n_pad, LANE), jnp.float32)
    r = r.at[:n_atoms, 0].set(1.0)
    r = r.at[:n_atoms, 1].set(atoms.reshape(-1))
    return r


if __name__ == "__main__":
    obs_dim, hidden_dim, act_dim = 8, 32, 4
    n_atoms, v_min, v_max = 101, -100.0, 100.0
    batch = 2

    key = jax.random.PRNGKey(0)
    kx, kp = jax.random.split(key)
    x = jax.random.normal(kx, (batch, obs_dim), jnp.float32)
    params = init_params(kp, obs_dim, hidden_dim, act_dim, n_atoms)
    atoms = jnp.linspace(v_min, v_max, n_atoms, dtype=jnp.float32)

    kparams = pad_params(params, act_dim=act_dim, n_atoms=n_atoms)
    kreduce = make_reduce_matrix(atoms, n_atoms)

    fwd = jax.jit(functools.partial(qnetwork_forward, act_dim=act_dim, n_atoms=n_atoms))
    action, pmf = fwd(x, kparams, kreduce)
    jax.block_until_ready((action, pmf))

    # Pure-JAX reference (unpadded f32 — exact module semantics).
    w1, b1, w2, b2, w3, b3 = params
    h = jnp.maximum(x @ w1 + b1, 0.0)
    h = jnp.maximum(h @ w2 + b2, 0.0)
    logits = (h @ w3 + b3).reshape(batch, act_dim, n_atoms)
    pmfs_ref = jax.nn.softmax(logits, axis=2)
    q_ref = (pmfs_ref * atoms.reshape(1, 1, n_atoms)).sum(2)
    act_ref = jnp.argmax(q_ref, axis=1).astype(jnp.int32)
    pmf_ref_sel = pmfs_ref[jnp.arange(batch), act_ref]

    assert jnp.array_equal(action, act_ref), (action, act_ref)
    assert jnp.allclose(pmf, pmf_ref_sel, atol=1e-5), jnp.max(jnp.abs(pmf - pmf_ref_sel))

    print("KERNEL_OK")
</pallas_src>

<mosaic_0001>
module attributes {stable_mosaic.version = 11 : i64} {
  func.func @qnetwork_kernel(%arg0: i32, %arg1: memref<128x8xf32, #tpu.memory_space<vmem>>, %arg2: memref<8x128xf32, #tpu.memory_space<vmem>>, %arg3: memref<1x128xf32, #tpu.memory_space<vmem>>, %arg4: memref<128x128xf32, #tpu.memory_space<vmem>>, %arg5: memref<1x128xf32, #tpu.memory_space<vmem>>, %arg6: memref<128x512xf32, #tpu.memory_space<vmem>>, %arg7: memref<1x512xf32, #tpu.memory_space<vmem>>, %arg8: memref<128x128xf32, #tpu.memory_space<vmem>>, %arg9: memref<128x1xi32, #tpu.memory_space<vmem>>, %arg10: memref<128x128xf32, #tpu.memory_space<vmem>>) attributes {dimension_semantics = [#tpu.dimension_semantics<parallel>], iteration_bounds = array<i64: 1>, scalar_prefetch = 0 : i64, scratch_operands = 0 : i64, tpu.core_type = #tpu.core_type<tc>, window_params = [{transform_indices = @transform_0, window_bounds = array<i64: 128, 8>}, {pipeline_mode = #tpu.pipeline_mode<synchronous>, transform_indices = @transform_1, window_bounds = array<i64: 8, 128>}, {pipeline_mode = #tpu.pipeline_mode<synchronous>, transform_indices = @transform_2, window_bounds = array<i64: 1, 128>}, {pipeline_mode = #tpu.pipeline_mode<synchronous>, transform_indices = @transform_3, window_bounds = array<i64: 128, 128>}, {pipeline_mode = #tpu.pipeline_mode<synchronous>, transform_indices = @transform_4, window_bounds = array<i64: 1, 128>}, {pipeline_mode = #tpu.pipeline_mode<synchronous>, transform_indices = @transform_5, window_bounds = array<i64: 128, 512>}, {pipeline_mode = #tpu.pipeline_mode<synchronous>, transform_indices = @transform_6, window_bounds = array<i64: 1, 512>}, {pipeline_mode = #tpu.pipeline_mode<synchronous>, transform_indices = @transform_7, window_bounds = array<i64: 128, 128>}, {transform_indices = @transform_8, window_bounds = array<i64: 128, 1>}, {transform_indices = @transform_9, window_bounds = array<i64: 128, 128>}]} {
    %c0 = arith.constant 0 : index
    %c0_0 = arith.constant 0 : index
    %0 = vector.load %arg1[%c0, %c0_0] : memref<128x8xf32, #tpu.memory_space<vmem>>, vector<128x8xf32>
    %c0_1 = arith.constant 0 : index
    %c0_2 = arith.constant 0 : index
    %1 = vector.load %arg2[%c0_1, %c0_2] : memref<8x128xf32, #tpu.memory_space<vmem>>, vector<8x128xf32>
    %cst = arith.constant dense<0.000000e+00> : vector<128x128xf32>
    %2 = tpu.matmul %0, %1, %cst {dimension_numbers = #tpu.dot_dimension_numbers<[1], [0], [0], [1], [0, 0, 1, 1], [], []>} : vector<128x8xf32>, vector<8x128xf32>, vector<128x128xf32> -> vector<128x128xf32>
    %c0_3 = arith.constant 0 : index
    %c0_4 = arith.constant 0 : index
    %3 = vector.load %arg3[%c0_3, %c0_4] : memref<1x128xf32, #tpu.memory_space<vmem>>, vector<1x128xf32>
    %4 = vector.broadcast %3 : vector<1x128xf32> to vector<128x128xf32>
    %5 = arith.addf %2, %4 : vector<128x128xf32>
    %cst_5 = arith.constant 0.000000e+00 : f32
    %6 = vector.broadcast %cst_5 : f32 to vector<128x128xf32>
    %7 = arith.maximumf %5, %6 : vector<128x128xf32>
    %c0_6 = arith.constant 0 : index
    %c0_7 = arith.constant 0 : index
    %8 = vector.load %arg4[%c0_6, %c0_7] : memref<128x128xf32, #tpu.memory_space<vmem>>, vector<128x128xf32>
    %cst_8 = arith.constant dense<0.000000e+00> : vector<128x128xf32>
    %9 = tpu.matmul %7, %8, %cst_8 {dimension_numbers = #tpu.dot_dimension_numbers<[1], [0], [0], [1], [0, 0, 1, 1], [], []>} : vector<128x128xf32>, vector<128x128xf32>, vector<128x128xf32> -> vector<128x128xf32>
    %c0_9 = arith.constant 0 : index
    %c0_10 = arith.constant 0 : index
    %10 = vector.load %arg5[%c0_9, %c0_10] : memref<1x128xf32, #tpu.memory_space<vmem>>, vector<1x128xf32>
    %11 = vector.broadcast %10 : vector<1x128xf32> to vector<128x128xf32>
    %12 = arith.addf %9, %11 : vector<128x128xf32>
    %cst_11 = arith.constant 0.000000e+00 : f32
    %13 = vector.broadcast %cst_11 : f32 to vector<128x128xf32>
    %14 = arith.maximumf %12, %13 : vector<128x128xf32>
    %c0_12 = arith.constant 0 : index
    %c0_13 = arith.constant 0 : index
    %15 = vector.load %arg6[%c0_12, %c0_13] : memref<128x512xf32, #tpu.memory_space<vmem>>, vector<128x512xf32>
    %cst_14 = arith.constant dense<0.000000e+00> : vector<128x512xf32>
    %16 = tpu.matmul %14, %15, %cst_14 {dimension_numbers = #tpu.dot_dimension_numbers<[1], [0], [0], [1], [0, 0, 1, 1], [], []>} : vector<128x128xf32>, vector<128x512xf32>, vector<128x512xf32> -> vector<128x512xf32>
    %c0_15 = arith.constant 0 : index
    %c0_16 = arith.constant 0 : index
    %17 = vector.load %arg7[%c0_15, %c0_16] : memref<1x512xf32, #tpu.memory_space<vmem>>, vector<1x512xf32>
    %18 = vector.broadcast %17 : vector<1x512xf32> to vector<128x512xf32>
    %19 = arith.addf %16, %18 : vector<128x512xf32>
    %c0_17 = arith.constant 0 : index
    %c0_18 = arith.constant 0 : index
    %20 = vector.load %arg8[%c0_17, %c0_18] : memref<128x128xf32, #tpu.memory_space<vmem>>, vector<128x128xf32>
    %21 = vector.extract_strided_slice %19 {offsets = [0, 0], sizes = [128, 128], strides = [1, 1]} : vector<128x512xf32> to vector<128x128xf32>
    %cst_19 = arith.constant dense<0xFF800000> : vector<128xf32>
    %22 = vector.multi_reduction <maximumf>, %21, %cst_19 [1] : vector<128x128xf32> to vector<128xf32>
    %23 = vector.shape_cast %22 : vector<128xf32> to vector<128x1xf32>
    %24 = vector.broadcast %23 : vector<128x1xf32> to vector<128x128xf32>
    %25 = arith.subf %21, %24 : vector<128x128xf32>
    %26 = math.exp %25 : vector<128x128xf32>
    %cst_20 = arith.constant dense<0.000000e+00> : vector<128x128xf32>
    %27 = tpu.matmul %26, %20, %cst_20 {dimension_numbers = #tpu.dot_dimension_numbers<[1], [0], [0], [1], [0, 0, 1, 1], [], []>} : vector<128x128xf32>, vector<128x128xf32>, vector<128x128xf32> -> vector<128x128xf32>
    %28 = vector.extract_strided_slice %27 {offsets = [0, 0], sizes = [128, 1], strides = [1, 1]} : vector<128x128xf32> to vector<128x1xf32>
    %29 = vector.extract_strided_slice %27 {offsets = [0, 1], sizes = [128, 1], strides = [1, 1]} : vector<128x128xf32> to vector<128x1xf32>
    %30 = vector.extract_strided_slice %19 {offsets = [0, 128], sizes = [128, 128], strides = [1, 1]} : vector<128x512xf32> to vector<128x128xf32>
    %cst_21 = arith.constant dense<0xFF800000> : vector<128xf32>
    %31 = vector.multi_reduction <maximumf>, %30, %cst_21 [1] : vector<128x128xf32> to vector<128xf32>
    %32 = vector.shape_cast %31 : vector<128xf32> to vector<128x1xf32>
    %33 = vector.broadcast %32 : vector<128x1xf32> to vector<128x128xf32>
    %34 = arith.subf %30, %33 : vector<128x128xf32>
    %35 = math.exp %34 : vector<128x128xf32>
    %cst_22 = arith.constant dense<0.000000e+00> : vector<128x128xf32>
    %36 = tpu.matmul %35, %20, %cst_22 {dimension_numbers = #tpu.dot_dimension_numbers<[1], [0], [0], [1], [0, 0, 1, 1], [], []>} : vector<128x128xf32>, vector<128x128xf32>, vector<128x128xf32> -> vector<128x128xf32>
    %37 = vector.extract_strided_slice %36 {offsets = [0, 0], sizes = [128, 1], strides = [1, 1]} : vector<128x128xf32> to vector<128x1xf32>
    %38 = vector.extract_strided_slice %36 {offsets = [0, 1], sizes = [128, 1], strides = [1, 1]} : vector<128x128xf32> to vector<128x1xf32>
    %39 = vector.extract_strided_slice %19 {offsets = [0, 256], sizes = [128, 128], strides = [1, 1]} : vector<128x512xf32> to vector<128x128xf32>
    %cst_23 = arith.constant dense<0xFF800000> : vector<128xf32>
    %40 = vector.multi_reduction <maximumf>, %39, %cst_23 [1] : vector<128x128xf32> to vector<128xf32>
    %41 = vector.shape_cast %40 : vector<128xf32> to vector<128x1xf32>
    %42 = vector.broadcast %41 : vector<128x1xf32> to vector<128x128xf32>
    %43 = arith.subf %39, %42 : vector<128x128xf32>
    %44 = math.exp %43 : vector<128x128xf32>
    %cst_24 = arith.constant dense<0.000000e+00> : vector<128x128xf32>
    %45 = tpu.matmul %44, %20, %cst_24 {dimension_numbers = #tpu.dot_dimension_numbers<[1], [0], [0], [1], [0, 0, 1, 1], [], []>} : vector<128x128xf32>, vector<128x128xf32>, vector<128x128xf32> -> vector<128x128xf32>
    %46 = vector.extract_strided_slice %45 {offsets = [0, 0], sizes = [128, 1], strides = [1, 1]} : vector<128x128xf32> to vector<128x1xf32>
    %47 = vector.extract_strided_slice %45 {offsets = [0, 1], sizes = [128, 1], strides = [1, 1]} : vector<128x128xf32> to vector<128x1xf32>
    %48 = vector.extract_strided_slice %19 {offsets = [0, 384], sizes = [128, 128], strides = [1, 1]} : vector<128x512xf32> to vector<128x128xf32>
    %cst_25 = arith.constant dense<0xFF800000> : vector<128xf32>
    %49 = vector.multi_reduction <maximumf>, %48, %cst_25 [1] : vector<128x128xf32> to vector<128xf32>
    %50 = vector.shape_cast %49 : vector<128xf32> to vector<128x1xf32>
    %51 = vector.broadcast %50 : vector<128x1xf32> to vector<128x128xf32>
    %52 = arith.subf %48, %51 : vector<128x128xf32>
    %53 = math.exp %52 : vector<128x128xf32>
    %cst_26 = arith.constant dense<0.000000e+00> : vector<128x128xf32>
    %54 = tpu.matmul %53, %20, %cst_26 {dimension_numbers = #tpu.dot_dimension_numbers<[1], [0], [0], [1], [0, 0, 1, 1], [], []>} : vector<128x128xf32>, vector<128x128xf32>, vector<128x128xf32> -> vector<128x128xf32>
    %55 = vector.extract_strided_slice %54 {offsets = [0, 0], sizes = [128, 1], strides = [1, 1]} : vector<128x128xf32> to vector<128x1xf32>
    %56 = vector.extract_strided_slice %54 {offsets = [0, 1], sizes = [128, 1], strides = [1, 1]} : vector<128x128xf32> to vector<128x1xf32>
    %57 = tpu.reciprocal %28 : vector<128x1xf32> -> vector<128x1xf32>
    %58 = arith.mulf %29, %57 : vector<128x1xf32>
    %59 = tpu.reciprocal %37 : vector<128x1xf32> -> vector<128x1xf32>
    %60 = arith.mulf %38, %59 : vector<128x1xf32>
    %61 = tpu.reciprocal %46 : vector<128x1xf32> -> vector<128x1xf32>
    %62 = arith.mulf %47, %61 : vector<128x1xf32>
    %63 = tpu.reciprocal %55 : vector<128x1xf32> -> vector<128x1xf32>
    %64 = arith.mulf %56, %63 : vector<128x1xf32>
    %c0_i32 = arith.constant 0 : i32
    %65 = vector.broadcast %c0_i32 : i32 to vector<128x1xi32>
    %66 = arith.cmpf ogt, %60, %58 : vector<128x1xf32>
    %67 = arith.select %66, %60, %58 : vector<128x1xi1>, vector<128x1xf32>
    %c1_i32 = arith.constant 1 : i32
    %68 = vector.broadcast %c1_i32 : i32 to vector<128x1xi32>
    %69 = arith.select %66, %68, %65 : vector<128x1xi1>, vector<128x1xi32>
    %70 = arith.cmpf ogt, %62, %67 : vector<128x1xf32>
    %71 = arith.select %70, %62, %67 : vector<128x1xi1>, vector<128x1xf32>
    %c2_i32 = arith.constant 2 : i32
    %72 = vector.broadcast %c2_i32 : i32 to vector<128x1xi32>
    %73 = arith.select %70, %72, %69 : vector<128x1xi1>, vector<128x1xi32>
    %74 = arith.cmpf ogt, %64, %71 : vector<128x1xf32>
    %c3_i32 = arith.constant 3 : i32
    %75 = vector.broadcast %c3_i32 : i32 to vector<128x1xi32>
    %76 = arith.select %74, %75, %73 : vector<128x1xi1>, vector<128x1xi32>
    %cst_27 = arith.constant 0.000000e+00 : f32
    %77 = vector.broadcast %cst_27 : f32 to vector<128x128xf32>
    %cst_28 = arith.constant 0.000000e+00 : f32
    %78 = vector.broadcast %cst_28 : f32 to vector<128x1xf32>
    %c0_i32_29 = arith.constant 0 : i32
    %79 = vector.broadcast %c0_i32_29 : i32 to vector<128x1xi32>
    %80 = arith.cmpi eq, %76, %79 : vector<128x1xi32>
    %81 = arith.extui %80 : vector<128x1xi1> to vector<128x1xi32>
    %82 = arith.sitofp %81 : vector<128x1xi32> to vector<128x1xf32>
    %83 = vector.broadcast %82 : vector<128x1xf32> to vector<128x128xf32>
    %84 = arith.mulf %26, %83 : vector<128x128xf32>
    %85 = arith.addf %77, %84 : vector<128x128xf32>
    %86 = arith.mulf %28, %82 : vector<128x1xf32>
    %87 = arith.addf %78, %86 : vector<128x1xf32>
    %c1_i32_30 = arith.constant 1 : i32
    %88 = vector.broadcast %c1_i32_30 : i32 to vector<128x1xi32>
    %89 = arith.cmpi eq, %76, %88 : vector<128x1xi32>
    %90 = arith.extui %89 : vector<128x1xi1> to vector<128x1xi32>
    %91 = arith.sitofp %90 : vector<128x1xi32> to vector<128x1xf32>
    %92 = vector.broadcast %91 : vector<128x1xf32> to vector<128x128xf32>
    %93 = arith.mulf %35, %92 : vector<128x128xf32>
    %94 = arith.addf %85, %93 : vector<128x128xf32>
    %95 = arith.mulf %37, %91 : vector<128x1xf32>
    %96 = arith.addf %87, %95 : vector<128x1xf32>
    %c2_i32_31 = arith.constant 2 : i32
    %97 = vector.broadcast %c2_i32_31 : i32 to vector<128x1xi32>
    %98 = arith.cmpi eq, %76, %97 : vector<128x1xi32>
    %99 = arith.extui %98 : vector<128x1xi1> to vector<128x1xi32>
    %100 = arith.sitofp %99 : vector<128x1xi32> to vector<128x1xf32>
    %101 = vector.broadcast %100 : vector<128x1xf32> to vector<128x128xf32>
    %102 = arith.mulf %44, %101 : vector<128x128xf32>
    %103 = arith.addf %94, %102 : vector<128x128xf32>
    %104 = arith.mulf %46, %100 : vector<128x1xf32>
    %105 = arith.addf %96, %104 : vector<128x1xf32>
    %c3_i32_32 = arith.constant 3 : i32
    %106 = vector.broadcast %c3_i32_32 : i32 to vector<128x1xi32>
    %107 = arith.cmpi eq, %76, %106 : vector<128x1xi32>
    %108 = arith.extui %107 : vector<128x1xi1> to vector<128x1xi32>
    %109 = arith.sitofp %108 : vector<128x1xi32> to vector<128x1xf32>
    %110 = vector.broadcast %109 : vector<128x1xf32> to vector<128x128xf32>
    %111 = arith.mulf %53, %110 : vector<128x128xf32>
    %112 = arith.addf %103, %111 : vector<128x128xf32>
    %113 = arith.mulf %55, %109 : vector<128x1xf32>
    %114 = arith.addf %105, %113 : vector<128x1xf32>
    %115 = tpu.reciprocal %114 : vector<128x1xf32> -> vector<128x1xf32>
    %116 = vector.broadcast %115 : vector<128x1xf32> to vector<128x128xf32>
    %117 = arith.mulf %112, %116 : vector<128x128xf32>
    %c0_33 = arith.constant 0 : index
    %c0_34 = arith.constant 0 : index
    %118 = vector.load %arg10[%c0_33, %c0_34] : memref<128x128xf32, #tpu.memory_space<vmem>>, vector<128x128xf32>
    tpu.vector_store %arg10[%c0_33, %c0_34], %117 {strides = array<i32>} : memref<128x128xf32, #tpu.memory_space<vmem>>, vector<128x128xf32>,
    %c0_35 = arith.constant 0 : index
    %c0_36 = arith.constant 0 : index
    %119 = vector.load %arg9[%c0_35, %c0_36] : memref<128x1xi32, #tpu.memory_space<vmem>>, vector<128x1xi32>
    tpu.vector_store %arg9[%c0_35, %c0_36], %76 {strides = array<i32>} : memref<128x1xi32, #tpu.memory_space<vmem>>, vector<128x1xi32>,
    return
  }
  func.func @transform_0(%arg0: i32) -> (i32, i32) {
    %c0_i32 = arith.constant 0 : i32
    %c0_i32_0 = arith.constant 0 : i32
    return %arg0, %c0_i32 : i32, i32
  }
  func.func @transform_1(%arg0: i32) -> (i32, i32) {
    %c0_i32 = arith.constant 0 : i32
    %c0_i32_0 = arith.constant 0 : i32
    %c0_i32_1 = arith.constant 0 : i32
    return %c0_i32, %c0_i32_0 : i32, i32
  }
  func.func @transform_2(%arg0: i32) -> (i32, i32) {
    %c0_i32 = arith.constant 0 : i32
    %c0_i32_0 = arith.constant 0 : i32
    %c0_i32_1 = arith.constant 0 : i32
    return %c0_i32, %c0_i32_0 : i32, i32
  }
  func.func @transform_3(%arg0: i32) -> (i32, i32) {
    %c0_i32 = arith.constant 0 : i32
    %c0_i32_0 = arith.constant 0 : i32
    %c0_i32_1 = arith.constant 0 : i32
    return %c0_i32, %c0_i32_0 : i32, i32
  }
  func.func @transform_4(%arg0: i32) -> (i32, i32) {
    %c0_i32 = arith.constant 0 : i32
    %c0_i32_0 = arith.constant 0 : i32
    %c0_i32_1 = arith.constant 0 : i32
    return %c0_i32, %c0_i32_0 : i32, i32
  }
  func.func @transform_5(%arg0: i32) -> (i32, i32) {
    %c0_i32 = arith.constant 0 : i32
    %c0_i32_0 = arith.constant 0 : i32
    %c0_i32_1 = arith.constant 0 : i32
    return %c0_i32, %c0_i32_0 : i32, i32
  }
  func.func @transform_6(%arg0: i32) -> (i32, i32) {
    %c0_i32 = arith.constant 0 : i32
    %c0_i32_0 = arith.constant 0 : i32
    %c0_i32_1 = arith.constant 0 : i32
    return %c0_i32, %c0_i32_0 : i32, i32
  }
  func.func @transform_7(%arg0: i32) -> (i32, i32) {
    %c0_i32 = arith.constant 0 : i32
    %c0_i32_0 = arith.constant 0 : i32
    %c0_i32_1 = arith.constant 0 : i32
    return %c0_i32, %c0_i32_0 : i32, i32
  }
  func.func @transform_8(%arg0: i32) -> (i32, i32) {
    %c0_i32 = arith.constant 0 : i32
    %c0_i32_0 = arith.constant 0 : i32
    return %arg0, %c0_i32 : i32, i32
  }
  func.func @transform_9(%arg0: i32) -> (i32, i32) {
    %c0_i32 = arith.constant 0 : i32
    %c0_i32_0 = arith.constant 0 : i32
    return %arg0, %c0_i32 : i32, i32
  }
}

</mosaic_0001>

<llo_original>
// kernel: qnetwork_forward.1
$region0: #{qnetwork_forward.1}
  #allocation0 [shape = 'u32[]', space=smem, size = 0x4, offset = 0x4, fixed_abs, tag = 'smem constant byte address 0x4 - core index']
  #allocation1 [shape = 'u32[144,128]{1,0:T(1,128)}', space=vmem, size = 0x12000, scoped, tag = 'internal scratch']
  %s0 = inlined_call_operand.vmem [shape: f32[128,8], index: 0, kind: input, shape index: {}]
  %s1 = inlined_call_operand.vmem [shape: f32[8,128], index: 1, kind: input, shape index: {}]
  %s2 = inlined_call_operand.vmem [shape: f32[1,128], index: 2, kind: input, shape index: {}]
  %s3 = inlined_call_operand.vmem [shape: f32[128,128], index: 3, kind: input, shape index: {}]
  %s4 = inlined_call_operand.vmem [shape: f32[1,128], index: 4, kind: input, shape index: {}]
  %s5 = inlined_call_operand.hbm [shape: f32[128,512], index: 5, kind: input, shape index: {}]
  %s6 = inlined_call_operand.vmem [shape: f32[1,512], index: 6, kind: input, shape index: {}]
  %s7 = inlined_call_operand.hbm [shape: f32[128,128], index: 7, kind: input, shape index: {}]
  %s8 = inlined_call_operand.vmem [shape: s32[128,1], index: 8, kind: output, shape index: {0}]
  %s9 = inlined_call_operand.vmem [shape: f32[128,128], index: 9, kind: output, shape index: {1}]
  %10 = xla_tuple %s8, %s9
  %s11 = sld [smem:[#allocation0]]
  $region58: #{qnetwork_forward.1} parent=0
    _
  %s13 = ssub.s32 1, %s11
  %s14 = scalar_select 0, %s13, %s11
  $region1: #{qnetwork_forward.1} parent=0
    #allocation2 [shape = 'u8[262144]{0}', space=vmem, size = 0x40000, scoped, tag = 'input window, operand 5, single buffered']
    #allocation3 [shape = 's32[1]{0}', space=sflag, size = 0x4, scoped, tag = 'scoped memory for qnetwork_forward.1']
    #allocation4 [shape = 'u8[65536]{0}', space=vmem, size = 0x10000, scoped, tag = 'input window, operand 7, single buffered']
    #allocation5 [shape = 's32[1]{0}', space=sflag, size = 0x4, scoped, tag = 'scoped memory for qnetwork_forward.1']
    %15 = vsyncpa [#allocation3], 0
    %16 = vsyncpa [#allocation5], 0
    // Predicated region
    $region2: #{qnetwork_forward.1} parent=1 // pred_check
      _
    $region3: #{qnetwork_forward.1} parent=1 // pred_check_branch
      %18 = sbr.rel (0) target = $region5
    $region4: #{qnetwork_forward.1} parent=1 // pred_region
      _
    $region5: #{qnetwork_forward.1} parent=1 // pred_fallthru
      _
    // Predicated region
    $region6: #{qnetwork_forward.1} parent=1 // pred_check
      _
    $region7: #{qnetwork_forward.1} parent=1 // pred_check_branch
      %20 = sbr.rel (0) target = $region9
    $region8: #{qnetwork_forward.1} parent=1 // pred_region
      _
    $region9: #{qnetwork_forward.1} parent=1 // pred_fallthru
      _
    // Predicated region
    $region10: #{qnetwork_forward.1} parent=1 // pred_check
      _
    $region11: #{qnetwork_forward.1} parent=1 // pred_check_branch
      %22 = sbr.rel (0) target = $region13
    $region12: #{qnetwork_forward.1} parent=1 // pred_region
      _
    $region13: #{qnetwork_forward.1} parent=1 // pred_fallthru
      _
    // Predicated region
    $region14: #{qnetwork_forward.1} parent=1 // pred_check
      _
    $region15: #{qnetwork_forward.1} parent=1 // pred_check_branch
      %24 = sbr.rel (0) target = $region17
    $region16: #{qnetwork_forward.1} parent=1 // pred_region
      _
    $region17: #{qnetwork_forward.1} parent=1 // pred_fallthru
      _
    // Predicated region
    $region18: #{qnetwork_forward.1} parent=1 // pred_check
      _
    $region19: #{qnetwork_forward.1} parent=1 // pred_check_branch
      %26 = sbr.rel (0) target = $region21
    $region20: #{qnetwork_forward.1} parent=1 // pred_region
      _
    $region21: #{qnetwork_forward.1} parent=1 // pred_fallthru
      _
    // Predicated region
    $region22: #{qnetwork_forward.1} parent=1 // pred_check
      _
    $region23: #{qnetwork_forward.1} parent=1 // pred_check_branch
      %28 = sbr.rel (0) target = $region25
    $region24: #{qnetwork_forward.1} parent=1 // pred_region
      %s30 = ssub.s32 8192, 8192
      %31 = vsyncadd [#allocation3], %s30
      %s32 = sshll.u32 [#allocation2], 4
      %s33 = int_to_ptr.vmem [resolvable:$true] %s32
      %38 = dma.hbm_to_vmem [thread:$0]  %s5, 8192, %s33, [#allocation3], 512, 512, 32
    $region25: #{qnetwork_forward.1} parent=1 // pred_fallthru
      _
    // Predicated region
    $region26: #{qnetwork_forward.1} parent=1 // pred_check
      _
    $region27: #{qnetwork_forward.1} parent=1 // pred_check_branch
      %40 = sbr.rel (0) target = $region29
    $region28: #{qnetwork_forward.1} parent=1 // pred_region
      _
    $region29: #{qnetwork_forward.1} parent=1 // pred_fallthru
      _
    // Predicated region
    $region30: #{qnetwork_forward.1} parent=1 // pred_check
      _
    $region31: #{qnetwork_forward.1} parent=1 // pred_check_branch
      %42 = sbr.rel (0) target = $region33
    $region32: #{qnetwork_forward.1} parent=1 // pred_region
      %s44 = ssub.s32 2048, 2048
      %45 = vsyncadd [#allocation5], %s44
      %s46 = sshll.u32 [#allocation4], 4
      %s47 = int_to_ptr.vmem [resolvable:$true] %s46
      %52 = dma.hbm_to_vmem [thread:$0]  %s7, 2048, %s47, [#allocation5], 128, 128, 8
    $region33: #{qnetwork_forward.1} parent=1 // pred_fallthru
      _
    // Predicated region
    $region34: #{qnetwork_forward.1} parent=1 // pred_check
      _
    $region35: #{qnetwork_forward.1} parent=1 // pred_check_branch
      %54 = sbr.rel (0) target = $region37
    $region36: #{qnetwork_forward.1} parent=1 // pred_region
      %55 = dma.done [#allocation3], 8192
    $region37: #{qnetwork_forward.1} parent=1 // pred_fallthru
      _
    // Predicated region
    $region38: #{qnetwork_forward.1} parent=1 // pred_check
      _
    $region39: #{qnetwork_forward.1} parent=1 // pred_check_branch
      %57 = sbr.rel (0) target = $region41
    $region40: #{qnetwork_forward.1} parent=1 // pred_region
      %58 = dma.done [#allocation5], 2048
    $region41: #{qnetwork_forward.1} parent=1 // pred_fallthru
      _
    %v59 = vld [vmem:[%s0] sm:$0xff]
    %v60 = vld [vmem:[%s0 + $0x8] sm:$0xff]
    %v61 = vld [vmem:[%s0 + $0x10] sm:$0xff]
    %v62 = vld [vmem:[%s0 + $0x18] sm:$0xff]
    %v63 = vld [vmem:[%s0 + $0x20] sm:$0xff]
    %v64 = vld [vmem:[%s0 + $0x28] sm:$0xff]
    %v65 = vld [vmem:[%s0 + $0x30] sm:$0xff]
    %v66 = vld [vmem:[%s0 + $0x38] sm:$0xff]
    %v67 = vld [vmem:[%s0 + $0x40] sm:$0xff]
    %v68 = vld [vmem:[%s0 + $0x48] sm:$0xff]
    %v69 = vld [vmem:[%s0 + $0x50] sm:$0xff]
    %v70 = vld [vmem:[%s0 + $0x58] sm:$0xff]
    %v71 = vld [vmem:[%s0 + $0x60] sm:$0xff]
    %v72 = vld [vmem:[%s0 + $0x68] sm:$0xff]
    %v73 = vld [vmem:[%s0 + $0x70] sm:$0xff]
    %v74 = vld [vmem:[%s0 + $0x78] sm:$0xff]
    %v75 = vld [vmem:[%s1] sm:$0xff]
    %v76 = vld [vmem:[%s2] sm:$0x1]
    %v78 = vlaneseq
    %v79 = vshrl.u32 %v78, 7
    %v80 = vsub.s32 0, %v79
    %v81 = vrot.slane %v76, %v80
    %vm83 = vcmask 64512
    %v85 = vsel %vm83, %v59, 0
    %v88 = vsel %vm83, %v60, 0
    %v91 = vsel %vm83, %v61, 0
    %v94 = vsel %vm83, %v62, 0
    %v97 = vsel %vm83, %v63, 0
    %v100 = vsel %vm83, %v64, 0
    %v103 = vsel %vm83, %v65, 0
    %v106 = vsel %vm83, %v66, 0
    %v109 = vsel %vm83, %v67, 0
    %v112 = vsel %vm83, %v68, 0
    %v115 = vsel %vm83, %v69, 0
    %v118 = vsel %vm83, %v70, 0
    %v121 = vsel %vm83, %v71, 0
    %v124 = vsel %vm83, %v72, 0
    %v127 = vsel %vm83, %v73, 0
    %v130 = vsel %vm83, %v74, 0
    %132 = vmatprep.subr.mxu0 0.0
    %133 = vmatpush1.msra.mxu0 %v75
    %134 = vmatprep.subr.mxu0 0.0
    %135 = vmatpush1.msra.mxu0 0.0
    %136 = vmatprep.subr.mxu0 0.0
    %137 = vmatpush1.msra.mxu0 0.0
    %138 = vmatprep.subr.mxu0 0.0
    %139 = vmatpush1.msra.mxu0 0.0
    %140 = vmatprep.subr.mxu0 0.0
    %141 = vmatpush1.msra.mxu0 0.0
    %142 = vmatprep.subr.mxu0 0.0
    %143 = vmatpush1.msra.mxu0 0.0
    %144 = vmatprep.subr.mxu0 0.0
    %145 = vmatpush1.msra.mxu0 0.0
    %146 = vmatprep.subr.mxu0 0.0
    %147 = vmatpush1.msra.mxu0 0.0
    %148 = vmatprep.subr.mxu0 0.0
    %149 = vmatpush1.msra.mxu0 0.0
    %150 = vmatprep.subr.mxu0 0.0
    %151 = vmatpush1.msra.mxu0 0.0
    %152 = vmatprep.subr.mxu0 0.0
    %153 = vmatpush1.msra.mxu0 0.0
    %154 = vmatprep.subr.mxu0 0.0
    %155 = vmatpush1.msra.mxu0 0.0
    %156 = vmatprep.subr.mxu0 0.0
    %157 = vmatpush1.msra.mxu0 0.0
    %158 = vmatprep.subr.mxu0 0.0
    %159 = vmatpush1.msra.mxu0 0.0
    %160 = vmatprep.subr.mxu0 0.0
    %161 = vmatpush1.msra.mxu0 0.0
    %162 = vmatprep.subr.mxu0 0.0
    %163 = vmatpush1.msra.mxu0 0.0
    %164 = vmatprep.subr.mxu0 0.0
    %165 = vmatpush1.msra.mxu0 0.0
    %166 = vmatprep.subr.mxu0 0.0
    %167 = vmatpush1.msra.mxu0 0.0
    %168 = vmatprep.subr.mxu0 0.0
    %169 = vmatpush1.msra.mxu0 0.0
    %170 = vmatprep.subr.mxu0 0.0
    %171 = vmatpush1.msra.mxu0 0.0
    %172 = vmatprep.subr.mxu0 0.0
    %173 = vmatpush1.msra.mxu0 0.0
    %174 = vmatprep.subr.mxu0 0.0
    %175 = vmatpush1.msra.mxu0 0.0
    %176 = vmatprep.subr.mxu0 0.0
    %177 = vmatpush1.msra.mxu0 0.0
    %178 = vmatprep.subr.mxu0 0.0
    %179 = vmatpush1.msra.mxu0 0.0
    %180 = vmatprep.subr.mxu0 0.0
    %181 = vmatpush1.msra.mxu0 0.0
    %182 = vmatprep.subr.mxu0 0.0
    %183 = vmatpush1.msra.mxu0 0.0
    %184 = vmatprep.subr.mxu0 0.0
    %185 = vmatpush1.msra.mxu0 0.0
    %186 = vmatprep.subr.mxu0 0.0
    %187 = vmatpush1.msra.mxu0 0.0
    %188 = vmatprep.subr.mxu0 0.0
    %189 = vmatpush1.msra.mxu0 0.0
    %190 = vmatprep.subr.mxu0 0.0
    %191 = vmatpush1.msra.mxu0 0.0
    %192 = vmatprep.subr.mxu0 0.0
    %193 = vmatpush1.msra.mxu0 0.0
    %194 = vmatprep.subr.mxu0 0.0
    %195 = vmatpush1.msra.mxu0 0.0
    %196 = vmatprep.mubr.f32.mxu0 0.0
    %197 = vmatmul.mubr.f32.gmra.mrb[0].mxu0 %v85
    %v198 = vpop.f32.mrb[0].mxu0
    %v199 = vadd.f32 %v81, %v198
    %v200 = vpop.f32.mrb[0].mxu0
    %201 = vmatprep.mubr.f32.mxu0 0.0
    %202 = vmatmul.mubr.f32.gmra.mrb[0].mxu0 %v88
    %v203 = vpop.f32.mrb[0].mxu0
    %v204 = vadd.f32 %v81, %v203
    %v205 = vpop.f32.mrb[0].mxu0
    %206 = vmatprep.mubr.f32.mxu0 0.0
    %207 = vmatmul.mubr.f32.gmra.mrb[0].mxu0 %v91
    %v208 = vpop.f32.mrb[0].mxu0
    %v209 = vadd.f32 %v81, %v208
    %v210 = vpop.f32.mrb[0].mxu0
    %211 = vmatprep.mubr.f32.mxu0 0.0
    %212 = vmatmul.mubr.f32.gmra.mrb[0].mxu0 %v94
    %v213 = vpop.f32.mrb[0].mxu0
    %v214 = vadd.f32 %v81, %v213
    %v215 = vpop.f32.mrb[0].mxu0
    %216 = vmatprep.mubr.f32.mxu0 0.0
    %217 = vmatmul.mubr.f32.gmra.mrb[0].mxu0 %v97
    %v218 = vpop.f32.mrb[0].mxu0
    %v219 = vadd.f32 %v81, %v218
    %v220 = vpop.f32.mrb[0].mxu0
    %221 = vmatprep.mubr.f32.mxu0 0.0
    %222 = vmatmul.mubr.f32.gmra.mrb[0].mxu0 %v100
    %v223 = vpop.f32.mrb[0].mxu0
    %v224 = vadd.f32 %v81, %v223
    %v225 = vpop.f32.mrb[0].mxu0
    %226 = vmatprep.mubr.f32.mxu0 0.0
    %227 = vmatmul.mubr.f32.gmra.mrb[0].mxu0 %v103
    %v228 = vpop.f32.mrb[0].mxu0
    %v229 = vadd.f32 %v81, %v228
    %v230 = vpop.f32.mrb[0].mxu0
    %231 = vmatprep.mubr.f32.mxu0 0.0
    %232 = vmatmul.mubr.f32.gmra.mrb[0].mxu0 %v106
    %v233 = vpop.f32.mrb[0].mxu0
    %v234 = vadd.f32 %v81, %v233
    %v235 = vpop.f32.mrb[0].mxu0
    %236 = vmatprep.mubr.f32.mxu0 0.0
    %237 = vmatmul.mubr.f32.gmra.mrb[0].mxu0 %v109
    %v238 = vpop.f32.mrb[0].mxu0
    %v239 = vadd.f32 %v81, %v238
    %v240 = vpop.f32.mrb[0].mxu0
    %241 = vmatprep.mubr.f32.mxu0 0.0
    %242 = vmatmul.mubr.f32.gmra.mrb[0].mxu0 %v112
    %v243 = vpop.f32.mrb[0].mxu0
    %v244 = vadd.f32 %v81, %v243
    %v245 = vpop.f32.mrb[0].mxu0
    %246 = vmatprep.mubr.f32.mxu0 0.0
    %247 = vmatmul.mubr.f32.gmra.mrb[0].mxu0 %v115
    %v248 = vpop.f32.mrb[0].mxu0
    %v249 = vadd.f32 %v81, %v248
    %v250 = vpop.f32.mrb[0].mxu0
    %251 = vmatprep.mubr.f32.mxu0 0.0
    %252 = vmatmul.mubr.f32.gmra.mrb[0].mxu0 %v118
    %v253 = vpop.f32.mrb[0].mxu0
    %v254 = vadd.f32 %v81, %v253
    %v255 = vpop.f32.mrb[0].mxu0
    %256 = vmatprep.mubr.f32.mxu0 0.0
    %257 = vmatmul.mubr.f32.gmra.mrb[0].mxu0 %v121
    %v258 = vpop.f32.mrb[0].mxu0
    %v259 = vadd.f32 %v81, %v258
    %v260 = vpop.f32.mrb[0].mxu0
    %261 = vmatprep.mubr.f32.mxu0 0.0
    %262 = vmatmul.mubr.f32.gmra.mrb[0].mxu0 %v124
    %v263 = vpop.f32.mrb[0].mxu0
    %v264 = vadd.f32 %v81, %v263
    %v265 = vpop.f32.mrb[0].mxu0
    %266 = vmatprep.mubr.f32.mxu0 0.0
    %267 = vmatmul.mubr.f32.gmra.mrb[0].mxu0 %v127
    %v268 = vpop.f32.mrb[0].mxu0
    %v269 = vadd.f32 %v81, %v268
    %v270 = vpop.f32.mrb[0].mxu0
    %271 = vmatprep.mubr.f32.mxu0 0.0
    %272 = vmatmul.mubr.f32.gmra.mrb[0].mxu0 %v130
    %v273 = vpop.f32.mrb[0].mxu0
    %v274 = vadd.f32 %v81, %v273
    %v275 = vpop.f32.mrb[0].mxu0
    %276 = vdwg.mxu0
    %v277 = vmax.f32 %v199, 0.0
    %v278 = vmax.f32 %v204, 0.0
    %v279 = vmax.f32 %v209, 0.0
    %v280 = vmax.f32 %v214, 0.0
    %v281 = vmax.f32 %v219, 0.0
    %v282 = vmax.f32 %v224, 0.0
    %v283 = vmax.f32 %v229, 0.0
    %v284 = vmax.f32 %v234, 0.0
    %v285 = vmax.f32 %v239, 0.0
    %v286 = vmax.f32 %v244, 0.0
    %v287 = vmax.f32 %v249, 0.0
    %v288 = vmax.f32 %v254, 0.0
    %v289 = vmax.f32 %v259, 0.0
    %v290 = vmax.f32 %v264, 0.0
    %v291 = vmax.f32 %v269, 0.0
    %v292 = vmax.f32 %v274, 0.0
    %v293 = vld [vmem:[%s3] sm:$0xff]
    %v294 = vld [vmem:[%s3 + $0x8] sm:$0xff]
    %v295 = vld [vmem:[%s3 + $0x10] sm:$0xff]
    %v296 = vld [vmem:[%s3 + $0x18] sm:$0xff]
    %v297 = vld [vmem:[%s3 + $0x20] sm:$0xff]
    %v298 = vld [vmem:[%s3 + $0x28] sm:$0xff]
    %v299 = vld [vmem:[%s3 + $0x30] sm:$0xff]
    %v300 = vld [vmem:[%s3 + $0x38] sm:$0xff]
    %v301 = vld [vmem:[%s3 + $0x40] sm:$0xff]
    %v302 = vld [vmem:[%s3 + $0x48] sm:$0xff]
    %v303 = vld [vmem:[%s3 + $0x50] sm:$0xff]
    %v304 = vld [vmem:[%s3 + $0x58] sm:$0xff]
    %v305 = vld [vmem:[%s3 + $0x60] sm:$0xff]
    %v306 = vld [vmem:[%s3 + $0x68] sm:$0xff]
    %v307 = vld [vmem:[%s3 + $0x70] sm:$0xff]
    %v308 = vld [vmem:[%s3 + $0x78] sm:$0xff]
    %v309 = vld [vmem:[%s4] sm:$0x1]
    %v311 = vlaneseq
    %v312 = vshrl.u32 %v311, 7
    %v313 = vsub.s32 0, %v312
    %v314 = vrot.slane %v309, %v313
    %316 = vmatprep.subr.mxu0 0.0
    %317 = vmatpush1.msra.mxu0 %v293
    %318 = vmatprep.subr.mxu0 0.0
    %319 = vmatpush1.msra.mxu0 %v294
    %320 = vmatprep.subr.mxu0 0.0
    %321 = vmatpush1.msra.mxu0 %v295
    %322 = vmatprep.subr.mxu0 0.0
    %323 = vmatpush1.msra.mxu0 %v296
    %324 = vmatprep.subr.mxu0 0.0
    %325 = vmatpush1.msra.mxu0 %v297
    %326 = vmatprep.subr.mxu0 0.0
    %327 = vmatpush1.msra.mxu0 %v298
    %328 = vmatprep.subr.mxu0 0.0
    %329 = vmatpush1.msra.mxu0 %v299
    %330 = vmatprep.subr.mxu0 0.0
    %331 = vmatpush1.msra.mxu0 %v300
    %332 = vmatprep.subr.mxu0 0.0
    %333 = vmatpush1.msra.mxu0 %v301
    %334 = vmatprep.subr.mxu0 0.0
    %335 = vmatpush1.msra.mxu0 %v302
    %336 = vmatprep.subr.mxu0 0.0
    %337 = vmatpush1.msra.mxu0 %v303
    %338 = vmatprep.subr.mxu0 0.0
    %339 = vmatpush1.msra.mxu0 %v304
    %340 = vmatprep.subr.mxu0 0.0
    %341 = vmatpush1.msra.mxu0 %v305
    %342 = vmatprep.subr.mxu0 0.0
    %343 = vmatpush1.msra.mxu0 %v306
    %344 = vmatprep.subr.mxu0 0.0
    %345 = vmatpush1.msra.mxu0 %v307
    %346 = vmatprep.subr.mxu0 0.0
    %347 = vmatpush1.msra.mxu0 %v308
    %348 = vmatprep.subr.mxu0 0.0
    %349 = vmatpush1.msra.mxu0 0.0
    %350 = vmatprep.subr.mxu0 0.0
    %351 = vmatpush1.msra.mxu0 0.0
    %352 = vmatprep.subr.mxu0 0.0
    %353 = vmatpush1.msra.mxu0 0.0
    %354 = vmatprep.subr.mxu0 0.0
    %355 = vmatpush1.msra.mxu0 0.0
    %356 = vmatprep.subr.mxu0 0.0
    %357 = vmatpush1.msra.mxu0 0.0
    %358 = vmatprep.subr.mxu0 0.0
    %359 = vmatpush1.msra.mxu0 0.0
    %360 = vmatprep.subr.mxu0 0.0
    %361 = vmatpush1.msra.mxu0 0.0
    %362 = vmatprep.subr.mxu0 0.0
    %363 = vmatpush1.msra.mxu0 0.0
    %364 = vmatprep.subr.mxu0 0.0
    %365 = vmatpush1.msra.mxu0 0.0
    %366 = vmatprep.subr.mxu0 0.0
    %367 = vmatpush1.msra.mxu0 0.0
    %368 = vmatprep.subr.mxu0 0.0
    %369 = vmatpush1.msra.mxu0 0.0
    %370 = vmatprep.subr.mxu0 0.0
    %371 = vmatpush1.msra.mxu0 0.0
    %372 = vmatprep.subr.mxu0 0.0
    %373 = vmatpush1.msra.mxu0 0.0
    %374 = vmatprep.subr.mxu0 0.0
    %375 = vmatpush1.msra.mxu0 0.0
    %376 = vmatprep.subr.mxu0 0.0
    %377 = vmatpush1.msra.mxu0 0.0
    %378 = vmatprep.subr.mxu0 0.0
    %379 = vmatpush1.msra.mxu0 0.0
    %380 = vmatprep.mubr.f32.mxu0 0.0
    %381 = vmatmul.mubr.f32.gmra.mrb[0].mxu0 %v277
    %v382 = vpop.f32.mrb[0].mxu0
    %v383 = vadd.f32 %v314, %v382
    %v384 = vpop.f32.mrb[0].mxu0
    %385 = vmatprep.mubr.f32.mxu0 0.0
    %386 = vmatmul.mubr.f32.gmra.mrb[0].mxu0 %v278
    %v387 = vpop.f32.mrb[0].mxu0
    %v388 = vadd.f32 %v314, %v387
    %v389 = vpop.f32.mrb[0].mxu0
    %390 = vmatprep.mubr.f32.mxu0 0.0
    %391 = vmatmul.mubr.f32.gmra.mrb[0].mxu0 %v279
    %v392 = vpop.f32.mrb[0].mxu0
    %v393 = vadd.f32 %v314, %v392
    %v394 = vpop.f32.mrb[0].mxu0
    %395 = vmatprep.mubr.f32.mxu0 0.0
    %396 = vmatmul.mubr.f32.gmra.mrb[0].mxu0 %v280
    %v397 = vpop.f32.mrb[0].mxu0
    %v398 = vadd.f32 %v314, %v397
    %v399 = vpop.f32.mrb[0].mxu0
    %400 = vmatprep.mubr.f32.mxu0 0.0
    %401 = vmatmul.mubr.f32.gmra.mrb[0].mxu0 %v281
    %v402 = vpop.f32.mrb[0].mxu0
    %v403 = vadd.f32 %v314, %v402
    %v404 = vpop.f32.mrb[0].mxu0
    %405 = vmatprep.mubr.f32.mxu0 0.0
    %406 = vmatmul.mubr.f32.gmra.mrb[0].mxu0 %v282
    %v407 = vpop.f32.mrb[0].mxu0
    %v408 = vadd.f32 %v314, %v407
    %v409 = vpop.f32.mrb[0].mxu0
    %410 = vmatprep.mubr.f32.mxu0 0.0
    %411 = vmatmul.mubr.f32.gmra.mrb[0].mxu0 %v283
    %v412 = vpop.f32.mrb[0].mxu0
    %v413 = vadd.f32 %v314, %v412
    %v414 = vpop.f32.mrb[0].mxu0
    %415 = vmatprep.mubr.f32.mxu0 0.0
    %416 = vmatmul.mubr.f32.gmra.mrb[0].mxu0 %v284
    %v417 = vpop.f32.mrb[0].mxu0
    %v418 = vadd.f32 %v314, %v417
    %v419 = vpop.f32.mrb[0].mxu0
    %420 = vmatprep.mubr.f32.mxu0 0.0
    %421 = vmatmul.mubr.f32.gmra.mrb[0].mxu0 %v285
    %v422 = vpop.f32.mrb[0].mxu0
    %v423 = vadd.f32 %v314, %v422
    %v424 = vpop.f32.mrb[0].mxu0
    %425 = vmatprep.mubr.f32.mxu0 0.0
    %426 = vmatmul.mubr.f32.gmra.mrb[0].mxu0 %v286
    %v427 = vpop.f32.mrb[0].mxu0
    %v428 = vadd.f32 %v314, %v427
    %v429 = vpop.f32.mrb[0].mxu0
    %430 = vmatprep.mubr.f32.mxu0 0.0
    %431 = vmatmul.mubr.f32.gmra.mrb[0].mxu0 %v287
    %v432 = vpop.f32.mrb[0].mxu0
    %v433 = vadd.f32 %v314, %v432
    %v434 = vpop.f32.mrb[0].mxu0
    %435 = vmatprep.mubr.f32.mxu0 0.0
    %436 = vmatmul.mubr.f32.gmra.mrb[0].mxu0 %v288
    %v437 = vpop.f32.mrb[0].mxu0
    %v438 = vadd.f32 %v314, %v437
    %v439 = vpop.f32.mrb[0].mxu0
    %440 = vmatprep.mubr.f32.mxu0 0.0
    %441 = vmatmul.mubr.f32.gmra.mrb[0].mxu0 %v289
    %v442 = vpop.f32.mrb[0].mxu0
    %v443 = vadd.f32 %v314, %v442
    %v444 = vpop.f32.mrb[0].mxu0
    %445 = vmatprep.mubr.f32.mxu0 0.0
    %446 = vmatmul.mubr.f32.gmra.mrb[0].mxu0 %v290
    %v447 = vpop.f32.mrb[0].mxu0
    %v448 = vadd.f32 %v314, %v447
    %v449 = vpop.f32.mrb[0].mxu0
    %450 = vmatprep.mubr.f32.mxu0 0.0
    %451 = vmatmul.mubr.f32.gmra.mrb[0].mxu0 %v291
    %v452 = vpop.f32.mrb[0].mxu0
    %v453 = vadd.f32 %v314, %v452
    %v454 = vpop.f32.mrb[0].mxu0
    %455 = vmatprep.mubr.f32.mxu0 0.0
    %456 = vmatmul.mubr.f32.gmra.mrb[0].mxu0 %v292
    %v457 = vpop.f32.mrb[0].mxu0
    %v458 = vadd.f32 %v314, %v457
    %v459 = vpop.f32.mrb[0].mxu0
    %460 = vdwg.mxu0
    %v461 = vmax.f32 %v383, 0.0
    %v462 = vmax.f32 %v388, 0.0
    %v463 = vmax.f32 %v393, 0.0
    %v464 = vmax.f32 %v398, 0.0
    %v465 = vmax.f32 %v403, 0.0
    %v466 = vmax.f32 %v408, 0.0
    %v467 = vmax.f32 %v413, 0.0
    %v468 = vmax.f32 %v418, 0.0
    %v469 = vmax.f32 %v423, 0.0
    %v470 = vmax.f32 %v428, 0.0
    %v471 = vmax.f32 %v433, 0.0
    %v472 = vmax.f32 %v438, 0.0
    %v473 = vmax.f32 %v443, 0.0
    %v474 = vmax.f32 %v448, 0.0
    %v475 = vmax.f32 %v453, 0.0
    %v476 = vmax.f32 %v458, 0.0
    %v477 = vld [vmem:[#allocation2] sm:$0xff]
    %v478 = vld [vmem:[#allocation2 + $0x8] sm:$0xff]
    %v479 = vld [vmem:[#allocation2 + $0x10] sm:$0xff]
    %v480 = vld [vmem:[#allocation2 + $0x18] sm:$0xff]
    %v481 = vld [vmem:[#allocation2 + $0x20] sm:$0xff]
    %v482 = vld [vmem:[#allocation2 + $0x28] sm:$0xff]
    %v483 = vld [vmem:[#allocation2 + $0x30] sm:$0xff]
    %v484 = vld [vmem:[#allocation2 + $0x38] sm:$0xff]
    %v485 = vld [vmem:[#allocation2 + $0x40] sm:$0xff]
    %v486 = vld [vmem:[#allocation2 + $0x48] sm:$0xff]
    %v487 = vld [vmem:[#allocation2 + $0x50] sm:$0xff]
    %v488 = vld [vmem:[#allocation2 + $0x58] sm:$0xff]
    %v489 = vld [vmem:[#allocation2 + $0x60] sm:$0xff]
    %v490 = vld [vmem:[#allocation2 + $0x68] sm:$0xff]
    %v491 = vld [vmem:[#allocation2 + $0x70] sm:$0xff]
    %v492 = vld [vmem:[#allocation2 + $0x78] sm:$0xff]
    %v493 = vld [vmem:[#allocation2 + $0x80] sm:$0xff]
    %v494 = vld [vmem:[#allocation2 + $0x88] sm:$0xff]
    %v495 = vld [vmem:[#allocation2 + $0x90] sm:$0xff]
    %v496 = vld [vmem:[#allocation2 + $0x98] sm:$0xff]
    %v497 = vld [vmem:[#allocation2 + $0xa0] sm:$0xff]
    %v498 = vld [vmem:[#allocation2 + $0xa8] sm:$0xff]
    %v499 = vld [vmem:[#allocation2 + $0xb0] sm:$0xff]
    %v500 = vld [vmem:[#allocation2 + $0xb8] sm:$0xff]
    %v501 = vld [vmem:[#allocation2 + $0xc0] sm:$0xff]
    %v502 = vld [vmem:[#allocation2 + $0xc8] sm:$0xff]
    %v503 = vld [vmem:[#allocation2 + $0xd0] sm:$0xff]
    %v504 = vld [vmem:[#allocation2 + $0xd8] sm:$0xff]
    %v505 = vld [vmem:[#allocation2 + $0xe0] sm:$0xff]
    %v506 = vld [vmem:[#allocation2 + $0xe8] sm:$0xff]
    %v507 = vld [vmem:[#allocation2 + $0xf0] sm:$0xff]
    %v508 = vld [vmem:[#allocation2 + $0xf8] sm:$0xff]
    %v509 = vld [vmem:[#allocation2 + $0x100] sm:$0xff]
    %v510 = vld [vmem:[#allocation2 + $0x108] sm:$0xff]
    %v511 = vld [vmem:[#allocation2 + $0x110] sm:$0xff]
    %v512 = vld [vmem:[#allocation2 + $0x118] sm:$0xff]
    %v513 = vld [vmem:[#allocation2 + $0x120] sm:$0xff]
    %v514 = vld [vmem:[#allocation2 + $0x128] sm:$0xff]
    %v515 = vld [vmem:[#allocation2 + $0x130] sm:$0xff]
    %v516 = vld [vmem:[#allocation2 + $0x138] sm:$0xff]
    %v517 = vld [vmem:[#allocation2 + $0x140] sm:$0xff]
    %v518 = vld [vmem:[#allocation2 + $0x148] sm:$0xff]
    %v519 = vld [vmem:[#allocation2 + $0x150] sm:$0xff]
    %v520 = vld [vmem:[#allocation2 + $0x158] sm:$0xff]
    %v521 = vld [vmem:[#allocation2 + $0x160] sm:$0xff]
    %v522 = vld [vmem:[#allocation2 + $0x168] sm:$0xff]
    %v523 = vld [vmem:[#allocation2 + $0x170] sm:$0xff]
    %v524 = vld [vmem:[#allocation2 + $0x178] sm:$0xff]
    %v525 = vld [vmem:[#allocation2 + $0x180] sm:$0xff]
    %v526 = vld [vmem:[#allocation2 + $0x188] sm:$0xff]
    %v527 = vld [vmem:[#allocation2 + $0x190] sm:$0xff]
    %v528 = vld [vmem:[#allocation2 + $0x198] sm:$0xff]
    %v529 = vld [vmem:[#allocation2 + $0x1a0] sm:$0xff]
    %v530 = vld [vmem:[#allocation2 + $0x1a8] sm:$0xff]
    %v531 = vld [vmem:[#allocation2 + $0x1b0] sm:$0xff]
    %v532 = vld [vmem:[#allocation2 + $0x1b8] sm:$0xff]
    %v533 = vld [vmem:[#allocation2 + $0x1c0] sm:$0xff]
    %v534 = vld [vmem:[#allocation2 + $0x1c8] sm:$0xff]
    %v535 = vld [vmem:[#allocation2 + $0x1d0] sm:$0xff]
    %v536 = vld [vmem:[#allocation2 + $0x1d8] sm:$0xff]
    %v537 = vld [vmem:[#allocation2 + $0x1e0] sm:$0xff]
    %v538 = vld [vmem:[#allocation2 + $0x1e8] sm:$0xff]
    %v539 = vld [vmem:[#allocation2 + $0x1f0] sm:$0xff]
    %v540 = vld [vmem:[#allocation2 + $0x1f8] sm:$0xff]
    %v541 = vld [vmem:[%s6] sm:$0xf]
    %v543 = vlaneseq
    %v544 = vshrl.u32 %v543, 7
    %v545 = vsub.s32 0, %v544
    %v546 = vrot.slane %v541, %v545
    %v547 = vlaneseq
    %v548 = vshrl.u32 %v547, 7
    %v549 = vsub.s32 1, %v548
    %v550 = vrot.slane %v541, %v549
    %v551 = vlaneseq
    %v552 = vshrl.u32 %v551, 7
    %v553 = vsub.s32 2, %v552
    %v554 = vrot.slane %v541, %v553
    %v555 = vlaneseq
    %v556 = vshrl.u32 %v555, 7
    %v557 = vsub.s32 3, %v556
    %v558 = vrot.slane %v541, %v557
    %563 = vmatprep.subr.mxu0 %v478
    %564 = vmatpush1.msra.mxu0 %v477
    %565 = vmatprep.subr.mxu0 %v482
    %566 = vmatpush1.msra.mxu0 %v481
    %567 = vmatprep.subr.mxu0 %v486
    %568 = vmatpush1.msra.mxu0 %v485
    %569 = vmatprep.subr.mxu0 %v490
    %570 = vmatpush1.msra.mxu0 %v489
    %571 = vmatprep.subr.mxu0 %v494
    %572 = vmatpush1.msra.mxu0 %v493
    %573 = vmatprep.subr.mxu0 %v498
    %574 = vmatpush1.msra.mxu0 %v497
    %575 = vmatprep.subr.mxu0 %v502
    %576 = vmatpush1.msra.mxu0 %v501
    %577 = vmatprep.subr.mxu0 %v506
    %578 = vmatpush1.msra.mxu0 %v505
    %579 = vmatprep.subr.mxu0 %v510
    %580 = vmatpush1.msra.mxu0 %v509
    %581 = vmatprep.subr.mxu0 %v514
    %582 = vmatpush1.msra.mxu0 %v513
    %583 = vmatprep.subr.mxu0 %v518
    %584 = vmatpush1.msra.mxu0 %v517
    %585 = vmatprep.subr.mxu0 %v522
    %586 = vmatpush1.msra.mxu0 %v521
    %587 = vmatprep.subr.mxu0 %v526
    %588 = vmatpush1.msra.mxu0 %v525
    %589 = vmatprep.subr.mxu0 %v530
    %590 = vmatpush1.msra.mxu0 %v529
    %591 = vmatprep.subr.mxu0 %v534
    %592 = vmatpush1.msra.mxu0 %v533
    %593 = vmatprep.subr.mxu0 %v538
    %594 = vmatpush1.msra.mxu0 %v537
    %595 = vmatprep.subr.mxu0 0.0
    %596 = vmatpush1.msra.mxu0 0.0
    %597 = vmatprep.subr.mxu0 0.0
    %598 = vmatpush1.msra.mxu0 0.0
    %599 = vmatprep.subr.mxu0 0.0
    %600 = vmatpush1.msra.mxu0 0.0
    %601 = vmatprep.subr.mxu0 0.0
    %602 = vmatpush1.msra.mxu0 0.0
    %603 = vmatprep.subr.mxu0 0.0
    %604 = vmatpush1.msra.mxu0 0.0
    %605 = vmatprep.subr.mxu0 0.0
    %606 = vmatpush1.msra.mxu0 0.0
    %607 = vmatprep.subr.mxu0 0.0
    %608 = vmatpush1.msra.mxu0 0.0
    %609 = vmatprep.subr.mxu0 0.0
    %610 = vmatpush1.msra.mxu0 0.0
    %611 = vmatprep.subr.mxu0 0.0
    %612 = vmatpush1.msra.mxu0 0.0
    %613 = vmatprep.subr.mxu0 0.0
    %614 = vmatpush1.msra.mxu0 0.0
    %615 = vmatprep.subr.mxu0 0.0
    %616 = vmatpush1.msra.mxu0 0.0
    %617 = vmatprep.subr.mxu0 0.0
    %618 = vmatpush1.msra.mxu0 0.0
    %619 = vmatprep.subr.mxu0 0.0
    %620 = vmatpush1.msra.mxu0 0.0
    %621 = vmatprep.subr.mxu0 0.0
    %622 = vmatpush1.msra.mxu0 0.0
    %623 = vmatprep.subr.mxu0 0.0
    %624 = vmatpush1.msra.mxu0 0.0
    %625 = vmatprep.subr.mxu0 0.0
    %626 = vmatpush1.msra.mxu0 0.0
    %627 = vmatprep.mubr.f32.mxu0 0.0
    %628 = vmatmul.mubr.f32.gmra.mrb[0].mxu0 %v461
    %v629 = vpop.f32.mrb[0].mxu0
    %v630 = vadd.f32 %v546, %v629
    %v631 = vpop.f32.mrb[0].mxu0
    %v632 = vadd.f32 %v550, %v631
    %633 = vmatprep.mubr.f32.mxu0 0.0
    %634 = vmatmul.mubr.f32.gmra.mrb[0].mxu0 %v462
    %v635 = vpop.f32.mrb[0].mxu0
    %v636 = vadd.f32 %v546, %v635
    %v637 = vpop.f32.mrb[0].mxu0
    %v638 = vadd.f32 %v550, %v637
    %639 = vmatprep.mubr.f32.mxu0 0.0
    %640 = vmatmul.mubr.f32.gmra.mrb[0].mxu0 %v463
    %v641 = vpop.f32.mrb[0].mxu0
    %v642 = vadd.f32 %v546, %v641
    %v643 = vpop.f32.mrb[0].mxu0
    %v644 = vadd.f32 %v550, %v643
    %645 = vmatprep.mubr.f32.mxu0 0.0
    %646 = vmatmul.mubr.f32.gmra.mrb[0].mxu0 %v464
    %v647 = vpop.f32.mrb[0].mxu0
    %v648 = vadd.f32 %v546, %v647
    %v649 = vpop.f32.mrb[0].mxu0
    %v650 = vadd.f32 %v550, %v649
    %651 = vmatprep.mubr.f32.mxu0 0.0
    %652 = vmatmul.mubr.f32.gmra.mrb[0].mxu0 %v465
    %v653 = vpop.f32.mrb[0].mxu0
    %v654 = vadd.f32 %v546, %v653
    %v655 = vpop.f32.mrb[0].mxu0
    %v656 = vadd.f32 %v550, %v655
    %657 = vmatprep.mubr.f32.mxu0 0.0
    %658 = vmatmul.mubr.f32.gmra.mrb[0].mxu0 %v466
    %v659 = vpop.f32.mrb[0].mxu0
    %v660 = vadd.f32 %v546, %v659
    %v661 = vpop.f32.mrb[0].mxu0
    %v662 = vadd.f32 %v550, %v661
    %663 = vmatprep.mubr.f32.mxu0 0.0
    %664 = vmatmul.mubr.f32.gmra.mrb[0].mxu0 %v467
    %v665 = vpop.f32.mrb[0].mxu0
    %v666 = vadd.f32 %v546, %v665
    %v667 = vpop.f32.mrb[0].mxu0
    %v668 = vadd.f32 %v550, %v667
    %669 = vmatprep.mubr.f32.mxu0 0.0
    %670 = vmatmul.mubr.f32.gmra.mrb[0].mxu0 %v468
    %v671 = vpop.f32.mrb[0].mxu0
    %v672 = vadd.f32 %v546, %v671
    %v673 = vpop.f32.mrb[0].mxu0
    %v674 = vadd.f32 %v550, %v673
    %675 = vmatprep.mubr.f32.mxu0 0.0
    %676 = vmatmul.mubr.f32.gmra.mrb[0].mxu0 %v469
    %v677 = vpop.f32.mrb[0].mxu0
    %v678 = vadd.f32 %v546, %v677
    %v679 = vpop.f32.mrb[0].mxu0
    %v680 = vadd.f32 %v550, %v679
    %681 = vmatprep.mubr.f32.mxu0 0.0
    %682 = vmatmul.mubr.f32.gmra.mrb[0].mxu0 %v470
    %v683 = vpop.f32.mrb[0].mxu0
    %v684 = vadd.f32 %v546, %v683
    %v685 = vpop.f32.mrb[0].mxu0
    %v686 = vadd.f32 %v550, %v685
    %687 = vmatprep.mubr.f32.mxu0 0.0
    %688 = vmatmul.mubr.f32.gmra.mrb[0].mxu0 %v471
    %v689 = vpop.f32.mrb[0].mxu0
    %v690 = vadd.f32 %v546, %v689
    %v691 = vpop.f32.mrb[0].mxu0
    %v692 = vadd.f32 %v550, %v691
    %693 = vmatprep.mubr.f32.mxu0 0.0
    %694 = vmatmul.mubr.f32.gmra.mrb[0].mxu0 %v472
    %v695 = vpop.f32.mrb[0].mxu0
    %v696 = vadd.f32 %v546, %v695
    %v697 = vpop.f32.mrb[0].mxu0
    %v698 = vadd.f32 %v550, %v697
    %699 = vmatprep.mubr.f32.mxu0 0.0
    %700 = vmatmul.mubr.f32.gmra.mrb[0].mxu0 %v473
    %v701 = vpop.f32.mrb[0].mxu0
    %v702 = vadd.f32 %v546, %v701
    %v703 = vpop.f32.mrb[0].mxu0
    %v704 = vadd.f32 %v550, %v703
    %705 = vmatprep.mubr.f32.mxu0 0.0
    %706 = vmatmul.mubr.f32.gmra.mrb[0].mxu0 %v474
    %v707 = vpop.f32.mrb[0].mxu0
    %v708 = vadd.f32 %v546, %v707
    %v709 = vpop.f32.mrb[0].mxu0
    %v710 = vadd.f32 %v550, %v709
    %711 = vmatprep.mubr.f32.mxu0 0.0
    %712 = vmatmul.mubr.f32.gmra.mrb[0].mxu0 %v475
    %v713 = vpop.f32.mrb[0].mxu0
    %v714 = vadd.f32 %v546, %v713
    %v715 = vpop.f32.mrb[0].mxu0
    %v716 = vadd.f32 %v550, %v715
    %717 = vmatprep.mubr.f32.mxu0 0.0
    %718 = vmatmul.mubr.f32.gmra.mrb[0].mxu0 %v476
    %v719 = vpop.f32.mrb[0].mxu0
    %v720 = vadd.f32 %v546, %v719
    %v721 = vpop.f32.mrb[0].mxu0
    %v722 = vadd.f32 %v550, %v721
    %723 = vdwg.mxu0
    %724 = vmatprep.subr.mxu0 %v480
    %725 = vmatpush1.msra.mxu0 %v479
    %726 = vmatprep.subr.mxu0 %v484
    %727 = vmatpush1.msra.mxu0 %v483
    %728 = vmatprep.subr.mxu0 %v488
    %729 = vmatpush1.msra.mxu0 %v487
    %730 = vmatprep.subr.mxu0 %v492
    %731 = vmatpush1.msra.mxu0 %v491
    %732 = vmatprep.subr.mxu0 %v496
    %733 = vmatpush1.msra.mxu0 %v495
    %734 = vmatprep.subr.mxu0 %v500
    %735 = vmatpush1.msra.mxu0 %v499
    %736 = vmatprep.subr.mxu0 %v504
    %737 = vmatpush1.msra.mxu0 %v503
    %738 = vmatprep.subr.mxu0 %v508
    %739 = vmatpush1.msra.mxu0 %v507
    %740 = vmatprep.subr.mxu0 %v512
    %741 = vmatpush1.msra.mxu0 %v511
    %742 = vmatprep.subr.mxu0 %v516
    %743 = vmatpush1.msra.mxu0 %v515
    %744 = vmatprep.subr.mxu0 %v520
    %745 = vmatpush1.msra.mxu0 %v519
    %746 = vmatprep.subr.mxu0 %v524
    %747 = vmatpush1.msra.mxu0 %v523
    %748 = vmatprep.subr.mxu0 %v528
    %749 = vmatpush1.msra.mxu0 %v527
    %750 = vmatprep.subr.mxu0 %v532
    %751 = vmatpush1.msra.mxu0 %v531
    %752 = vmatprep.subr.mxu0 %v536
    %753 = vmatpush1.msra.mxu0 %v535
    %754 = vmatprep.subr.mxu0 %v540
    %755 = vmatpush1.msra.mxu0 %v539
    %756 = vmatprep.subr.mxu0 0.0
    %757 = vmatpush1.msra.mxu0 0.0
    %758 = vmatprep.subr.mxu0 0.0
    %759 = vmatpush1.msra.mxu0 0.0
    %760 = vmatprep.subr.mxu0 0.0
    %761 = vmatpush1.msra.mxu0 0.0
    %762 = vmatprep.subr.mxu0 0.0
    %763 = vmatpush1.msra.mxu0 0.0
    %764 = vmatprep.subr.mxu0 0.0
    %765 = vmatpush1.msra.mxu0 0.0
    %766 = vmatprep.subr.mxu0 0.0
    %767 = vmatpush1.msra.mxu0 0.0
    %768 = vmatprep.subr.mxu0 0.0
    %769 = vmatpush1.msra.mxu0 0.0
    %770 = vmatprep.subr.mxu0 0.0
    %771 = vmatpush1.msra.mxu0 0.0
    %772 = vmatprep.subr.mxu0 0.0
    %773 = vmatpush1.msra.mxu0 0.0
    %774 = vmatprep.subr.mxu0 0.0
    %775 = vmatpush1.msra.mxu0 0.0
    %776 = vmatprep.subr.mxu0 0.0
    %777 = vmatpush1.msra.mxu0 0.0
    %778 = vmatprep.subr.mxu0 0.0
    %779 = vmatpush1.msra.mxu0 0.0
    %780 = vmatprep.subr.mxu0 0.0
    %781 = vmatpush1.msra.mxu0 0.0
    %782 = vmatprep.subr.mxu0 0.0
    %783 = vmatpush1.msra.mxu0 0.0
    %784 = vmatprep.subr.mxu0 0.0
    %785 = vmatpush1.msra.mxu0 0.0
    %786 = vmatprep.subr.mxu0 0.0
    %787 = vmatpush1.msra.mxu0 0.0
    %788 = vmatprep.mubr.f32.mxu0 0.0
    %789 = vmatmul.mubr.f32.gmra.mrb[0].mxu0 %v461
    %v790 = vpop.f32.mrb[0].mxu0
    %v791 = vadd.f32 %v554, %v790
    %v792 = vpop.f32.mrb[0].mxu0
    %v793 = vadd.f32 %v558, %v792
    %794 = vmatprep.mubr.f32.mxu0 0.0
    %795 = vmatmul.mubr.f32.gmra.mrb[0].mxu0 %v462
    %v796 = vpop.f32.mrb[0].mxu0
    %v797 = vadd.f32 %v554, %v796
    %v798 = vpop.f32.mrb[0].mxu0
    %v799 = vadd.f32 %v558, %v798
    %800 = vmatprep.mubr.f32.mxu0 0.0
    %801 = vmatmul.mubr.f32.gmra.mrb[0].mxu0 %v463
    %v802 = vpop.f32.mrb[0].mxu0
    %v803 = vadd.f32 %v554, %v802
    %v804 = vpop.f32.mrb[0].mxu0
    %v805 = vadd.f32 %v558, %v804
    %806 = vmatprep.mubr.f32.mxu0 0.0
    %807 = vmatmul.mubr.f32.gmra.mrb[0].mxu0 %v464
    %v808 = vpop.f32.mrb[0].mxu0
    %v809 = vadd.f32 %v554, %v808
    %v810 = vpop.f32.mrb[0].mxu0
    %v811 = vadd.f32 %v558, %v810
    %812 = vmatprep.mubr.f32.mxu0 0.0
    %813 = vmatmul.mubr.f32.gmra.mrb[0].mxu0 %v465
    %v814 = vpop.f32.mrb[0].mxu0
    %v815 = vadd.f32 %v554, %v814
    %v816 = vpop.f32.mrb[0].mxu0
    %v817 = vadd.f32 %v558, %v816
    %818 = vmatprep.mubr.f32.mxu0 0.0
    %819 = vmatmul.mubr.f32.gmra.mrb[0].mxu0 %v466
    %v820 = vpop.f32.mrb[0].mxu0
    %v821 = vadd.f32 %v554, %v820
    %v822 = vpop.f32.mrb[0].mxu0
    %v823 = vadd.f32 %v558, %v822
    %824 = vmatprep.mubr.f32.mxu0 0.0
    %825 = vmatmul.mubr.f32.gmra.mrb[0].mxu0 %v467
    %v826 = vpop.f32.mrb[0].mxu0
    %v827 = vadd.f32 %v554, %v826
    %v828 = vpop.f32.mrb[0].mxu0
    %v829 = vadd.f32 %v558, %v828
    %830 = vmatprep.mubr.f32.mxu0 0.0
    %831 = vmatmul.mubr.f32.gmra.mrb[0].mxu0 %v468
    %v832 = vpop.f32.mrb[0].mxu0
    %v833 = vadd.f32 %v554, %v832
    %v834 = vpop.f32.mrb[0].mxu0
    %v835 = vadd.f32 %v558, %v834
    %836 = vmatprep.mubr.f32.mxu0 0.0
    %837 = vmatmul.mubr.f32.gmra.mrb[0].mxu0 %v469
    %v838 = vpop.f32.mrb[0].mxu0
    %v839 = vadd.f32 %v554, %v838
    %v840 = vpop.f32.mrb[0].mxu0
    %v841 = vadd.f32 %v558, %v840
    %842 = vmatprep.mubr.f32.mxu0 0.0
    %843 = vmatmul.mubr.f32.gmra.mrb[0].mxu0 %v470
    %v844 = vpop.f32.mrb[0].mxu0
    %v845 = vadd.f32 %v554, %v844
    %v846 = vpop.f32.mrb[0].mxu0
    %v847 = vadd.f32 %v558, %v846
    %848 = vmatprep.mubr.f32.mxu0 0.0
    %849 = vmatmul.mubr.f32.gmra.mrb[0].mxu0 %v471
    %v850 = vpop.f32.mrb[0].mxu0
    %v851 = vadd.f32 %v554, %v850
    %v852 = vpop.f32.mrb[0].mxu0
    %v853 = vadd.f32 %v558, %v852
    %854 = vmatprep.mubr.f32.mxu0 0.0
    %855 = vmatmul.mubr.f32.gmra.mrb[0].mxu0 %v472
    %v856 = vpop.f32.mrb[0].mxu0
    %v857 = vadd.f32 %v554, %v856
    %v858 = vpop.f32.mrb[0].mxu0
    %v859 = vadd.f32 %v558, %v858
    %860 = vmatprep.mubr.f32.mxu0 0.0
    %861 = vmatmul.mubr.f32.gmra.mrb[0].mxu0 %v473
    %v862 = vpop.f32.mrb[0].mxu0
    %v863 = vadd.f32 %v554, %v862
    %v864 = vpop.f32.mrb[0].mxu0
    %v865 = vadd.f32 %v558, %v864
    %866 = vmatprep.mubr.f32.mxu0 0.0
    %867 = vmatmul.mubr.f32.gmra.mrb[0].mxu0 %v474
    %v868 = vpop.f32.mrb[0].mxu0
    %v869 = vadd.f32 %v554, %v868
    %v870 = vpop.f32.mrb[0].mxu0
    %v871 = vadd.f32 %v558, %v870
    %872 = vmatprep.mubr.f32.mxu0 0.0
    %873 = vmatmul.mubr.f32.gmra.mrb[0].mxu0 %v475
    %v874 = vpop.f32.mrb[0].mxu0
    %v875 = vadd.f32 %v554, %v874
    %v876 = vpop.f32.mrb[0].mxu0
    %v877 = vadd.f32 %v558, %v876
    %878 = vmatprep.mubr.f32.mxu0 0.0
    %879 = vmatmul.mubr.f32.gmra.mrb[0].mxu0 %v476
    %v880 = vpop.f32.mrb[0].mxu0
    %v881 = vadd.f32 %v554, %v880
    %v882 = vpop.f32.mrb[0].mxu0
    %v883 = vadd.f32 %v558, %v882
    %884 = vdwg.mxu0
    %v885 = vld [vmem:[#allocation4] sm:$0xff]
    %v886 = vld [vmem:[#allocation4 + $0x8] sm:$0xff]
    %v887 = vld [vmem:[#allocation4 + $0x10] sm:$0xff]
    %v888 = vld [vmem:[#allocation4 + $0x18] sm:$0xff]
    %v889 = vld [vmem:[#allocation4 + $0x20] sm:$0xff]
    %v890 = vld [vmem:[#allocation4 + $0x28] sm:$0xff]
    %v891 = vld [vmem:[#allocation4 + $0x30] sm:$0xff]
    %v892 = vld [vmem:[#allocation4 + $0x38] sm:$0xff]
    %v893 = vld [vmem:[#allocation4 + $0x40] sm:$0xff]
    %v894 = vld [vmem:[#allocation4 + $0x48] sm:$0xff]
    %v895 = vld [vmem:[#allocation4 + $0x50] sm:$0xff]
    %v896 = vld [vmem:[#allocation4 + $0x58] sm:$0xff]
    %v897 = vld [vmem:[#allocation4 + $0x60] sm:$0xff]
    %v898 = vld [vmem:[#allocation4 + $0x68] sm:$0xff]
    %v899 = vld [vmem:[#allocation4 + $0x70] sm:$0xff]
    %v900 = vld [vmem:[#allocation4 + $0x78] sm:$0xff]
    %901 = vmax.xlane.f32.xlu0 %v630
    %v902 = vpop.xlane.xlu0 %901
    %903 = vmax.xlane.f32.xlu0 %v636
    %v904 = vpop.xlane.xlu0 %903
    %905 = vmax.xlane.f32.xlu0 %v642
    %v906 = vpop.xlane.xlu0 %905
    %907 = vmax.xlane.f32.xlu0 %v648
    %v908 = vpop.xlane.xlu0 %907
    %909 = vmax.xlane.f32.xlu0 %v654
    %v910 = vpop.xlane.xlu0 %909
    %911 = vmax.xlane.f32.xlu0 %v660
    %v912 = vpop.xlane.xlu0 %911
    %913 = vmax.xlane.f32.xlu0 %v666
    %v914 = vpop.xlane.xlu0 %913
    %915 = vmax.xlane.f32.xlu0 %v672
    %v916 = vpop.xlane.xlu0 %915
    %917 = vmax.xlane.f32.xlu0 %v678
    %v918 = vpop.xlane.xlu0 %917
    %919 = vmax.xlane.f32.xlu0 %v684
    %v920 = vpop.xlane.xlu0 %919
    %921 = vmax.xlane.f32.xlu0 %v690
    %v922 = vpop.xlane.xlu0 %921
    %923 = vmax.xlane.f32.xlu0 %v696
    %v924 = vpop.xlane.xlu0 %923
    %925 = vmax.xlane.f32.xlu0 %v702
    %v926 = vpop.xlane.xlu0 %925
    %927 = vmax.xlane.f32.xlu0 %v708
    %v928 = vpop.xlane.xlu0 %927
    %929 = vmax.xlane.f32.xlu0 %v714
    %v930 = vpop.xlane.xlu0 %929
    %931 = vmax.xlane.f32.xlu0 %v720
    %v932 = vpop.xlane.xlu0 %931
    %v933 = vsub.f32 %v630, %v902
    %v934 = vsub.f32 %v636, %v904
    %v935 = vsub.f32 %v642, %v906
    %v936 = vsub.f32 %v648, %v908
    %v937 = vsub.f32 %v654, %v910
    %v938 = vsub.f32 %v660, %v912
    %v939 = vsub.f32 %v666, %v914
    %v940 = vsub.f32 %v672, %v916
    %v941 = vsub.f32 %v678, %v918
    %v942 = vsub.f32 %v684, %v920
    %v943 = vsub.f32 %v690, %v922
    %v944 = vsub.f32 %v696, %v924
    %v945 = vsub.f32 %v702, %v926
    %v946 = vsub.f32 %v708, %v928
    %v947 = vsub.f32 %v714, %v930
    %v948 = vsub.f32 %v720, %v932
    %v949 = vmul.f32 %v933, 1.442695
    %v950 = vpow.pop %v949
    %v951 = vmul.f32 %v934, 1.442695
    %v952 = vpow.pop %v951
    %v953 = vmul.f32 %v935, 1.442695
    %v954 = vpow.pop %v953
    %v955 = vmul.f32 %v936, 1.442695
    %v956 = vpow.pop %v955
    %v957 = vmul.f32 %v937, 1.442695
    %v958 = vpow.pop %v957
    %v959 = vmul.f32 %v938, 1.442695
    %v960 = vpow.pop %v959
    %v961 = vmul.f32 %v939, 1.442695
    %v962 = vpow.pop %v961
    %v963 = vmul.f32 %v940, 1.442695
    %v964 = vpow.pop %v963
    %v965 = vmul.f32 %v941, 1.442695
    %v966 = vpow.pop %v965
    %v967 = vmul.f32 %v942, 1.442695
    %v968 = vpow.pop %v967
    %v969 = vmul.f32 %v943, 1.442695
    %v970 = vpow.pop %v969
    %v971 = vmul.f32 %v944, 1.442695
    %v972 = vpow.pop %v971
    %v973 = vmul.f32 %v945, 1.442695
    %v974 = vpow.pop %v973
    %v975 = vmul.f32 %v946, 1.442695
    %v976 = vpow.pop %v975
    %v977 = vmul.f32 %v947, 1.442695
    %v978 = vpow.pop %v977
    %v979 = vmul.f32 %v948, 1.442695
    %v980 = vpow.pop %v979
    %981 = vmatprep.subr.mxu0 0.0
    %982 = vmatpush1.msra.mxu0 %v885
    %983 = vmatprep.subr.mxu0 0.0
    %984 = vmatpush1.msra.mxu0 %v886
    %985 = vmatprep.subr.mxu0 0.0
    %986 = vmatpush1.msra.mxu0 %v887
    %987 = vmatprep.subr.mxu0 0.0
    %988 = vmatpush1.msra.mxu0 %v888
    %989 = vmatprep.subr.mxu0 0.0
    %990 = vmatpush1.msra.mxu0 %v889
    %991 = vmatprep.subr.mxu0 0.0
    %992 = vmatpush1.msra.mxu0 %v890
    %993 = vmatprep.subr.mxu0 0.0
    %994 = vmatpush1.msra.mxu0 %v891
    %995 = vmatprep.subr.mxu0 0.0
    %996 = vmatpush1.msra.mxu0 %v892
    %997 = vmatprep.subr.mxu0 0.0
    %998 = vmatpush1.msra.mxu0 %v893
    %999 = vmatprep.subr.mxu0 0.0
    %1000 = vmatpush1.msra.mxu0 %v894
    %1001 = vmatprep.subr.mxu0 0.0
    %1002 = vmatpush1.msra.mxu0 %v895
    %1003 = vmatprep.subr.mxu0 0.0
    %1004 = vmatpush1.msra.mxu0 %v896
    %1005 = vmatprep.subr.mxu0 0.0
    %1006 = vmatpush1.msra.mxu0 %v897
    %1007 = vmatprep.subr.mxu0 0.0
    %1008 = vmatpush1.msra.mxu0 %v898
    %1009 = vmatprep.subr.mxu0 0.0
    %1010 = vmatpush1.msra.mxu0 %v899
    %1011 = vmatprep.subr.mxu0 0.0
    %1012 = vmatpush1.msra.mxu0 %v900
    %1013 = vmatprep.subr.mxu0 0.0
    %1014 = vmatpush1.msra.mxu0 0.0
    %1015 = vmatprep.subr.mxu0 0.0
    %1016 = vmatpush1.msra.mxu0 0.0
    %1017 = vmatprep.subr.mxu0 0.0
    %1018 = vmatpush1.msra.mxu0 0.0
    %1019 = vmatprep.subr.mxu0 0.0
    %1020 = vmatpush1.msra.mxu0 0.0
    %1021 = vmatprep.subr.mxu0 0.0
    %1022 = vmatpush1.msra.mxu0 0.0
    %1023 = vmatprep.subr.mxu0 0.0
    %1024 = vmatpush1.msra.mxu0 0.0
    %1025 = vmatprep.subr.mxu0 0.0
    %1026 = vmatpush1.msra.mxu0 0.0
    %1027 = vmatprep.subr.mxu0 0.0
    %1028 = vmatpush1.msra.mxu0 0.0
    %1029 = vmatprep.subr.mxu0 0.0
    %1030 = vmatpush1.msra.mxu0 0.0
    %1031 = vmatprep.subr.mxu0 0.0
    %1032 = vmatpush1.msra.mxu0 0.0
    %1033 = vmatprep.subr.mxu0 0.0
    %1034 = vmatpush1.msra.mxu0 0.0
    %1035 = vmatprep.subr.mxu0 0.0
    %1036 = vmatpush1.msra.mxu0 0.0
    %1037 = vmatprep.subr.mxu0 0.0
    %1038 = vmatpush1.msra.mxu0 0.0
    %1039 = vmatprep.subr.mxu0 0.0
    %1040 = vmatpush1.msra.mxu0 0.0
    %1041 = vmatprep.subr.mxu0 0.0
    %1042 = vmatpush1.msra.mxu0 0.0
    %1043 = vmatprep.subr.mxu0 0.0
    %1044 = vmatpush1.msra.mxu0 0.0
    %1045 = vmatprep.mubr.f32.mxu0 0.0
    %1046 = vmatmul.mubr.f32.gmra.mrb[0].mxu0 %v950
    %v1047 = vpop.f32.mrb[0].mxu0
    %v1048 = vadd.f32 0.0, %v1047
    %v1049 = vpop.f32.mrb[0].mxu0
    %1050 = vmatprep.mubr.f32.mxu0 0.0
    %1051 = vmatmul.mubr.f32.gmra.mrb[0].mxu0 %v952
    %v1052 = vpop.f32.mrb[0].mxu0
    %v1053 = vadd.f32 0.0, %v1052
    %v1054 = vpop.f32.mrb[0].mxu0
    %1055 = vmatprep.mubr.f32.mxu0 0.0
    %1056 = vmatmul.mubr.f32.gmra.mrb[0].mxu0 %v954
    %v1057 = vpop.f32.mrb[0].mxu0
    %v1058 = vadd.f32 0.0, %v1057
    %v1059 = vpop.f32.mrb[0].mxu0
    %1060 = vmatprep.mubr.f32.mxu0 0.0
    %1061 = vmatmul.mubr.f32.gmra.mrb[0].mxu0 %v956
    %v1062 = vpop.f32.mrb[0].mxu0
    %v1063 = vadd.f32 0.0, %v1062
    %v1064 = vpop.f32.mrb[0].mxu0
    %1065 = vmatprep.mubr.f32.mxu0 0.0
    %1066 = vmatmul.mubr.f32.gmra.mrb[0].mxu0 %v958
    %v1067 = vpop.f32.mrb[0].mxu0
    %v1068 = vadd.f32 0.0, %v1067
    %v1069 = vpop.f32.mrb[0].mxu0
    %1070 = vmatprep.mubr.f32.mxu0 0.0
    %1071 = vmatmul.mubr.f32.gmra.mrb[0].mxu0 %v960
    %v1072 = vpop.f32.mrb[0].mxu0
    %v1073 = vadd.f32 0.0, %v1072
    %v1074 = vpop.f32.mrb[0].mxu0
    %1075 = vmatprep.mubr.f32.mxu0 0.0
    %1076 = vmatmul.mubr.f32.gmra.mrb[0].mxu0 %v962
    %v1077 = vpop.f32.mrb[0].mxu0
    %v1078 = vadd.f32 0.0, %v1077
    %v1079 = vpop.f32.mrb[0].mxu0
    %1080 = vmatprep.mubr.f32.mxu0 0.0
    %1081 = vmatmul.mubr.f32.gmra.mrb[0].mxu0 %v964
    %v1082 = vpop.f32.mrb[0].mxu0
    %v1083 = vadd.f32 0.0, %v1082
    %v1084 = vpop.f32.mrb[0].mxu0
    %1085 = vmatprep.mubr.f32.mxu0 0.0
    %1086 = vmatmul.mubr.f32.gmra.mrb[0].mxu0 %v966
    %v1087 = vpop.f32.mrb[0].mxu0
    %v1088 = vadd.f32 0.0, %v1087
    %v1089 = vpop.f32.mrb[0].mxu0
    %1090 = vmatprep.mubr.f32.mxu0 0.0
    %1091 = vmatmul.mubr.f32.gmra.mrb[0].mxu0 %v968
    %v1092 = vpop.f32.mrb[0].mxu0
    %v1093 = vadd.f32 0.0, %v1092
    %v1094 = vpop.f32.mrb[0].mxu0
    %1095 = vmatprep.mubr.f32.mxu0 0.0
    %1096 = vmatmul.mubr.f32.gmra.mrb[0].mxu0 %v970
    %v1097 = vpop.f32.mrb[0].mxu0
    %v1098 = vadd.f32 0.0, %v1097
    %v1099 = vpop.f32.mrb[0].mxu0
    %1100 = vmatprep.mubr.f32.mxu0 0.0
    %1101 = vmatmul.mubr.f32.gmra.mrb[0].mxu0 %v972
    %v1102 = vpop.f32.mrb[0].mxu0
    %v1103 = vadd.f32 0.0, %v1102
    %v1104 = vpop.f32.mrb[0].mxu0
    %1105 = vmatprep.mubr.f32.mxu0 0.0
    %1106 = vmatmul.mubr.f32.gmra.mrb[0].mxu0 %v974
    %v1107 = vpop.f32.mrb[0].mxu0
    %v1108 = vadd.f32 0.0, %v1107
    %v1109 = vpop.f32.mrb[0].mxu0
    %1110 = vmatprep.mubr.f32.mxu0 0.0
    %1111 = vmatmul.mubr.f32.gmra.mrb[0].mxu0 %v976
    %v1112 = vpop.f32.mrb[0].mxu0
    %v1113 = vadd.f32 0.0, %v1112
    %v1114 = vpop.f32.mrb[0].mxu0
    %1115 = vmatprep.mubr.f32.mxu0 0.0
    %1116 = vmatmul.mubr.f32.gmra.mrb[0].mxu0 %v978
    %v1117 = vpop.f32.mrb[0].mxu0
    %v1118 = vadd.f32 0.0, %v1117
    %v1119 = vpop.f32.mrb[0].mxu0
    %1120 = vmatprep.mubr.f32.mxu0 0.0
    %1121 = vmatmul.mubr.f32.gmra.mrb[0].mxu0 %v980
    %v1122 = vpop.f32.mrb[0].mxu0
    %v1123 = vadd.f32 0.0, %v1122
    %v1124 = vpop.f32.mrb[0].mxu0
    %1125 = vdwg.mxu0
    %1126 = vmax.xlane.f32.xlu0 %v632
    %v1127 = vpop.xlane.xlu0 %1126
    %1128 = vmax.xlane.f32.xlu0 %v638
    %v1129 = vpop.xlane.xlu0 %1128
    %1130 = vmax.xlane.f32.xlu0 %v644
    %v1131 = vpop.xlane.xlu0 %1130
    %1132 = vmax.xlane.f32.xlu0 %v650
    %v1133 = vpop.xlane.xlu0 %1132
    %1134 = vmax.xlane.f32.xlu0 %v656
    %v1135 = vpop.xlane.xlu0 %1134
    %1136 = vmax.xlane.f32.xlu0 %v662
    %v1137 = vpop.xlane.xlu0 %1136
    %1138 = vmax.xlane.f32.xlu0 %v668
    %v1139 = vpop.xlane.xlu0 %1138
    %1140 = vmax.xlane.f32.xlu0 %v674
    %v1141 = vpop.xlane.xlu0 %1140
    %1142 = vmax.xlane.f32.xlu0 %v680
    %v1143 = vpop.xlane.xlu0 %1142
    %1144 = vmax.xlane.f32.xlu0 %v686
    %v1145 = vpop.xlane.xlu0 %1144
    %1146 = vmax.xlane.f32.xlu0 %v692
    %v1147 = vpop.xlane.xlu0 %1146
    %1148 = vmax.xlane.f32.xlu0 %v698
    %v1149 = vpop.xlane.xlu0 %1148
    %1150 = vmax.xlane.f32.xlu0 %v704
    %v1151 = vpop.xlane.xlu0 %1150
    %1152 = vmax.xlane.f32.xlu0 %v710
    %v1153 = vpop.xlane.xlu0 %1152
    %1154 = vmax.xlane.f32.xlu0 %v716
    %v1155 = vpop.xlane.xlu0 %1154
    %1156 = vmax.xlane.f32.xlu0 %v722
    %v1157 = vpop.xlane.xlu0 %1156
    %v1158 = vsub.f32 %v632, %v1127
    %v1159 = vsub.f32 %v638, %v1129
    %v1160 = vsub.f32 %v644, %v1131
    %v1161 = vsub.f32 %v650, %v1133
    %v1162 = vsub.f32 %v656, %v1135
    %v1163 = vsub.f32 %v662, %v1137
    %v1164 = vsub.f32 %v668, %v1139
    %v1165 = vsub.f32 %v674, %v1141
    %v1166 = vsub.f32 %v680, %v1143
    %v1167 = vsub.f32 %v686, %v1145
    %v1168 = vsub.f32 %v692, %v1147
    %v1169 = vsub.f32 %v698, %v1149
    %v1170 = vsub.f32 %v704, %v1151
    %v1171 = vsub.f32 %v710, %v1153
    %v1172 = vsub.f32 %v716, %v1155
    %v1173 = vsub.f32 %v722, %v1157
    %v1174 = vmul.f32 %v1158, 1.442695
    %v1175 = vpow.pop %v1174
    %v1176 = vmul.f32 %v1159, 1.442695
    %v1177 = vpow.pop %v1176
    %v1178 = vmul.f32 %v1160, 1.442695
    %v1179 = vpow.pop %v1178
    %v1180 = vmul.f32 %v1161, 1.442695
    %v1181 = vpow.pop %v1180
    %v1182 = vmul.f32 %v1162, 1.442695
    %v1183 = vpow.pop %v1182
    %v1184 = vmul.f32 %v1163, 1.442695
    %v1185 = vpow.pop %v1184
    %v1186 = vmul.f32 %v1164, 1.442695
    %v1187 = vpow.pop %v1186
    %v1188 = vmul.f32 %v1165, 1.442695
    %v1189 = vpow.pop %v1188
    %v1190 = vmul.f32 %v1166, 1.442695
    %v1191 = vpow.pop %v1190
    %v1192 = vmul.f32 %v1167, 1.442695
    %v1193 = vpow.pop %v1192
    %v1194 = vmul.f32 %v1168, 1.442695
    %v1195 = vpow.pop %v1194
    %v1196 = vmul.f32 %v1169, 1.442695
    %v1197 = vpow.pop %v1196
    %v1198 = vmul.f32 %v1170, 1.442695
    %v1199 = vpow.pop %v1198
    %v1200 = vmul.f32 %v1171, 1.442695
    %v1201 = vpow.pop %v1200
    %v1202 = vmul.f32 %v1172, 1.442695
    %v1203 = vpow.pop %v1202
    %v1204 = vmul.f32 %v1173, 1.442695
    %v1205 = vpow.pop %v1204
    %1206 = vmatprep.subr.mxu0 0.0
    %1207 = vmatpush1.msra.mxu0 %v885
    %1208 = vmatprep.subr.mxu0 0.0
    %1209 = vmatpush1.msra.mxu0 %v886
    %1210 = vmatprep.subr.mxu0 0.0
    %1211 = vmatpush1.msra.mxu0 %v887
    %1212 = vmatprep.subr.mxu0 0.0
    %1213 = vmatpush1.msra.mxu0 %v888
    %1214 = vmatprep.subr.mxu0 0.0
    %1215 = vmatpush1.msra.mxu0 %v889
    %1216 = vmatprep.subr.mxu0 0.0
    %1217 = vmatpush1.msra.mxu0 %v890
    %1218 = vmatprep.subr.mxu0 0.0
    %1219 = vmatpush1.msra.mxu0 %v891
    %1220 = vmatprep.subr.mxu0 0.0
    %1221 = vmatpush1.msra.mxu0 %v892
    %1222 = vmatprep.subr.mxu0 0.0
    %1223 = vmatpush1.msra.mxu0 %v893
    %1224 = vmatprep.subr.mxu0 0.0
    %1225 = vmatpush1.msra.mxu0 %v894
    %1226 = vmatprep.subr.mxu0 0.0
    %1227 = vmatpush1.msra.mxu0 %v895
    %1228 = vmatprep.subr.mxu0 0.0
    %1229 = vmatpush1.msra.mxu0 %v896
    %1230 = vmatprep.subr.mxu0 0.0
    %1231 = vmatpush1.msra.mxu0 %v897
    %1232 = vmatprep.subr.mxu0 0.0
    %1233 = vmatpush1.msra.mxu0 %v898
    %1234 = vmatprep.subr.mxu0 0.0
    %1235 = vmatpush1.msra.mxu0 %v899
    %1236 = vmatprep.subr.mxu0 0.0
    %1237 = vmatpush1.msra.mxu0 %v900
    %1238 = vmatprep.subr.mxu0 0.0
    %1239 = vmatpush1.msra.mxu0 0.0
    %1240 = vmatprep.subr.mxu0 0.0
    %1241 = vmatpush1.msra.mxu0 0.0
    %1242 = vmatprep.subr.mxu0 0.0
    %1243 = vmatpush1.msra.mxu0 0.0
    %1244 = vmatprep.subr.mxu0 0.0
    %1245 = vmatpush1.msra.mxu0 0.0
    %1246 = vmatprep.subr.mxu0 0.0
    %1247 = vmatpush1.msra.mxu0 0.0
    %1248 = vmatprep.subr.mxu0 0.0
    %1249 = vmatpush1.msra.mxu0 0.0
    %1250 = vmatprep.subr.mxu0 0.0
    %1251 = vmatpush1.msra.mxu0 0.0
    %1252 = vmatprep.subr.mxu0 0.0
    %1253 = vmatpush1.msra.mxu0 0.0
    %1254 = vmatprep.subr.mxu0 0.0
    %1255 = vmatpush1.msra.mxu0 0.0
    %1256 = vmatprep.subr.mxu0 0.0
    %1257 = vmatpush1.msra.mxu0 0.0
    %1258 = vmatprep.subr.mxu0 0.0
    %1259 = vmatpush1.msra.mxu0 0.0
    %1260 = vmatprep.subr.mxu0 0.0
    %1261 = vmatpush1.msra.mxu0 0.0
    %1262 = vmatprep.subr.mxu0 0.0
    %1263 = vmatpush1.msra.mxu0 0.0
    %1264 = vmatprep.subr.mxu0 0.0
    %1265 = vmatpush1.msra.mxu0 0.0
    %1266 = vmatprep.subr.mxu0 0.0
    %1267 = vmatpush1.msra.mxu0 0.0
    %1268 = vmatprep.subr.mxu0 0.0
    %1269 = vmatpush1.msra.mxu0 0.0
    %1270 = vmatprep.mubr.f32.mxu0 0.0
    %1271 = vmatmul.mubr.f32.gmra.mrb[0].mxu0 %v1175
    %v1272 = vpop.f32.mrb[0].mxu0
    %v1273 = vadd.f32 0.0, %v1272
    %v1274 = vpop.f32.mrb[0].mxu0
    %1275 = vmatprep.mubr.f32.mxu0 0.0
    %1276 = vmatmul.mubr.f32.gmra.mrb[0].mxu0 %v1177
    %v1277 = vpop.f32.mrb[0].mxu0
    %v1278 = vadd.f32 0.0, %v1277
    %v1279 = vpop.f32.mrb[0].mxu0
    %1280 = vmatprep.mubr.f32.mxu0 0.0
    %1281 = vmatmul.mubr.f32.gmra.mrb[0].mxu0 %v1179
    %v1282 = vpop.f32.mrb[0].mxu0
    %v1283 = vadd.f32 0.0, %v1282
    %v1284 = vpop.f32.mrb[0].mxu0
    %1285 = vmatprep.mubr.f32.mxu0 0.0
    %1286 = vmatmul.mubr.f32.gmra.mrb[0].mxu0 %v1181
    %v1287 = vpop.f32.mrb[0].mxu0
    %v1288 = vadd.f32 0.0, %v1287
    %v1289 = vpop.f32.mrb[0].mxu0
    %1290 = vmatprep.mubr.f32.mxu0 0.0
    %1291 = vmatmul.mubr.f32.gmra.mrb[0].mxu0 %v1183
    %v1292 = vpop.f32.mrb[0].mxu0
    %v1293 = vadd.f32 0.0, %v1292
    %v1294 = vpop.f32.mrb[0].mxu0
    %1295 = vmatprep.mubr.f32.mxu0 0.0
    %1296 = vmatmul.mubr.f32.gmra.mrb[0].mxu0 %v1185
    %v1297 = vpop.f32.mrb[0].mxu0
    %v1298 = vadd.f32 0.0, %v1297
    %v1299 = vpop.f32.mrb[0].mxu0
    %1300 = vmatprep.mubr.f32.mxu0 0.0
    %1301 = vmatmul.mubr.f32.gmra.mrb[0].mxu0 %v1187
    %v1302 = vpop.f32.mrb[0].mxu0
    %v1303 = vadd.f32 0.0, %v1302
    %v1304 = vpop.f32.mrb[0].mxu0
    %1305 = vmatprep.mubr.f32.mxu0 0.0
    %1306 = vmatmul.mubr.f32.gmra.mrb[0].mxu0 %v1189
    %v1307 = vpop.f32.mrb[0].mxu0
    %v1308 = vadd.f32 0.0, %v1307
    %v1309 = vpop.f32.mrb[0].mxu0
    %1310 = vmatprep.mubr.f32.mxu0 0.0
    %1311 = vmatmul.mubr.f32.gmra.mrb[0].mxu0 %v1191
    %v1312 = vpop.f32.mrb[0].mxu0
    %v1313 = vadd.f32 0.0, %v1312
    %v1314 = vpop.f32.mrb[0].mxu0
    %1315 = vmatprep.mubr.f32.mxu0 0.0
    %1316 = vmatmul.mubr.f32.gmra.mrb[0].mxu0 %v1193
    %v1317 = vpop.f32.mrb[0].mxu0
    %v1318 = vadd.f32 0.0, %v1317
    %v1319 = vpop.f32.mrb[0].mxu0
    %1320 = vmatprep.mubr.f32.mxu0 0.0
    %1321 = vmatmul.mubr.f32.gmra.mrb[0].mxu0 %v1195
    %v1322 = vpop.f32.mrb[0].mxu0
    %v1323 = vadd.f32 0.0, %v1322
    %v1324 = vpop.f32.mrb[0].mxu0
    %1325 = vmatprep.mubr.f32.mxu0 0.0
    %1326 = vmatmul.mubr.f32.gmra.mrb[0].mxu0 %v1197
    %v1327 = vpop.f32.mrb[0].mxu0
    %v1328 = vadd.f32 0.0, %v1327
    %v1329 = vpop.f32.mrb[0].mxu0
    %1330 = vmatprep.mubr.f32.mxu0 0.0
    %1331 = vmatmul.mubr.f32.gmra.mrb[0].mxu0 %v1199
    %v1332 = vpop.f32.mrb[0].mxu0
    %v1333 = vadd.f32 0.0, %v1332
    %v1334 = vpop.f32.mrb[0].mxu0
    %1335 = vmatprep.mubr.f32.mxu0 0.0
    %1336 = vmatmul.mubr.f32.gmra.mrb[0].mxu0 %v1201
    %v1337 = vpop.f32.mrb[0].mxu0
    %v1338 = vadd.f32 0.0, %v1337
    %v1339 = vpop.f32.mrb[0].mxu0
    %1340 = vmatprep.mubr.f32.mxu0 0.0
    %1341 = vmatmul.mubr.f32.gmra.mrb[0].mxu0 %v1203
    %v1342 = vpop.f32.mrb[0].mxu0
    %v1343 = vadd.f32 0.0, %v1342
    %v1344 = vpop.f32.mrb[0].mxu0
    %1345 = vmatprep.mubr.f32.mxu0 0.0
    %1346 = vmatmul.mubr.f32.gmra.mrb[0].mxu0 %v1205
    %v1347 = vpop.f32.mrb[0].mxu0
    %v1348 = vadd.f32 0.0, %v1347
    %v1349 = vpop.f32.mrb[0].mxu0
    %1350 = vdwg.mxu0
    %1351 = vmax.xlane.f32.xlu0 %v791
    %v1352 = vpop.xlane.xlu0 %1351
    %1353 = vmax.xlane.f32.xlu0 %v797
    %v1354 = vpop.xlane.xlu0 %1353
    %1355 = vmax.xlane.f32.xlu0 %v803
    %v1356 = vpop.xlane.xlu0 %1355
    %1357 = vmax.xlane.f32.xlu0 %v809
    %v1358 = vpop.xlane.xlu0 %1357
    %1359 = vmax.xlane.f32.xlu0 %v815
    %v1360 = vpop.xlane.xlu0 %1359
    %1361 = vmax.xlane.f32.xlu0 %v821
    %v1362 = vpop.xlane.xlu0 %1361
    %1363 = vmax.xlane.f32.xlu0 %v827
    %v1364 = vpop.xlane.xlu0 %1363
    %1365 = vmax.xlane.f32.xlu0 %v833
    %v1366 = vpop.xlane.xlu0 %1365
    %1367 = vmax.xlane.f32.xlu0 %v839
    %v1368 = vpop.xlane.xlu0 %1367
    %1369 = vmax.xlane.f32.xlu0 %v845
    %v1370 = vpop.xlane.xlu0 %1369
    %1371 = vmax.xlane.f32.xlu0 %v851
    %v1372 = vpop.xlane.xlu0 %1371
    %1373 = vmax.xlane.f32.xlu0 %v857
    %v1374 = vpop.xlane.xlu0 %1373
    %1375 = vmax.xlane.f32.xlu0 %v863
    %v1376 = vpop.xlane.xlu0 %1375
    %1377 = vmax.xlane.f32.xlu0 %v869
    %v1378 = vpop.xlane.xlu0 %1377
    %1379 = vmax.xlane.f32.xlu0 %v875
    %v1380 = vpop.xlane.xlu0 %1379
    %1381 = vmax.xlane.f32.xlu0 %v881
    %v1382 = vpop.xlane.xlu0 %1381
    %v1383 = vsub.f32 %v791, %v1352
    %v1384 = vsub.f32 %v797, %v1354
    %v1385 = vsub.f32 %v803, %v1356
    %v1386 = vsub.f32 %v809, %v1358
    %v1387 = vsub.f32 %v815, %v1360
    %v1388 = vsub.f32 %v821, %v1362
    %v1389 = vsub.f32 %v827, %v1364
    %v1390 = vsub.f32 %v833, %v1366
    %v1391 = vsub.f32 %v839, %v1368
    %v1392 = vsub.f32 %v845, %v1370
    %v1393 = vsub.f32 %v851, %v1372
    %v1394 = vsub.f32 %v857, %v1374
    %v1395 = vsub.f32 %v863, %v1376
    %v1396 = vsub.f32 %v869, %v1378
    %v1397 = vsub.f32 %v875, %v1380
    %v1398 = vsub.f32 %v881, %v1382
    %v1399 = vmul.f32 %v1383, 1.442695
    %v1400 = vpow.pop %v1399
    %v1401 = vmul.f32 %v1384, 1.442695
    %v1402 = vpow.pop %v1401
    %v1403 = vmul.f32 %v1385, 1.442695
    %v1404 = vpow.pop %v1403
    %v1405 = vmul.f32 %v1386, 1.442695
    %v1406 = vpow.pop %v1405
    %v1407 = vmul.f32 %v1387, 1.442695
    %v1408 = vpow.pop %v1407
    %v1409 = vmul.f32 %v1388, 1.442695
    %v1410 = vpow.pop %v1409
    %v1411 = vmul.f32 %v1389, 1.442695
    %v1412 = vpow.pop %v1411
    %v1413 = vmul.f32 %v1390, 1.442695
    %v1414 = vpow.pop %v1413
    %v1415 = vmul.f32 %v1391, 1.442695
    %v1416 = vpow.pop %v1415
    %v1417 = vmul.f32 %v1392, 1.442695
    %v1418 = vpow.pop %v1417
    %v1419 = vmul.f32 %v1393, 1.442695
    %v1420 = vpow.pop %v1419
    %v1421 = vmul.f32 %v1394, 1.442695
    %v1422 = vpow.pop %v1421
    %v1423 = vmul.f32 %v1395, 1.442695
    %v1424 = vpow.pop %v1423
    %v1425 = vmul.f32 %v1396, 1.442695
    %v1426 = vpow.pop %v1425
    %v1427 = vmul.f32 %v1397, 1.442695
    %v1428 = vpow.pop %v1427
    %v1429 = vmul.f32 %v1398, 1.442695
    %v1430 = vpow.pop %v1429
    %1431 = vmatprep.subr.mxu0 0.0
    %1432 = vmatpush1.msra.mxu0 %v885
    %1433 = vmatprep.subr.mxu0 0.0
    %1434 = vmatpush1.msra.mxu0 %v886
    %1435 = vmatprep.subr.mxu0 0.0
    %1436 = vmatpush1.msra.mxu0 %v887
    %1437 = vmatprep.subr.mxu0 0.0
    %1438 = vmatpush1.msra.mxu0 %v888
    %1439 = vmatprep.subr.mxu0 0.0
    %1440 = vmatpush1.msra.mxu0 %v889
    %1441 = vmatprep.subr.mxu0 0.0
    %1442 = vmatpush1.msra.mxu0 %v890
    %1443 = vmatprep.subr.mxu0 0.0
    %1444 = vmatpush1.msra.mxu0 %v891
    %1445 = vmatprep.subr.mxu0 0.0
    %1446 = vmatpush1.msra.mxu0 %v892
    %1447 = vmatprep.subr.mxu0 0.0
    %1448 = vmatpush1.msra.mxu0 %v893
    %1449 = vmatprep.subr.mxu0 0.0
    %1450 = vmatpush1.msra.mxu0 %v894
    %1451 = vmatprep.subr.mxu0 0.0
    %1452 = vmatpush1.msra.mxu0 %v895
    %1453 = vmatprep.subr.mxu0 0.0
    %1454 = vmatpush1.msra.mxu0 %v896
    %1455 = vmatprep.subr.mxu0 0.0
    %1456 = vmatpush1.msra.mxu0 %v897
    %1457 = vmatprep.subr.mxu0 0.0
    %1458 = vmatpush1.msra.mxu0 %v898
    %1459 = vmatprep.subr.mxu0 0.0
    %1460 = vmatpush1.msra.mxu0 %v899
    %1461 = vmatprep.subr.mxu0 0.0
    %1462 = vmatpush1.msra.mxu0 %v900
    %1463 = vmatprep.subr.mxu0 0.0
    %1464 = vmatpush1.msra.mxu0 0.0
    %1465 = vmatprep.subr.mxu0 0.0
    %1466 = vmatpush1.msra.mxu0 0.0
    %1467 = vmatprep.subr.mxu0 0.0
    %1468 = vmatpush1.msra.mxu0 0.0
    %1469 = vmatprep.subr.mxu0 0.0
    %1470 = vmatpush1.msra.mxu0 0.0
    %1471 = vmatprep.subr.mxu0 0.0
    %1472 = vmatpush1.msra.mxu0 0.0
    %1473 = vmatprep.subr.mxu0 0.0
    %1474 = vmatpush1.msra.mxu0 0.0
    %1475 = vmatprep.subr.mxu0 0.0
    %1476 = vmatpush1.msra.mxu0 0.0
    %1477 = vmatprep.subr.mxu0 0.0
    %1478 = vmatpush1.msra.mxu0 0.0
    %1479 = vmatprep.subr.mxu0 0.0
    %1480 = vmatpush1.msra.mxu0 0.0
    %1481 = vmatprep.subr.mxu0 0.0
    %1482 = vmatpush1.msra.mxu0 0.0
    %1483 = vmatprep.subr.mxu0 0.0
    %1484 = vmatpush1.msra.mxu0 0.0
    %1485 = vmatprep.subr.mxu0 0.0
    %1486 = vmatpush1.msra.mxu0 0.0
    %1487 = vmatprep.subr.mxu0 0.0
    %1488 = vmatpush1.msra.mxu0 0.0
    %1489 = vmatprep.subr.mxu0 0.0
    %1490 = vmatpush1.msra.mxu0 0.0
    %1491 = vmatprep.subr.mxu0 0.0
    %1492 = vmatpush1.msra.mxu0 0.0
    %1493 = vmatprep.subr.mxu0 0.0
    %1494 = vmatpush1.msra.mxu0 0.0
    %1495 = vmatprep.mubr.f32.mxu0 0.0
    %1496 = vmatmul.mubr.f32.gmra.mrb[0].mxu0 %v1400
    %v1497 = vpop.f32.mrb[0].mxu0
    %v1498 = vadd.f32 0.0, %v1497
    %v1499 = vpop.f32.mrb[0].mxu0
    %1500 = vmatprep.mubr.f32.mxu0 0.0
    %1501 = vmatmul.mubr.f32.gmra.mrb[0].mxu0 %v1402
    %v1502 = vpop.f32.mrb[0].mxu0
    %v1503 = vadd.f32 0.0, %v1502
    %v1504 = vpop.f32.mrb[0].mxu0
    %1505 = vmatprep.mubr.f32.mxu0 0.0
    %1506 = vmatmul.mubr.f32.gmra.mrb[0].mxu0 %v1404
    %v1507 = vpop.f32.mrb[0].mxu0
    %v1508 = vadd.f32 0.0, %v1507
    %v1509 = vpop.f32.mrb[0].mxu0
    %1510 = vmatprep.mubr.f32.mxu0 0.0
    %1511 = vmatmul.mubr.f32.gmra.mrb[0].mxu0 %v1406
    %v1512 = vpop.f32.mrb[0].mxu0
    %v1513 = vadd.f32 0.0, %v1512
    %v1514 = vpop.f32.mrb[0].mxu0
    %1515 = vmatprep.mubr.f32.mxu0 0.0
    %1516 = vmatmul.mubr.f32.gmra.mrb[0].mxu0 %v1408
    %v1517 = vpop.f32.mrb[0].mxu0
    %v1518 = vadd.f32 0.0, %v1517
    %v1519 = vpop.f32.mrb[0].mxu0
    %1520 = vmatprep.mubr.f32.mxu0 0.0
    %1521 = vmatmul.mubr.f32.gmra.mrb[0].mxu0 %v1410
    %v1522 = vpop.f32.mrb[0].mxu0
    %v1523 = vadd.f32 0.0, %v1522
    %v1524 = vpop.f32.mrb[0].mxu0
    %1525 = vmatprep.mubr.f32.mxu0 0.0
    %1526 = vmatmul.mubr.f32.gmra.mrb[0].mxu0 %v1412
    %v1527 = vpop.f32.mrb[0].mxu0
    %v1528 = vadd.f32 0.0, %v1527
    %v1529 = vpop.f32.mrb[0].mxu0
    %1530 = vmatprep.mubr.f32.mxu0 0.0
    %1531 = vmatmul.mubr.f32.gmra.mrb[0].mxu0 %v1414
    %v1532 = vpop.f32.mrb[0].mxu0
    %v1533 = vadd.f32 0.0, %v1532
    %v1534 = vpop.f32.mrb[0].mxu0
    %1535 = vmatprep.mubr.f32.mxu0 0.0
    %1536 = vmatmul.mubr.f32.gmra.mrb[0].mxu0 %v1416
    %v1537 = vpop.f32.mrb[0].mxu0
    %v1538 = vadd.f32 0.0, %v1537
    %v1539 = vpop.f32.mrb[0].mxu0
    %1540 = vmatprep.mubr.f32.mxu0 0.0
    %1541 = vmatmul.mubr.f32.gmra.mrb[0].mxu0 %v1418
    %v1542 = vpop.f32.mrb[0].mxu0
    %v1543 = vadd.f32 0.0, %v1542
    %v1544 = vpop.f32.mrb[0].mxu0
    %1545 = vmatprep.mubr.f32.mxu0 0.0
    %1546 = vmatmul.mubr.f32.gmra.mrb[0].mxu0 %v1420
    %v1547 = vpop.f32.mrb[0].mxu0
    %v1548 = vadd.f32 0.0, %v1547
    %v1549 = vpop.f32.mrb[0].mxu0
    %1550 = vmatprep.mubr.f32.mxu0 0.0
    %1551 = vmatmul.mubr.f32.gmra.mrb[0].mxu0 %v1422
    %v1552 = vpop.f32.mrb[0].mxu0
    %v1553 = vadd.f32 0.0, %v1552
    %v1554 = vpop.f32.mrb[0].mxu0
    %1555 = vmatprep.mubr.f32.mxu0 0.0
    %1556 = vmatmul.mubr.f32.gmra.mrb[0].mxu0 %v1424
    %v1557 = vpop.f32.mrb[0].mxu0
    %v1558 = vadd.f32 0.0, %v1557
    %v1559 = vpop.f32.mrb[0].mxu0
    %1560 = vmatprep.mubr.f32.mxu0 0.0
    %1561 = vmatmul.mubr.f32.gmra.mrb[0].mxu0 %v1426
    %v1562 = vpop.f32.mrb[0].mxu0
    %v1563 = vadd.f32 0.0, %v1562
    %v1564 = vpop.f32.mrb[0].mxu0
    %1565 = vmatprep.mubr.f32.mxu0 0.0
    %1566 = vmatmul.mubr.f32.gmra.mrb[0].mxu0 %v1428
    %v1567 = vpop.f32.mrb[0].mxu0
    %v1568 = vadd.f32 0.0, %v1567
    %v1569 = vpop.f32.mrb[0].mxu0
    %1570 = vmatprep.mubr.f32.mxu0 0.0
    %1571 = vmatmul.mubr.f32.gmra.mrb[0].mxu0 %v1430
    %v1572 = vpop.f32.mrb[0].mxu0
    %v1573 = vadd.f32 0.0, %v1572
    %v1574 = vpop.f32.mrb[0].mxu0
    %1575 = vdwg.mxu0
    %1576 = vmax.xlane.f32.xlu0 %v793
    %v1577 = vpop.xlane.xlu0 %1576
    %1578 = vmax.xlane.f32.xlu0 %v799
    %v1579 = vpop.xlane.xlu0 %1578
    %1580 = vmax.xlane.f32.xlu0 %v805
    %v1581 = vpop.xlane.xlu0 %1580
    %1582 = vmax.xlane.f32.xlu0 %v811
    %v1583 = vpop.xlane.xlu0 %1582
    %1584 = vmax.xlane.f32.xlu0 %v817
    %v1585 = vpop.xlane.xlu0 %1584
    %1586 = vmax.xlane.f32.xlu0 %v823
    %v1587 = vpop.xlane.xlu0 %1586
    %1588 = vmax.xlane.f32.xlu0 %v829
    %v1589 = vpop.xlane.xlu0 %1588
    %1590 = vmax.xlane.f32.xlu0 %v835
    %v1591 = vpop.xlane.xlu0 %1590
    %1592 = vmax.xlane.f32.xlu0 %v841
    %v1593 = vpop.xlane.xlu0 %1592
    %1594 = vmax.xlane.f32.xlu0 %v847
    %v1595 = vpop.xlane.xlu0 %1594
    %1596 = vmax.xlane.f32.xlu0 %v853
    %v1597 = vpop.xlane.xlu0 %1596
    %1598 = vmax.xlane.f32.xlu0 %v859
    %v1599 = vpop.xlane.xlu0 %1598
    %1600 = vmax.xlane.f32.xlu0 %v865
    %v1601 = vpop.xlane.xlu0 %1600
    %1602 = vmax.xlane.f32.xlu0 %v871
    %v1603 = vpop.xlane.xlu0 %1602
    %1604 = vmax.xlane.f32.xlu0 %v877
    %v1605 = vpop.xlane.xlu0 %1604
    %1606 = vmax.xlane.f32.xlu0 %v883
    %v1607 = vpop.xlane.xlu0 %1606
    %v1608 = vsub.f32 %v793, %v1577
    %v1609 = vsub.f32 %v799, %v1579
    %v1610 = vsub.f32 %v805, %v1581
    %v1611 = vsub.f32 %v811, %v1583
    %v1612 = vsub.f32 %v817, %v1585
    %v1613 = vsub.f32 %v823, %v1587
    %v1614 = vsub.f32 %v829, %v1589
    %v1615 = vsub.f32 %v835, %v1591
    %v1616 = vsub.f32 %v841, %v1593
    %v1617 = vsub.f32 %v847, %v1595
    %v1618 = vsub.f32 %v853, %v1597
    %v1619 = vsub.f32 %v859, %v1599
    %v1620 = vsub.f32 %v865, %v1601
    %v1621 = vsub.f32 %v871, %v1603
    %v1622 = vsub.f32 %v877, %v1605
    %v1623 = vsub.f32 %v883, %v1607
    %v1624 = vmul.f32 %v1608, 1.442695
    %v1625 = vpow.pop %v1624
    %v1626 = vmul.f32 %v1609, 1.442695
    %v1627 = vpow.pop %v1626
    %v1628 = vmul.f32 %v1610, 1.442695
    %v1629 = vpow.pop %v1628
    %v1630 = vmul.f32 %v1611, 1.442695
    %v1631 = vpow.pop %v1630
    %v1632 = vmul.f32 %v1612, 1.442695
    %v1633 = vpow.pop %v1632
    %v1634 = vmul.f32 %v1613, 1.442695
    %v1635 = vpow.pop %v1634
    %v1636 = vmul.f32 %v1614, 1.442695
    %v1637 = vpow.pop %v1636
    %v1638 = vmul.f32 %v1615, 1.442695
    %v1639 = vpow.pop %v1638
    %v1640 = vmul.f32 %v1616, 1.442695
    %v1641 = vpow.pop %v1640
    %v1642 = vmul.f32 %v1617, 1.442695
    %v1643 = vpow.pop %v1642
    %v1644 = vmul.f32 %v1618, 1.442695
    %v1645 = vpow.pop %v1644
    %v1646 = vmul.f32 %v1619, 1.442695
    %v1647 = vpow.pop %v1646
    %v1648 = vmul.f32 %v1620, 1.442695
    %v1649 = vpow.pop %v1648
    %v1650 = vmul.f32 %v1621, 1.442695
    %v1651 = vpow.pop %v1650
    %v1652 = vmul.f32 %v1622, 1.442695
    %v1653 = vpow.pop %v1652
    %v1654 = vmul.f32 %v1623, 1.442695
    %v1655 = vpow.pop %v1654
    %1656 = vmatprep.subr.mxu0 0.0
    %1657 = vmatpush1.msra.mxu0 %v885
    %1658 = vmatprep.subr.mxu0 0.0
    %1659 = vmatpush1.msra.mxu0 %v886
    %1660 = vmatprep.subr.mxu0 0.0
    %1661 = vmatpush1.msra.mxu0 %v887
    %1662 = vmatprep.subr.mxu0 0.0
    %1663 = vmatpush1.msra.mxu0 %v888
    %1664 = vmatprep.subr.mxu0 0.0
    %1665 = vmatpush1.msra.mxu0 %v889
    %1666 = vmatprep.subr.mxu0 0.0
    %1667 = vmatpush1.msra.mxu0 %v890
    %1668 = vmatprep.subr.mxu0 0.0
    %1669 = vmatpush1.msra.mxu0 %v891
    %1670 = vmatprep.subr.mxu0 0.0
    %1671 = vmatpush1.msra.mxu0 %v892
    %1672 = vmatprep.subr.mxu0 0.0
    %1673 = vmatpush1.msra.mxu0 %v893
    %1674 = vmatprep.subr.mxu0 0.0
    %1675 = vmatpush1.msra.mxu0 %v894
    %1676 = vmatprep.subr.mxu0 0.0
    %1677 = vmatpush1.msra.mxu0 %v895
    %1678 = vmatprep.subr.mxu0 0.0
    %1679 = vmatpush1.msra.mxu0 %v896
    %1680 = vmatprep.subr.mxu0 0.0
    %1681 = vmatpush1.msra.mxu0 %v897
    %1682 = vmatprep.subr.mxu0 0.0
    %1683 = vmatpush1.msra.mxu0 %v898
    %1684 = vmatprep.subr.mxu0 0.0
    %1685 = vmatpush1.msra.mxu0 %v899
    %1686 = vmatprep.subr.mxu0 0.0
    %1687 = vmatpush1.msra.mxu0 %v900
    %1688 = vmatprep.subr.mxu0 0.0
    %1689 = vmatpush1.msra.mxu0 0.0
    %1690 = vmatprep.subr.mxu0 0.0
    %1691 = vmatpush1.msra.mxu0 0.0
    %1692 = vmatprep.subr.mxu0 0.0
    %1693 = vmatpush1.msra.mxu0 0.0
    %1694 = vmatprep.subr.mxu0 0.0
    %1695 = vmatpush1.msra.mxu0 0.0
    %1696 = vmatprep.subr.mxu0 0.0
    %1697 = vmatpush1.msra.mxu0 0.0
    %1698 = vmatprep.subr.mxu0 0.0
    %1699 = vmatpush1.msra.mxu0 0.0
    %1700 = vmatprep.subr.mxu0 0.0
    %1701 = vmatpush1.msra.mxu0 0.0
    %1702 = vmatprep.subr.mxu0 0.0
    %1703 = vmatpush1.msra.mxu0 0.0
    %1704 = vmatprep.subr.mxu0 0.0
    %1705 = vmatpush1.msra.mxu0 0.0
    %1706 = vmatprep.subr.mxu0 0.0
    %1707 = vmatpush1.msra.mxu0 0.0
    %1708 = vmatprep.subr.mxu0 0.0
    %1709 = vmatpush1.msra.mxu0 0.0
    %1710 = vmatprep.subr.mxu0 0.0
    %1711 = vmatpush1.msra.mxu0 0.0
    %1712 = vmatprep.subr.mxu0 0.0
    %1713 = vmatpush1.msra.mxu0 0.0
    %1714 = vmatprep.subr.mxu0 0.0
    %1715 = vmatpush1.msra.mxu0 0.0
    %1716 = vmatprep.subr.mxu0 0.0
    %1717 = vmatpush1.msra.mxu0 0.0
    %1718 = vmatprep.subr.mxu0 0.0
    %1719 = vmatpush1.msra.mxu0 0.0
    %1720 = vmatprep.mubr.f32.mxu0 0.0
    %1721 = vmatmul.mubr.f32.gmra.mrb[0].mxu0 %v1625
    %v1722 = vpop.f32.mrb[0].mxu0
    %v1723 = vadd.f32 0.0, %v1722
    %v1724 = vpop.f32.mrb[0].mxu0
    %1725 = vmatprep.mubr.f32.mxu0 0.0
    %1726 = vmatmul.mubr.f32.gmra.mrb[0].mxu0 %v1627
    %v1727 = vpop.f32.mrb[0].mxu0
    %v1728 = vadd.f32 0.0, %v1727
    %v1729 = vpop.f32.mrb[0].mxu0
    %1730 = vmatprep.mubr.f32.mxu0 0.0
    %1731 = vmatmul.mubr.f32.gmra.mrb[0].mxu0 %v1629
    %v1732 = vpop.f32.mrb[0].mxu0
    %v1733 = vadd.f32 0.0, %v1732
    %v1734 = vpop.f32.mrb[0].mxu0
    %1735 = vmatprep.mubr.f32.mxu0 0.0
    %1736 = vmatmul.mubr.f32.gmra.mrb[0].mxu0 %v1631
    %v1737 = vpop.f32.mrb[0].mxu0
    %v1738 = vadd.f32 0.0, %v1737
    %v1739 = vpop.f32.mrb[0].mxu0
    %1740 = vmatprep.mubr.f32.mxu0 0.0
    %1741 = vmatmul.mubr.f32.gmra.mrb[0].mxu0 %v1633
    %v1742 = vpop.f32.mrb[0].mxu0
    %v1743 = vadd.f32 0.0, %v1742
    %v1744 = vpop.f32.mrb[0].mxu0
    %1745 = vmatprep.mubr.f32.mxu0 0.0
    %1746 = vmatmul.mubr.f32.gmra.mrb[0].mxu0 %v1635
    %v1747 = vpop.f32.mrb[0].mxu0
    %v1748 = vadd.f32 0.0, %v1747
    %v1749 = vpop.f32.mrb[0].mxu0
    %1750 = vmatprep.mubr.f32.mxu0 0.0
    %1751 = vmatmul.mubr.f32.gmra.mrb[0].mxu0 %v1637
    %v1752 = vpop.f32.mrb[0].mxu0
    %v1753 = vadd.f32 0.0, %v1752
    %v1754 = vpop.f32.mrb[0].mxu0
    %1755 = vmatprep.mubr.f32.mxu0 0.0
    %1756 = vmatmul.mubr.f32.gmra.mrb[0].mxu0 %v1639
    %v1757 = vpop.f32.mrb[0].mxu0
    %v1758 = vadd.f32 0.0, %v1757
    %v1759 = vpop.f32.mrb[0].mxu0
    %1760 = vmatprep.mubr.f32.mxu0 0.0
    %1761 = vmatmul.mubr.f32.gmra.mrb[0].mxu0 %v1641
    %v1762 = vpop.f32.mrb[0].mxu0
    %v1763 = vadd.f32 0.0, %v1762
    %v1764 = vpop.f32.mrb[0].mxu0
    %1765 = vmatprep.mubr.f32.mxu0 0.0
    %1766 = vmatmul.mubr.f32.gmra.mrb[0].mxu0 %v1643
    %v1767 = vpop.f32.mrb[0].mxu0
    %v1768 = vadd.f32 0.0, %v1767
    %v1769 = vpop.f32.mrb[0].mxu0
    %1770 = vmatprep.mubr.f32.mxu0 0.0
    %1771 = vmatmul.mubr.f32.gmra.mrb[0].mxu0 %v1645
    %v1772 = vpop.f32.mrb[0].mxu0
    %v1773 = vadd.f32 0.0, %v1772
    %v1774 = vpop.f32.mrb[0].mxu0
    %1775 = vmatprep.mubr.f32.mxu0 0.0
    %1776 = vmatmul.mubr.f32.gmra.mrb[0].mxu0 %v1647
    %v1777 = vpop.f32.mrb[0].mxu0
    %v1778 = vadd.f32 0.0, %v1777
    %v1779 = vpop.f32.mrb[0].mxu0
    %1780 = vmatprep.mubr.f32.mxu0 0.0
    %1781 = vmatmul.mubr.f32.gmra.mrb[0].mxu0 %v1649
    %v1782 = vpop.f32.mrb[0].mxu0
    %v1783 = vadd.f32 0.0, %v1782
    %v1784 = vpop.f32.mrb[0].mxu0
    %1785 = vmatprep.mubr.f32.mxu0 0.0
    %1786 = vmatmul.mubr.f32.gmra.mrb[0].mxu0 %v1651
    %v1787 = vpop.f32.mrb[0].mxu0
    %v1788 = vadd.f32 0.0, %v1787
    %v1789 = vpop.f32.mrb[0].mxu0
    %1790 = vmatprep.mubr.f32.mxu0 0.0
    %1791 = vmatmul.mubr.f32.gmra.mrb[0].mxu0 %v1653
    %v1792 = vpop.f32.mrb[0].mxu0
    %v1793 = vadd.f32 0.0, %v1792
    %v1794 = vpop.f32.mrb[0].mxu0
    %1795 = vmatprep.mubr.f32.mxu0 0.0
    %1796 = vmatmul.mubr.f32.gmra.mrb[0].mxu0 %v1655
    %v1797 = vpop.f32.mrb[0].mxu0
    %v1798 = vadd.f32 0.0, %v1797
    %v1799 = vpop.f32.mrb[0].mxu0
    %1800 = vdwg.mxu0
    %v1801 = vrcp.pop %v1048
    %v1802 = vrcp.pop %v1053
    %v1803 = vrcp.pop %v1058
    %v1804 = vrcp.pop %v1063
    %v1805 = vrcp.pop %v1068
    %v1806 = vrcp.pop %v1073
    %v1807 = vrcp.pop %v1078
    %v1808 = vrcp.pop %v1083
    %v1809 = vrcp.pop %v1088
    %v1810 = vrcp.pop %v1093
    %v1811 = vrcp.pop %v1098
    %v1812 = vrcp.pop %v1103
    %v1813 = vrcp.pop %v1108
    %v1814 = vrcp.pop %v1113
    %v1815 = vrcp.pop %v1118
    %v1816 = vrcp.pop %v1123
    %1833 = vrot.lane.b32.xlu0 %v1801, 1
    %v1834 = vpop.permute.xlu0 %1833
    %1835 = vrot.lane.b32.xlu0 %v1802, 1
    %v1836 = vpop.permute.xlu0 %1835
    %1837 = vrot.lane.b32.xlu0 %v1803, 1
    %v1838 = vpop.permute.xlu0 %1837
    %1839 = vrot.lane.b32.xlu0 %v1804, 1
    %v1840 = vpop.permute.xlu0 %1839
    %1841 = vrot.lane.b32.xlu0 %v1805, 1
    %v1842 = vpop.permute.xlu0 %1841
    %1843 = vrot.lane.b32.xlu0 %v1806, 1
    %v1844 = vpop.permute.xlu0 %1843
    %1845 = vrot.lane.b32.xlu0 %v1807, 1
    %v1846 = vpop.permute.xlu0 %1845
    %1847 = vrot.lane.b32.xlu0 %v1808, 1
    %v1848 = vpop.permute.xlu0 %1847
    %1849 = vrot.lane.b32.xlu0 %v1809, 1
    %v1850 = vpop.permute.xlu0 %1849
    %1851 = vrot.lane.b32.xlu0 %v1810, 1
    %v1852 = vpop.permute.xlu0 %1851
    %1853 = vrot.lane.b32.xlu0 %v1811, 1
    %v1854 = vpop.permute.xlu0 %1853
    %1855 = vrot.lane.b32.xlu0 %v1812, 1
    %v1856 = vpop.permute.xlu0 %1855
    %1857 = vrot.lane.b32.xlu0 %v1813, 1
    %v1858 = vpop.permute.xlu0 %1857
    %1859 = vrot.lane.b32.xlu0 %v1814, 1
    %v1860 = vpop.permute.xlu0 %1859
    %1861 = vrot.lane.b32.xlu0 %v1815, 1
    %v1862 = vpop.permute.xlu0 %1861
    %1863 = vrot.lane.b32.xlu0 %v1816, 1
    %v1864 = vpop.permute.xlu0 %1863
    %v1881 = vmul.f32 %v1048, %v1834
    %v1882 = vmul.f32 %v1053, %v1836
    %v1883 = vmul.f32 %v1058, %v1838
    %v1884 = vmul.f32 %v1063, %v1840
    %v1885 = vmul.f32 %v1068, %v1842
    %v1886 = vmul.f32 %v1073, %v1844
    %v1887 = vmul.f32 %v1078, %v1846
    %v1888 = vmul.f32 %v1083, %v1848
    %v1889 = vmul.f32 %v1088, %v1850
    %v1890 = vmul.f32 %v1093, %v1852
    %v1891 = vmul.f32 %v1098, %v1854
    %v1892 = vmul.f32 %v1103, %v1856
    %v1893 = vmul.f32 %v1108, %v1858
    %v1894 = vmul.f32 %v1113, %v1860
    %v1895 = vmul.f32 %v1118, %v1862
    %v1896 = vmul.f32 %v1123, %v1864
    %v1897 = vrcp.pop %v1273
    %v1898 = vrcp.pop %v1278
    %v1899 = vrcp.pop %v1283
    %v1900 = vrcp.pop %v1288
    %v1901 = vrcp.pop %v1293
    %v1902 = vrcp.pop %v1298
    %v1903 = vrcp.pop %v1303
    %v1904 = vrcp.pop %v1308
    %v1905 = vrcp.pop %v1313
    %v1906 = vrcp.pop %v1318
    %v1907 = vrcp.pop %v1323
    %v1908 = vrcp.pop %v1328
    %v1909 = vrcp.pop %v1333
    %v1910 = vrcp.pop %v1338
    %v1911 = vrcp.pop %v1343
    %v1912 = vrcp.pop %v1348
    %1929 = vrot.lane.b32.xlu0 %v1897, 1
    %v1930 = vpop.permute.xlu0 %1929
    %1931 = vrot.lane.b32.xlu0 %v1898, 1
    %v1932 = vpop.permute.xlu0 %1931
    %1933 = vrot.lane.b32.xlu0 %v1899, 1
    %v1934 = vpop.permute.xlu0 %1933
    %1935 = vrot.lane.b32.xlu0 %v1900, 1
    %v1936 = vpop.permute.xlu0 %1935
    %1937 = vrot.lane.b32.xlu0 %v1901, 1
    %v1938 = vpop.permute.xlu0 %1937
    %1939 = vrot.lane.b32.xlu0 %v1902, 1
    %v1940 = vpop.permute.xlu0 %1939
    %1941 = vrot.lane.b32.xlu0 %v1903, 1
    %v1942 = vpop.permute.xlu0 %1941
    %1943 = vrot.lane.b32.xlu0 %v1904, 1
    %v1944 = vpop.permute.xlu0 %1943
    %1945 = vrot.lane.b32.xlu0 %v1905, 1
    %v1946 = vpop.permute.xlu0 %1945
    %1947 = vrot.lane.b32.xlu0 %v1906, 1
    %v1948 = vpop.permute.xlu0 %1947
    %1949 = vrot.lane.b32.xlu0 %v1907, 1
    %v1950 = vpop.permute.xlu0 %1949
    %1951 = vrot.lane.b32.xlu0 %v1908, 1
    %v1952 = vpop.permute.xlu0 %1951
    %1953 = vrot.lane.b32.xlu0 %v1909, 1
    %v1954 = vpop.permute.xlu0 %1953
    %1955 = vrot.lane.b32.xlu0 %v1910, 1
    %v1956 = vpop.permute.xlu0 %1955
    %1957 = vrot.lane.b32.xlu0 %v1911, 1
    %v1958 = vpop.permute.xlu0 %1957
    %1959 = vrot.lane.b32.xlu0 %v1912, 1
    %v1960 = vpop.permute.xlu0 %1959
    %v1977 = vmul.f32 %v1273, %v1930
    %v1978 = vmul.f32 %v1278, %v1932
    %v1979 = vmul.f32 %v1283, %v1934
    %v1980 = vmul.f32 %v1288, %v1936
    %v1981 = vmul.f32 %v1293, %v1938
    %v1982 = vmul.f32 %v1298, %v1940
    %v1983 = vmul.f32 %v1303, %v1942
    %v1984 = vmul.f32 %v1308, %v1944
    %v1985 = vmul.f32 %v1313, %v1946
    %v1986 = vmul.f32 %v1318, %v1948
    %v1987 = vmul.f32 %v1323, %v1950
    %v1988 = vmul.f32 %v1328, %v1952
    %v1989 = vmul.f32 %v1333, %v1954
    %v1990 = vmul.f32 %v1338, %v1956
    %v1991 = vmul.f32 %v1343, %v1958
    %v1992 = vmul.f32 %v1348, %v1960
    %v1993 = vrcp.pop %v1498
    %v1994 = vrcp.pop %v1503
    %v1995 = vrcp.pop %v1508
    %v1996 = vrcp.pop %v1513
    %v1997 = vrcp.pop %v1518
    %v1998 = vrcp.pop %v1523
    %v1999 = vrcp.pop %v1528
    %v2000 = vrcp.pop %v1533
    %v2001 = vrcp.pop %v1538
    %v2002 = vrcp.pop %v1543
    %v2003 = vrcp.pop %v1548
    %v2004 = vrcp.pop %v1553
    %v2005 = vrcp.pop %v1558
    %v2006 = vrcp.pop %v1563
    %v2007 = vrcp.pop %v1568
    %v2008 = vrcp.pop %v1573
    %2025 = vrot.lane.b32.xlu0 %v1993, 1
    %v2026 = vpop.permute.xlu0 %2025
    %2027 = vrot.lane.b32.xlu0 %v1994, 1
    %v2028 = vpop.permute.xlu0 %2027
    %2029 = vrot.lane.b32.xlu0 %v1995, 1
    %v2030 = vpop.permute.xlu0 %2029
    %2031 = vrot.lane.b32.xlu0 %v1996, 1
    %v2032 = vpop.permute.xlu0 %2031
    %2033 = vrot.lane.b32.xlu0 %v1997, 1
    %v2034 = vpop.permute.xlu0 %2033
    %2035 = vrot.lane.b32.xlu0 %v1998, 1
    %v2036 = vpop.permute.xlu0 %2035
    %2037 = vrot.lane.b32.xlu0 %v1999, 1
    %v2038 = vpop.permute.xlu0 %2037
    %2039 = vrot.lane.b32.xlu0 %v2000, 1
    %v2040 = vpop.permute.xlu0 %2039
    %2041 = vrot.lane.b32.xlu0 %v2001, 1
    %v2042 = vpop.permute.xlu0 %2041
    %2043 = vrot.lane.b32.xlu0 %v2002, 1
    %v2044 = vpop.permute.xlu0 %2043
    %2045 = vrot.lane.b32.xlu0 %v2003, 1
    %v2046 = vpop.permute.xlu0 %2045
    %2047 = vrot.lane.b32.xlu0 %v2004, 1
    %v2048 = vpop.permute.xlu0 %2047
    %2049 = vrot.lane.b32.xlu0 %v2005, 1
    %v2050 = vpop.permute.xlu0 %2049
    %2051 = vrot.lane.b32.xlu0 %v2006, 1
    %v2052 = vpop.permute.xlu0 %2051
    %2053 = vrot.lane.b32.xlu0 %v2007, 1
    %v2054 = vpop.permute.xlu0 %2053
    %2055 = vrot.lane.b32.xlu0 %v2008, 1
    %v2056 = vpop.permute.xlu0 %2055
    %v2073 = vmul.f32 %v1498, %v2026
    %v2074 = vmul.f32 %v1503, %v2028
    %v2075 = vmul.f32 %v1508, %v2030
    %v2076 = vmul.f32 %v1513, %v2032
    %v2077 = vmul.f32 %v1518, %v2034
    %v2078 = vmul.f32 %v1523, %v2036
    %v2079 = vmul.f32 %v1528, %v2038
    %v2080 = vmul.f32 %v1533, %v2040
    %v2081 = vmul.f32 %v1538, %v2042
    %v2082 = vmul.f32 %v1543, %v2044
    %v2083 = vmul.f32 %v1548, %v2046
    %v2084 = vmul.f32 %v1553, %v2048
    %v2085 = vmul.f32 %v1558, %v2050
    %v2086 = vmul.f32 %v1563, %v2052
    %v2087 = vmul.f32 %v1568, %v2054
    %v2088 = vmul.f32 %v1573, %v2056
    %v2089 = vrcp.pop %v1723
    %v2090 = vrcp.pop %v1728
    %v2091 = vrcp.pop %v1733
    %v2092 = vrcp.pop %v1738
    %v2093 = vrcp.pop %v1743
    %v2094 = vrcp.pop %v1748
    %v2095 = vrcp.pop %v1753
    %v2096 = vrcp.pop %v1758
    %v2097 = vrcp.pop %v1763
    %v2098 = vrcp.pop %v1768
    %v2099 = vrcp.pop %v1773
    %v2100 = vrcp.pop %v1778
    %v2101 = vrcp.pop %v1783
    %v2102 = vrcp.pop %v1788
    %v2103 = vrcp.pop %v1793
    %v2104 = vrcp.pop %v1798
    %2121 = vrot.lane.b32.xlu0 %v2089, 1
    %v2122 = vpop.permute.xlu0 %2121
    %2123 = vrot.lane.b32.xlu0 %v2090, 1
    %v2124 = vpop.permute.xlu0 %2123
    %2125 = vrot.lane.b32.xlu0 %v2091, 1
    %v2126 = vpop.permute.xlu0 %2125
    %2127 = vrot.lane.b32.xlu0 %v2092, 1
    %v2128 = vpop.permute.xlu0 %2127
    %2129 = vrot.lane.b32.xlu0 %v2093, 1
    %v2130 = vpop.permute.xlu0 %2129
    %2131 = vrot.lane.b32.xlu0 %v2094, 1
    %v2132 = vpop.permute.xlu0 %2131
    %2133 = vrot.lane.b32.xlu0 %v2095, 1
    %v2134 = vpop.permute.xlu0 %2133
    %2135 = vrot.lane.b32.xlu0 %v2096, 1
    %v2136 = vpop.permute.xlu0 %2135
    %2137 = vrot.lane.b32.xlu0 %v2097, 1
    %v2138 = vpop.permute.xlu0 %2137
    %2139 = vrot.lane.b32.xlu0 %v2098, 1
    %v2140 = vpop.permute.xlu0 %2139
    %2141 = vrot.lane.b32.xlu0 %v2099, 1
    %v2142 = vpop.permute.xlu0 %2141
    %2143 = vrot.lane.b32.xlu0 %v2100, 1
    %v2144 = vpop.permute.xlu0 %2143
    %2145 = vrot.lane.b32.xlu0 %v2101, 1
    %v2146 = vpop.permute.xlu0 %2145
    %2147 = vrot.lane.b32.xlu0 %v2102, 1
    %v2148 = vpop.permute.xlu0 %2147
    %2149 = vrot.lane.b32.xlu0 %v2103, 1
    %v2150 = vpop.permute.xlu0 %2149
    %2151 = vrot.lane.b32.xlu0 %v2104, 1
    %v2152 = vpop.permute.xlu0 %2151
    %v2169 = vmul.f32 %v1723, %v2122
    %v2170 = vmul.f32 %v1728, %v2124
    %v2171 = vmul.f32 %v1733, %v2126
    %v2172 = vmul.f32 %v1738, %v2128
    %v2173 = vmul.f32 %v1743, %v2130
    %v2174 = vmul.f32 %v1748, %v2132
    %v2175 = vmul.f32 %v1753, %v2134
    %v2176 = vmul.f32 %v1758, %v2136
    %v2177 = vmul.f32 %v1763, %v2138
    %v2178 = vmul.f32 %v1768, %v2140
    %v2179 = vmul.f32 %v1773, %v2142
    %v2180 = vmul.f32 %v1778, %v2144
    %v2181 = vmul.f32 %v1783, %v2146
    %v2182 = vmul.f32 %v1788, %v2148
    %v2183 = vmul.f32 %v1793, %v2150
    %v2184 = vmul.f32 %v1798, %v2152
    %vm2185 = vcmp.gt.f32.partialorder %v1977, %v1881
    %vm2186 = vcmp.gt.f32.partialorder %v1978, %v1882
    %vm2187 = vcmp.gt.f32.partialorder %v1979, %v1883
    %vm2188 = vcmp.gt.f32.partialorder %v1980, %v1884
    %vm2189 = vcmp.gt.f32.partialorder %v1981, %v1885
    %vm2190 = vcmp.gt.f32.partialorder %v1982, %v1886
    %vm2191 = vcmp.gt.f32.partialorder %v1983, %v1887
    %vm2192 = vcmp.gt.f32.partialorder %v1984, %v1888
    %vm2193 = vcmp.gt.f32.partialorder %v1985, %v1889
    %vm2194 = vcmp.gt.f32.partialorder %v1986, %v1890
    %vm2195 = vcmp.gt.f32.partialorder %v1987, %v1891
    %vm2196 = vcmp.gt.f32.partialorder %v1988, %v1892
    %vm2197 = vcmp.gt.f32.partialorder %v1989, %v1893
    %vm2198 = vcmp.gt.f32.partialorder %v1990, %v1894
    %vm2199 = vcmp.gt.f32.partialorder %v1991, %v1895
    %vm2200 = vcmp.gt.f32.partialorder %v1992, %v1896
    %v2201 = vsel %vm2185, %v1977, %v1881
    %v2202 = vsel %vm2186, %v1978, %v1882
    %v2203 = vsel %vm2187, %v1979, %v1883
    %v2204 = vsel %vm2188, %v1980, %v1884
    %v2205 = vsel %vm2189, %v1981, %v1885
    %v2206 = vsel %vm2190, %v1982, %v1886
    %v2207 = vsel %vm2191, %v1983, %v1887
    %v2208 = vsel %vm2192, %v1984, %v1888
    %v2209 = vsel %vm2193, %v1985, %v1889
    %v2210 = vsel %vm2194, %v1986, %v1890
    %v2211 = vsel %vm2195, %v1987, %v1891
    %v2212 = vsel %vm2196, %v1988, %v1892
    %v2213 = vsel %vm2197, %v1989, %v1893
    %v2214 = vsel %vm2198, %v1990, %v1894
    %v2215 = vsel %vm2199, %v1991, %v1895
    %v2216 = vsel %vm2200, %v1992, %v1896
    %v2217 = vsel %vm2185, 1, 0
    %v2218 = vsel %vm2186, 1, 0
    %v2219 = vsel %vm2187, 1, 0
    %v2220 = vsel %vm2188, 1, 0
    %v2221 = vsel %vm2189, 1, 0
    %v2222 = vsel %vm2190, 1, 0
    %v2223 = vsel %vm2191, 1, 0
    %v2224 = vsel %vm2192, 1, 0
    %v2225 = vsel %vm2193, 1, 0
    %v2226 = vsel %vm2194, 1, 0
    %v2227 = vsel %vm2195, 1, 0
    %v2228 = vsel %vm2196, 1, 0
    %v2229 = vsel %vm2197, 1, 0
    %v2230 = vsel %vm2198, 1, 0
    %v2231 = vsel %vm2199, 1, 0
    %v2232 = vsel %vm2200, 1, 0
    %vm2233 = vcmp.gt.f32.partialorder %v2073, %v2201
    %vm2234 = vcmp.gt.f32.partialorder %v2074, %v2202
    %vm2235 = vcmp.gt.f32.partialorder %v2075, %v2203
    %vm2236 = vcmp.gt.f32.partialorder %v2076, %v2204
    %vm2237 = vcmp.gt.f32.partialorder %v2077, %v2205
    %vm2238 = vcmp.gt.f32.partialorder %v2078, %v2206
    %vm2239 = vcmp.gt.f32.partialorder %v2079, %v2207
    %vm2240 = vcmp.gt.f32.partialorder %v2080, %v2208
    %vm2241 = vcmp.gt.f32.partialorder %v2081, %v2209
    %vm2242 = vcmp.gt.f32.partialorder %v2082, %v2210
    %vm2243 = vcmp.gt.f32.partialorder %v2083, %v2211
    %vm2244 = vcmp.gt.f32.partialorder %v2084, %v2212
    %vm2245 = vcmp.gt.f32.partialorder %v2085, %v2213
    %vm2246 = vcmp.gt.f32.partialorder %v2086, %v2214
    %vm2247 = vcmp.gt.f32.partialorder %v2087, %v2215
    %vm2248 = vcmp.gt.f32.partialorder %v2088, %v2216
    %v2249 = vsel %vm2233, %v2073, %v2201
    %v2250 = vsel %vm2234, %v2074, %v2202
    %v2251 = vsel %vm2235, %v2075, %v2203
    %v2252 = vsel %vm2236, %v2076, %v2204
    %v2253 = vsel %vm2237, %v2077, %v2205
    %v2254 = vsel %vm2238, %v2078, %v2206
    %v2255 = vsel %vm2239, %v2079, %v2207
    %v2256 = vsel %vm2240, %v2080, %v2208
    %v2257 = vsel %vm2241, %v2081, %v2209
    %v2258 = vsel %vm2242, %v2082, %v2210
    %v2259 = vsel %vm2243, %v2083, %v2211
    %v2260 = vsel %vm2244, %v2084, %v2212
    %v2261 = vsel %vm2245, %v2085, %v2213
    %v2262 = vsel %vm2246, %v2086, %v2214
    %v2263 = vsel %vm2247, %v2087, %v2215
    %v2264 = vsel %vm2248, %v2088, %v2216
    %v2265 = vsel %vm2233, 2, %v2217
    %v2266 = vsel %vm2234, 2, %v2218
    %v2267 = vsel %vm2235, 2, %v2219
    %v2268 = vsel %vm2236, 2, %v2220
    %v2269 = vsel %vm2237, 2, %v2221
    %v2270 = vsel %vm2238, 2, %v2222
    %v2271 = vsel %vm2239, 2, %v2223
    %v2272 = vsel %vm2240, 2, %v2224
    %v2273 = vsel %vm2241, 2, %v2225
    %v2274 = vsel %vm2242, 2, %v2226
    %v2275 = vsel %vm2243, 2, %v2227
    %v2276 = vsel %vm2244, 2, %v2228
    %v2277 = vsel %vm2245, 2, %v2229
    %v2278 = vsel %vm2246, 2, %v2230
    %v2279 = vsel %vm2247, 2, %v2231
    %v2280 = vsel %vm2248, 2, %v2232
    %vm2281 = vcmp.gt.f32.partialorder %v2169, %v2249
    %vm2282 = vcmp.gt.f32.partialorder %v2170, %v2250
    %vm2283 = vcmp.gt.f32.partialorder %v2171, %v2251
    %vm2284 = vcmp.gt.f32.partialorder %v2172, %v2252
    %vm2285 = vcmp.gt.f32.partialorder %v2173, %v2253
    %vm2286 = vcmp.gt.f32.partialorder %v2174, %v2254
    %vm2287 = vcmp.gt.f32.partialorder %v2175, %v2255
    %vm2288 = vcmp.gt.f32.partialorder %v2176, %v2256
    %vm2289 = vcmp.gt.f32.partialorder %v2177, %v2257
    %vm2290 = vcmp.gt.f32.partialorder %v2178, %v2258
    %vm2291 = vcmp.gt.f32.partialorder %v2179, %v2259
    %vm2292 = vcmp.gt.f32.partialorder %v2180, %v2260
    %vm2293 = vcmp.gt.f32.partialorder %v2181, %v2261
    %vm2294 = vcmp.gt.f32.partialorder %v2182, %v2262
    %vm2295 = vcmp.gt.f32.partialorder %v2183, %v2263
    %vm2296 = vcmp.gt.f32.partialorder %v2184, %v2264
    %v2297 = vsel %vm2281, 3, %v2265
    %v2298 = vsel %vm2282, 3, %v2266
    %v2299 = vsel %vm2283, 3, %v2267
    %v2300 = vsel %vm2284, 3, %v2268
    %v2301 = vsel %vm2285, 3, %v2269
    %v2302 = vsel %vm2286, 3, %v2270
    %v2303 = vsel %vm2287, 3, %v2271
    %v2304 = vsel %vm2288, 3, %v2272
    %v2305 = vsel %vm2289, 3, %v2273
    %v2306 = vsel %vm2290, 3, %v2274
    %v2307 = vsel %vm2291, 3, %v2275
    %v2308 = vsel %vm2292, 3, %v2276
    %v2309 = vsel %vm2293, 3, %v2277
    %v2310 = vsel %vm2294, 3, %v2278
    %v2311 = vsel %vm2295, 3, %v2279
    %v2312 = vsel %vm2296, 3, %v2280
    %vm2313 = vcmp.eq.s32.totalorder %v2297, 0
    %vm2314 = vcmp.eq.s32.totalorder %v2298, 0
    %vm2315 = vcmp.eq.s32.totalorder %v2299, 0
    %vm2316 = vcmp.eq.s32.totalorder %v2300, 0
    %vm2317 = vcmp.eq.s32.totalorder %v2301, 0
    %vm2318 = vcmp.eq.s32.totalorder %v2302, 0
    %vm2319 = vcmp.eq.s32.totalorder %v2303, 0
    %vm2320 = vcmp.eq.s32.totalorder %v2304, 0
    %vm2321 = vcmp.eq.s32.totalorder %v2305, 0
    %vm2322 = vcmp.eq.s32.totalorder %v2306, 0
    %vm2323 = vcmp.eq.s32.totalorder %v2307, 0
    %vm2324 = vcmp.eq.s32.totalorder %v2308, 0
    %vm2325 = vcmp.eq.s32.totalorder %v2309, 0
    %vm2326 = vcmp.eq.s32.totalorder %v2310, 0
    %vm2327 = vcmp.eq.s32.totalorder %v2311, 0
    %vm2328 = vcmp.eq.s32.totalorder %v2312, 0
    %v2329 = vsel %vm2313, 1, 0
    %v2330 = vsel %vm2314, 1, 0
    %v2331 = vsel %vm2315, 1, 0
    %v2332 = vsel %vm2316, 1, 0
    %v2333 = vsel %vm2317, 1, 0
    %v2334 = vsel %vm2318, 1, 0
    %v2335 = vsel %vm2319, 1, 0
    %v2336 = vsel %vm2320, 1, 0
    %v2337 = vsel %vm2321, 1, 0
    %v2338 = vsel %vm2322, 1, 0
    %v2339 = vsel %vm2323, 1, 0
    %v2340 = vsel %vm2324, 1, 0
    %v2341 = vsel %vm2325, 1, 0
    %v2342 = vsel %vm2326, 1, 0
    %v2343 = vsel %vm2327, 1, 0
    %v2344 = vsel %vm2328, 1, 0
    %v2345 = vcvt.s32.f32 %v2329
    %v2346 = vcvt.s32.f32 %v2330
    %v2347 = vcvt.s32.f32 %v2331
    %v2348 = vcvt.s32.f32 %v2332
    %v2349 = vcvt.s32.f32 %v2333
    %v2350 = vcvt.s32.f32 %v2334
    %v2351 = vcvt.s32.f32 %v2335
    %v2352 = vcvt.s32.f32 %v2336
    %v2353 = vcvt.s32.f32 %v2337
    %v2354 = vcvt.s32.f32 %v2338
    %v2355 = vcvt.s32.f32 %v2339
    %v2356 = vcvt.s32.f32 %v2340
    %v2357 = vcvt.s32.f32 %v2341
    %v2358 = vcvt.s32.f32 %v2342
    %v2359 = vcvt.s32.f32 %v2343
    %v2360 = vcvt.s32.f32 %v2344
    %2362 = vset.pattern.permute.xlu0 1
    %2363 = vperm.xlu0 %2362, %v2345
    %v2364 = vpop.permute.xlu0 %2363
    %2367 = vset.pattern.permute.xlu0 1
    %2368 = vperm.xlu0 %2367, %v2346
    %v2369 = vpop.permute.xlu0 %2368
    %2372 = vset.pattern.permute.xlu0 1
    %2373 = vperm.xlu0 %2372, %v2347
    %v2374 = vpop.permute.xlu0 %2373
    %2377 = vset.pattern.permute.xlu0 1
    %2378 = vperm.xlu0 %2377, %v2348
    %v2379 = vpop.permute.xlu0 %2378
    %2382 = vset.pattern.permute.xlu0 1
    %2383 = vperm.xlu0 %2382, %v2349
    %v2384 = vpop.permute.xlu0 %2383
    %2387 = vset.pattern.permute.xlu0 1
    %2388 = vperm.xlu0 %2387, %v2350
    %v2389 = vpop.permute.xlu0 %2388
    %2392 = vset.pattern.permute.xlu0 1
    %2393 = vperm.xlu0 %2392, %v2351
    %v2394 = vpop.permute.xlu0 %2393
    %2397 = vset.pattern.permute.xlu0 1
    %2398 = vperm.xlu0 %2397, %v2352
    %v2399 = vpop.permute.xlu0 %2398
    %2402 = vset.pattern.permute.xlu0 1
    %2403 = vperm.xlu0 %2402, %v2353
    %v2404 = vpop.permute.xlu0 %2403
    %2407 = vset.pattern.permute.xlu0 1
    %2408 = vperm.xlu0 %2407, %v2354
    %v2409 = vpop.permute.xlu0 %2408
    %2412 = vset.pattern.permute.xlu0 1
    %2413 = vperm.xlu0 %2412, %v2355
    %v2414 = vpop.permute.xlu0 %2413
    %2417 = vset.pattern.permute.xlu0 1
    %2418 = vperm.xlu0 %2417, %v2356
    %v2419 = vpop.permute.xlu0 %2418
    %2422 = vset.pattern.permute.xlu0 1
    %2423 = vperm.xlu0 %2422, %v2357
    %v2424 = vpop.permute.xlu0 %2423
    %2427 = vset.pattern.permute.xlu0 1
    %2428 = vperm.xlu0 %2427, %v2358
    %v2429 = vpop.permute.xlu0 %2428
    %2432 = vset.pattern.permute.xlu0 1
    %2433 = vperm.xlu0 %2432, %v2359
    %v2434 = vpop.permute.xlu0 %2433
    %2437 = vset.pattern.permute.xlu0 1
    %2438 = vperm.xlu0 %2437, %v2360
    %v2439 = vpop.permute.xlu0 %2438
    %v2441 = vmul.f32 %v950, %v2364
    %v2442 = vmul.f32 %v952, %v2369
    %v2443 = vmul.f32 %v954, %v2374
    %v2444 = vmul.f32 %v956, %v2379
    %v2445 = vmul.f32 %v958, %v2384
    %v2446 = vmul.f32 %v960, %v2389
    %v2447 = vmul.f32 %v962, %v2394
    %v2448 = vmul.f32 %v964, %v2399
    %v2449 = vmul.f32 %v966, %v2404
    %v2450 = vmul.f32 %v968, %v2409
    %v2451 = vmul.f32 %v970, %v2414
    %v2452 = vmul.f32 %v972, %v2419
    %v2453 = vmul.f32 %v974, %v2424
    %v2454 = vmul.f32 %v976, %v2429
    %v2455 = vmul.f32 %v978, %v2434
    %v2456 = vmul.f32 %v980, %v2439
    %v2457 = vadd.f32 %v2441, 0.0
    %v2458 = vadd.f32 %v2442, 0.0
    %v2459 = vadd.f32 %v2443, 0.0
    %v2460 = vadd.f32 %v2444, 0.0
    %v2461 = vadd.f32 %v2445, 0.0
    %v2462 = vadd.f32 %v2446, 0.0
    %v2463 = vadd.f32 %v2447, 0.0
    %v2464 = vadd.f32 %v2448, 0.0
    %v2465 = vadd.f32 %v2449, 0.0
    %v2466 = vadd.f32 %v2450, 0.0
    %v2467 = vadd.f32 %v2451, 0.0
    %v2468 = vadd.f32 %v2452, 0.0
    %v2469 = vadd.f32 %v2453, 0.0
    %v2470 = vadd.f32 %v2454, 0.0
    %v2471 = vadd.f32 %v2455, 0.0
    %v2472 = vadd.f32 %v2456, 0.0
    %2473 = vrot.lane.b32.xlu0 %v2345, 127
    %v2474 = vpop.permute.xlu0 %2473
    %2475 = vrot.lane.b32.xlu0 %v2346, 127
    %v2476 = vpop.permute.xlu0 %2475
    %2477 = vrot.lane.b32.xlu0 %v2347, 127
    %v2478 = vpop.permute.xlu0 %2477
    %2479 = vrot.lane.b32.xlu0 %v2348, 127
    %v2480 = vpop.permute.xlu0 %2479
    %2481 = vrot.lane.b32.xlu0 %v2349, 127
    %v2482 = vpop.permute.xlu0 %2481
    %2483 = vrot.lane.b32.xlu0 %v2350, 127
    %v2484 = vpop.permute.xlu0 %2483
    %2485 = vrot.lane.b32.xlu0 %v2351, 127
    %v2486 = vpop.permute.xlu0 %2485
    %2487 = vrot.lane.b32.xlu0 %v2352, 127
    %v2488 = vpop.permute.xlu0 %2487
    %2489 = vrot.lane.b32.xlu0 %v2353, 127
    %v2490 = vpop.permute.xlu0 %2489
    %2491 = vrot.lane.b32.xlu0 %v2354, 127
    %v2492 = vpop.permute.xlu0 %2491
    %2493 = vrot.lane.b32.xlu0 %v2355, 127
    %v2494 = vpop.permute.xlu0 %2493
    %2495 = vrot.lane.b32.xlu0 %v2356, 127
    %v2496 = vpop.permute.xlu0 %2495
    %2497 = vrot.lane.b32.xlu0 %v2357, 127
    %v2498 = vpop.permute.xlu0 %2497
    %2499 = vrot.lane.b32.xlu0 %v2358, 127
    %v2500 = vpop.permute.xlu0 %2499
    %2501 = vrot.lane.b32.xlu0 %v2359, 127
    %v2502 = vpop.permute.xlu0 %2501
    %2503 = vrot.lane.b32.xlu0 %v2360, 127
    %v2504 = vpop.permute.xlu0 %2503
    %v2521 = vmul.f32 %v1048, %v2474
    %v2522 = vmul.f32 %v1053, %v2476
    %v2523 = vmul.f32 %v1058, %v2478
    %v2524 = vmul.f32 %v1063, %v2480
    %v2525 = vmul.f32 %v1068, %v2482
    %v2526 = vmul.f32 %v1073, %v2484
    %v2527 = vmul.f32 %v1078, %v2486
    %v2528 = vmul.f32 %v1083, %v2488
    %v2529 = vmul.f32 %v1088, %v2490
    %v2530 = vmul.f32 %v1093, %v2492
    %v2531 = vmul.f32 %v1098, %v2494
    %v2532 = vmul.f32 %v1103, %v2496
    %v2533 = vmul.f32 %v1108, %v2498
    %v2534 = vmul.f32 %v1113, %v2500
    %v2535 = vmul.f32 %v1118, %v2502
    %v2536 = vmul.f32 %v1123, %v2504
    %v2537 = vadd.f32 %v2521, 0.0
    %v2538 = vadd.f32 %v2522, 0.0
    %v2539 = vadd.f32 %v2523, 0.0
    %v2540 = vadd.f32 %v2524, 0.0
    %v2541 = vadd.f32 %v2525, 0.0
    %v2542 = vadd.f32 %v2526, 0.0
    %v2543 = vadd.f32 %v2527, 0.0
    %v2544 = vadd.f32 %v2528, 0.0
    %v2545 = vadd.f32 %v2529, 0.0
    %v2546 = vadd.f32 %v2530, 0.0
    %v2547 = vadd.f32 %v2531, 0.0
    %v2548 = vadd.f32 %v2532, 0.0
    %v2549 = vadd.f32 %v2533, 0.0
    %v2550 = vadd.f32 %v2534, 0.0
    %v2551 = vadd.f32 %v2535, 0.0
    %v2552 = vadd.f32 %v2536, 0.0
    %vm2553 = vcmp.eq.s32.totalorder %v2297, 1
    %vm2554 = vcmp.eq.s32.totalorder %v2298, 1
    %vm2555 = vcmp.eq.s32.totalorder %v2299, 1
    %vm2556 = vcmp.eq.s32.totalorder %v2300, 1
    %vm2557 = vcmp.eq.s32.totalorder %v2301, 1
    %vm2558 = vcmp.eq.s32.totalorder %v2302, 1
    %vm2559 = vcmp.eq.s32.totalorder %v2303, 1
    %vm2560 = vcmp.eq.s32.totalorder %v2304, 1
    %vm2561 = vcmp.eq.s32.totalorder %v2305, 1
    %vm2562 = vcmp.eq.s32.totalorder %v2306, 1
    %vm2563 = vcmp.eq.s32.totalorder %v2307, 1
    %vm2564 = vcmp.eq.s32.totalorder %v2308, 1
    %vm2565 = vcmp.eq.s32.totalorder %v2309, 1
    %vm2566 = vcmp.eq.s32.totalorder %v2310, 1
    %vm2567 = vcmp.eq.s32.totalorder %v2311, 1
    %vm2568 = vcmp.eq.s32.totalorder %v2312, 1
    %v2569 = vsel %vm2553, 1, 0
    %v2570 = vsel %vm2554, 1, 0
    %v2571 = vsel %vm2555, 1, 0
    %v2572 = vsel %vm2556, 1, 0
    %v2573 = vsel %vm2557, 1, 0
    %v2574 = vsel %vm2558, 1, 0
    %v2575 = vsel %vm2559, 1, 0
    %v2576 = vsel %vm2560, 1, 0
    %v2577 = vsel %vm2561, 1, 0
    %v2578 = vsel %vm2562, 1, 0
    %v2579 = vsel %vm2563, 1, 0
    %v2580 = vsel %vm2564, 1, 0
    %v2581 = vsel %vm2565, 1, 0
    %v2582 = vsel %vm2566, 1, 0
    %v2583 = vsel %vm2567, 1, 0
    %v2584 = vsel %vm2568, 1, 0
    %v2585 = vcvt.s32.f32 %v2569
    %v2586 = vcvt.s32.f32 %v2570
    %v2587 = vcvt.s32.f32 %v2571
    %v2588 = vcvt.s32.f32 %v2572
    %v2589 = vcvt.s32.f32 %v2573
    %v2590 = vcvt.s32.f32 %v2574
    %v2591 = vcvt.s32.f32 %v2575
    %v2592 = vcvt.s32.f32 %v2576
    %v2593 = vcvt.s32.f32 %v2577
    %v2594 = vcvt.s32.f32 %v2578
    %v2595 = vcvt.s32.f32 %v2579
    %v2596 = vcvt.s32.f32 %v2580
    %v2597 = vcvt.s32.f32 %v2581
    %v2598 = vcvt.s32.f32 %v2582
    %v2599 = vcvt.s32.f32 %v2583
    %v2600 = vcvt.s32.f32 %v2584
    %2602 = vset.pattern.permute.xlu0 1
    %2603 = vperm.xlu0 %2602, %v2585
    %v2604 = vpop.permute.xlu0 %2603
    %2607 = vset.pattern.permute.xlu0 1
    %2608 = vperm.xlu0 %2607, %v2586
    %v2609 = vpop.permute.xlu0 %2608
    %2612 = vset.pattern.permute.xlu0 1
    %2613 = vperm.xlu0 %2612, %v2587
    %v2614 = vpop.permute.xlu0 %2613
    %2617 = vset.pattern.permute.xlu0 1
    %2618 = vperm.xlu0 %2617, %v2588
    %v2619 = vpop.permute.xlu0 %2618
    %2622 = vset.pattern.permute.xlu0 1
    %2623 = vperm.xlu0 %2622, %v2589
    %v2624 = vpop.permute.xlu0 %2623
    %2627 = vset.pattern.permute.xlu0 1
    %2628 = vperm.xlu0 %2627, %v2590
    %v2629 = vpop.permute.xlu0 %2628
    %2632 = vset.pattern.permute.xlu0 1
    %2633 = vperm.xlu0 %2632, %v2591
    %v2634 = vpop.permute.xlu0 %2633
    %2637 = vset.pattern.permute.xlu0 1
    %2638 = vperm.xlu0 %2637, %v2592
    %v2639 = vpop.permute.xlu0 %2638
    %2642 = vset.pattern.permute.xlu0 1
    %2643 = vperm.xlu0 %2642, %v2593
    %v2644 = vpop.permute.xlu0 %2643
    %2647 = vset.pattern.permute.xlu0 1
    %2648 = vperm.xlu0 %2647, %v2594
    %v2649 = vpop.permute.xlu0 %2648
    %2652 = vset.pattern.permute.xlu0 1
    %2653 = vperm.xlu0 %2652, %v2595
    %v2654 = vpop.permute.xlu0 %2653
    %2657 = vset.pattern.permute.xlu0 1
    %2658 = vperm.xlu0 %2657, %v2596
    %v2659 = vpop.permute.xlu0 %2658
    %2662 = vset.pattern.permute.xlu0 1
    %2663 = vperm.xlu0 %2662, %v2597
    %v2664 = vpop.permute.xlu0 %2663
    %2667 = vset.pattern.permute.xlu0 1
    %2668 = vperm.xlu0 %2667, %v2598
    %v2669 = vpop.permute.xlu0 %2668
    %2672 = vset.pattern.permute.xlu0 1
    %2673 = vperm.xlu0 %2672, %v2599
    %v2674 = vpop.permute.xlu0 %2673
    %2677 = vset.pattern.permute.xlu0 1
    %2678 = vperm.xlu0 %2677, %v2600
    %v2679 = vpop.permute.xlu0 %2678
    %v2681 = vmul.f32 %v1175, %v2604
    %v2682 = vmul.f32 %v1177, %v2609
    %v2683 = vmul.f32 %v1179, %v2614
    %v2684 = vmul.f32 %v1181, %v2619
    %v2685 = vmul.f32 %v1183, %v2624
    %v2686 = vmul.f32 %v1185, %v2629
    %v2687 = vmul.f32 %v1187, %v2634
    %v2688 = vmul.f32 %v1189, %v2639
    %v2689 = vmul.f32 %v1191, %v2644
    %v2690 = vmul.f32 %v1193, %v2649
    %v2691 = vmul.f32 %v1195, %v2654
    %v2692 = vmul.f32 %v1197, %v2659
    %v2693 = vmul.f32 %v1199, %v2664
    %v2694 = vmul.f32 %v1201, %v2669
    %v2695 = vmul.f32 %v1203, %v2674
    %v2696 = vmul.f32 %v1205, %v2679
    %v2697 = vadd.f32 %v2457, %v2681
    %v2698 = vadd.f32 %v2458, %v2682
    %v2699 = vadd.f32 %v2459, %v2683
    %v2700 = vadd.f32 %v2460, %v2684
    %v2701 = vadd.f32 %v2461, %v2685
    %v2702 = vadd.f32 %v2462, %v2686
    %v2703 = vadd.f32 %v2463, %v2687
    %v2704 = vadd.f32 %v2464, %v2688
    %v2705 = vadd.f32 %v2465, %v2689
    %v2706 = vadd.f32 %v2466, %v2690
    %v2707 = vadd.f32 %v2467, %v2691
    %v2708 = vadd.f32 %v2468, %v2692
    %v2709 = vadd.f32 %v2469, %v2693
    %v2710 = vadd.f32 %v2470, %v2694
    %v2711 = vadd.f32 %v2471, %v2695
    %v2712 = vadd.f32 %v2472, %v2696
    %2713 = vrot.lane.b32.xlu0 %v2585, 127
    %v2714 = vpop.permute.xlu0 %2713
    %2715 = vrot.lane.b32.xlu0 %v2586, 127
    %v2716 = vpop.permute.xlu0 %2715
    %2717 = vrot.lane.b32.xlu0 %v2587, 127
    %v2718 = vpop.permute.xlu0 %2717
    %2719 = vrot.lane.b32.xlu0 %v2588, 127
    %v2720 = vpop.permute.xlu0 %2719
    %2721 = vrot.lane.b32.xlu0 %v2589, 127
    %v2722 = vpop.permute.xlu0 %2721
    %2723 = vrot.lane.b32.xlu0 %v2590, 127
    %v2724 = vpop.permute.xlu0 %2723
    %2725 = vrot.lane.b32.xlu0 %v2591, 127
    %v2726 = vpop.permute.xlu0 %2725
    %2727 = vrot.lane.b32.xlu0 %v2592, 127
    %v2728 = vpop.permute.xlu0 %2727
    %2729 = vrot.lane.b32.xlu0 %v2593, 127
    %v2730 = vpop.permute.xlu0 %2729
    %2731 = vrot.lane.b32.xlu0 %v2594, 127
    %v2732 = vpop.permute.xlu0 %2731
    %2733 = vrot.lane.b32.xlu0 %v2595, 127
    %v2734 = vpop.permute.xlu0 %2733
    %2735 = vrot.lane.b32.xlu0 %v2596, 127
    %v2736 = vpop.permute.xlu0 %2735
    %2737 = vrot.lane.b32.xlu0 %v2597, 127
    %v2738 = vpop.permute.xlu0 %2737
    %2739 = vrot.lane.b32.xlu0 %v2598, 127
    %v2740 = vpop.permute.xlu0 %2739
    %2741 = vrot.lane.b32.xlu0 %v2599, 127
    %v2742 = vpop.permute.xlu0 %2741
    %2743 = vrot.lane.b32.xlu0 %v2600, 127
    %v2744 = vpop.permute.xlu0 %2743
    %v2761 = vmul.f32 %v1273, %v2714
    %v2762 = vmul.f32 %v1278, %v2716
    %v2763 = vmul.f32 %v1283, %v2718
    %v2764 = vmul.f32 %v1288, %v2720
    %v2765 = vmul.f32 %v1293, %v2722
    %v2766 = vmul.f32 %v1298, %v2724
    %v2767 = vmul.f32 %v1303, %v2726
    %v2768 = vmul.f32 %v1308, %v2728
    %v2769 = vmul.f32 %v1313, %v2730
    %v2770 = vmul.f32 %v1318, %v2732
    %v2771 = vmul.f32 %v1323, %v2734
    %v2772 = vmul.f32 %v1328, %v2736
    %v2773 = vmul.f32 %v1333, %v2738
    %v2774 = vmul.f32 %v1338, %v2740
    %v2775 = vmul.f32 %v1343, %v2742
    %v2776 = vmul.f32 %v1348, %v2744
    %v2777 = vadd.f32 %v2537, %v2761
    %v2778 = vadd.f32 %v2538, %v2762
    %v2779 = vadd.f32 %v2539, %v2763
    %v2780 = vadd.f32 %v2540, %v2764
    %v2781 = vadd.f32 %v2541, %v2765
    %v2782 = vadd.f32 %v2542, %v2766
    %v2783 = vadd.f32 %v2543, %v2767
    %v2784 = vadd.f32 %v2544, %v2768
    %v2785 = vadd.f32 %v2545, %v2769
    %v2786 = vadd.f32 %v2546, %v2770
    %v2787 = vadd.f32 %v2547, %v2771
    %v2788 = vadd.f32 %v2548, %v2772
    %v2789 = vadd.f32 %v2549, %v2773
    %v2790 = vadd.f32 %v2550, %v2774
    %v2791 = vadd.f32 %v2551, %v2775
    %v2792 = vadd.f32 %v2552, %v2776
    %vm2793 = vcmp.eq.s32.totalorder %v2297, 2
    %vm2794 = vcmp.eq.s32.totalorder %v2298, 2
    %vm2795 = vcmp.eq.s32.totalorder %v2299, 2
    %vm2796 = vcmp.eq.s32.totalorder %v2300, 2
    %vm2797 = vcmp.eq.s32.totalorder %v2301, 2
    %vm2798 = vcmp.eq.s32.totalorder %v2302, 2
    %vm2799 = vcmp.eq.s32.totalorder %v2303, 2
    %vm2800 = vcmp.eq.s32.totalorder %v2304, 2
    %vm2801 = vcmp.eq.s32.totalorder %v2305, 2
    %vm2802 = vcmp.eq.s32.totalorder %v2306, 2
    %vm2803 = vcmp.eq.s32.totalorder %v2307, 2
    %vm2804 = vcmp.eq.s32.totalorder %v2308, 2
    %vm2805 = vcmp.eq.s32.totalorder %v2309, 2
    %vm2806 = vcmp.eq.s32.totalorder %v2310, 2
    %vm2807 = vcmp.eq.s32.totalorder %v2311, 2
    %vm2808 = vcmp.eq.s32.totalorder %v2312, 2
    %v2809 = vsel %vm2793, 1, 0
    %v2810 = vsel %vm2794, 1, 0
    %v2811 = vsel %vm2795, 1, 0
    %v2812 = vsel %vm2796, 1, 0
    %v2813 = vsel %vm2797, 1, 0
    %v2814 = vsel %vm2798, 1, 0
    %v2815 = vsel %vm2799, 1, 0
    %v2816 = vsel %vm2800, 1, 0
    %v2817 = vsel %vm2801, 1, 0
    %v2818 = vsel %vm2802, 1, 0
    %v2819 = vsel %vm2803, 1, 0
    %v2820 = vsel %vm2804, 1, 0
    %v2821 = vsel %vm2805, 1, 0
    %v2822 = vsel %vm2806, 1, 0
    %v2823 = vsel %vm2807, 1, 0
    %v2824 = vsel %vm2808, 1, 0
    %v2825 = vcvt.s32.f32 %v2809
    %v2826 = vcvt.s32.f32 %v2810
    %v2827 = vcvt.s32.f32 %v2811
    %v2828 = vcvt.s32.f32 %v2812
    %v2829 = vcvt.s32.f32 %v2813
    %v2830 = vcvt.s32.f32 %v2814
    %v2831 = vcvt.s32.f32 %v2815
    %v2832 = vcvt.s32.f32 %v2816
    %v2833 = vcvt.s32.f32 %v2817
    %v2834 = vcvt.s32.f32 %v2818
    %v2835 = vcvt.s32.f32 %v2819
    %v2836 = vcvt.s32.f32 %v2820
    %v2837 = vcvt.s32.f32 %v2821
    %v2838 = vcvt.s32.f32 %v2822
    %v2839 = vcvt.s32.f32 %v2823
    %v2840 = vcvt.s32.f32 %v2824
    %2842 = vset.pattern.permute.xlu0 1
    %2843 = vperm.xlu0 %2842, %v2825
    %v2844 = vpop.permute.xlu0 %2843
    %2847 = vset.pattern.permute.xlu0 1
    %2848 = vperm.xlu0 %2847, %v2826
    %v2849 = vpop.permute.xlu0 %2848
    %2852 = vset.pattern.permute.xlu0 1
    %2853 = vperm.xlu0 %2852, %v2827
    %v2854 = vpop.permute.xlu0 %2853
    %2857 = vset.pattern.permute.xlu0 1
    %2858 = vperm.xlu0 %2857, %v2828
    %v2859 = vpop.permute.xlu0 %2858
    %2862 = vset.pattern.permute.xlu0 1
    %2863 = vperm.xlu0 %2862, %v2829
    %v2864 = vpop.permute.xlu0 %2863
    %2867 = vset.pattern.permute.xlu0 1
    %2868 = vperm.xlu0 %2867, %v2830
    %v2869 = vpop.permute.xlu0 %2868
    %2872 = vset.pattern.permute.xlu0 1
    %2873 = vperm.xlu0 %2872, %v2831
    %v2874 = vpop.permute.xlu0 %2873
    %2877 = vset.pattern.permute.xlu0 1
    %2878 = vperm.xlu0 %2877, %v2832
    %v2879 = vpop.permute.xlu0 %2878
    %2882 = vset.pattern.permute.xlu0 1
    %2883 = vperm.xlu0 %2882, %v2833
    %v2884 = vpop.permute.xlu0 %2883
    %2887 = vset.pattern.permute.xlu0 1
    %2888 = vperm.xlu0 %2887, %v2834
    %v2889 = vpop.permute.xlu0 %2888
    %2892 = vset.pattern.permute.xlu0 1
    %2893 = vperm.xlu0 %2892, %v2835
    %v2894 = vpop.permute.xlu0 %2893
    %2897 = vset.pattern.permute.xlu0 1
    %2898 = vperm.xlu0 %2897, %v2836
    %v2899 = vpop.permute.xlu0 %2898
    %2902 = vset.pattern.permute.xlu0 1
    %2903 = vperm.xlu0 %2902, %v2837
    %v2904 = vpop.permute.xlu0 %2903
    %2907 = vset.pattern.permute.xlu0 1
    %2908 = vperm.xlu0 %2907, %v2838
    %v2909 = vpop.permute.xlu0 %2908
    %2912 = vset.pattern.permute.xlu0 1
    %2913 = vperm.xlu0 %2912, %v2839
    %v2914 = vpop.permute.xlu0 %2913
    %2917 = vset.pattern.permute.xlu0 1
    %2918 = vperm.xlu0 %2917, %v2840
    %v2919 = vpop.permute.xlu0 %2918
    %v2921 = vmul.f32 %v1400, %v2844
    %v2922 = vmul.f32 %v1402, %v2849
    %v2923 = vmul.f32 %v1404, %v2854
    %v2924 = vmul.f32 %v1406, %v2859
    %v2925 = vmul.f32 %v1408, %v2864
    %v2926 = vmul.f32 %v1410, %v2869
    %v2927 = vmul.f32 %v1412, %v2874
    %v2928 = vmul.f32 %v1414, %v2879
    %v2929 = vmul.f32 %v1416, %v2884
    %v2930 = vmul.f32 %v1418, %v2889
    %v2931 = vmul.f32 %v1420, %v2894
    %v2932 = vmul.f32 %v1422, %v2899
    %v2933 = vmul.f32 %v1424, %v2904
    %v2934 = vmul.f32 %v1426, %v2909
    %v2935 = vmul.f32 %v1428, %v2914
    %v2936 = vmul.f32 %v1430, %v2919
    %v2937 = vadd.f32 %v2697, %v2921
    %v2938 = vadd.f32 %v2698, %v2922
    %v2939 = vadd.f32 %v2699, %v2923
    %v2940 = vadd.f32 %v2700, %v2924
    %v2941 = vadd.f32 %v2701, %v2925
    %v2942 = vadd.f32 %v2702, %v2926
    %v2943 = vadd.f32 %v2703, %v2927
    %v2944 = vadd.f32 %v2704, %v2928
    %v2945 = vadd.f32 %v2705, %v2929
    %v2946 = vadd.f32 %v2706, %v2930
    %v2947 = vadd.f32 %v2707, %v2931
    %v2948 = vadd.f32 %v2708, %v2932
    %v2949 = vadd.f32 %v2709, %v2933
    %v2950 = vadd.f32 %v2710, %v2934
    %v2951 = vadd.f32 %v2711, %v2935
    %v2952 = vadd.f32 %v2712, %v2936
    %2953 = vrot.lane.b32.xlu0 %v2825, 127
    %v2954 = vpop.permute.xlu0 %2953
    %2955 = vrot.lane.b32.xlu0 %v2826, 127
    %v2956 = vpop.permute.xlu0 %2955
    %2957 = vrot.lane.b32.xlu0 %v2827, 127
    %v2958 = vpop.permute.xlu0 %2957
    %2959 = vrot.lane.b32.xlu0 %v2828, 127
    %v2960 = vpop.permute.xlu0 %2959
    %2961 = vrot.lane.b32.xlu0 %v2829, 127
    %v2962 = vpop.permute.xlu0 %2961
    %2963 = vrot.lane.b32.xlu0 %v2830, 127
    %v2964 = vpop.permute.xlu0 %2963
    %2965 = vrot.lane.b32.xlu0 %v2831, 127
    %v2966 = vpop.permute.xlu0 %2965
    %2967 = vrot.lane.b32.xlu0 %v2832, 127
    %v2968 = vpop.permute.xlu0 %2967
    %2969 = vrot.lane.b32.xlu0 %v2833, 127
    %v2970 = vpop.permute.xlu0 %2969
    %2971 = vrot.lane.b32.xlu0 %v2834, 127
    %v2972 = vpop.permute.xlu0 %2971
    %2973 = vrot.lane.b32.xlu0 %v2835, 127
    %v2974 = vpop.permute.xlu0 %2973
    %2975 = vrot.lane.b32.xlu0 %v2836, 127
    %v2976 = vpop.permute.xlu0 %2975
    %2977 = vrot.lane.b32.xlu0 %v2837, 127
    %v2978 = vpop.permute.xlu0 %2977
    %2979 = vrot.lane.b32.xlu0 %v2838, 127
    %v2980 = vpop.permute.xlu0 %2979
    %2981 = vrot.lane.b32.xlu0 %v2839, 127
    %v2982 = vpop.permute.xlu0 %2981
    %2983 = vrot.lane.b32.xlu0 %v2840, 127
    %v2984 = vpop.permute.xlu0 %2983
    %v3001 = vmul.f32 %v1498, %v2954
    %v3002 = vmul.f32 %v1503, %v2956
    %v3003 = vmul.f32 %v1508, %v2958
    %v3004 = vmul.f32 %v1513, %v2960
    %v3005 = vmul.f32 %v1518, %v2962
    %v3006 = vmul.f32 %v1523, %v2964
    %v3007 = vmul.f32 %v1528, %v2966
    %v3008 = vmul.f32 %v1533, %v2968
    %v3009 = vmul.f32 %v1538, %v2970
    %v3010 = vmul.f32 %v1543, %v2972
    %v3011 = vmul.f32 %v1548, %v2974
    %v3012 = vmul.f32 %v1553, %v2976
    %v3013 = vmul.f32 %v1558, %v2978
    %v3014 = vmul.f32 %v1563, %v2980
    %v3015 = vmul.f32 %v1568, %v2982
    %v3016 = vmul.f32 %v1573, %v2984
    %v3017 = vadd.f32 %v2777, %v3001
    %v3018 = vadd.f32 %v2778, %v3002
    %v3019 = vadd.f32 %v2779, %v3003
    %v3020 = vadd.f32 %v2780, %v3004
    %v3021 = vadd.f32 %v2781, %v3005
    %v3022 = vadd.f32 %v2782, %v3006
    %v3023 = vadd.f32 %v2783, %v3007
    %v3024 = vadd.f32 %v2784, %v3008
    %v3025 = vadd.f32 %v2785, %v3009
    %v3026 = vadd.f32 %v2786, %v3010
    %v3027 = vadd.f32 %v2787, %v3011
    %v3028 = vadd.f32 %v2788, %v3012
    %v3029 = vadd.f32 %v2789, %v3013
    %v3030 = vadd.f32 %v2790, %v3014
    %v3031 = vadd.f32 %v2791, %v3015
    %v3032 = vadd.f32 %v2792, %v3016
    %vm3033 = vcmp.eq.s32.totalorder %v2297, 3
    %vm3034 = vcmp.eq.s32.totalorder %v2298, 3
    %vm3035 = vcmp.eq.s32.totalorder %v2299, 3
    %vm3036 = vcmp.eq.s32.totalorder %v2300, 3
    %vm3037 = vcmp.eq.s32.totalorder %v2301, 3
    %vm3038 = vcmp.eq.s32.totalorder %v2302, 3
    %vm3039 = vcmp.eq.s32.totalorder %v2303, 3
    %vm3040 = vcmp.eq.s32.totalorder %v2304, 3
    %vm3041 = vcmp.eq.s32.totalorder %v2305, 3
    %vm3042 = vcmp.eq.s32.totalorder %v2306, 3
    %vm3043 = vcmp.eq.s32.totalorder %v2307, 3
    %vm3044 = vcmp.eq.s32.totalorder %v2308, 3
    %vm3045 = vcmp.eq.s32.totalorder %v2309, 3
    %vm3046 = vcmp.eq.s32.totalorder %v2310, 3
    %vm3047 = vcmp.eq.s32.totalorder %v2311, 3
    %vm3048 = vcmp.eq.s32.totalorder %v2312, 3
    %v3049 = vsel %vm3033, 1, 0
    %v3050 = vsel %vm3034, 1, 0
    %v3051 = vsel %vm3035, 1, 0
    %v3052 = vsel %vm3036, 1, 0
    %v3053 = vsel %vm3037, 1, 0
    %v3054 = vsel %vm3038, 1, 0
    %v3055 = vsel %vm3039, 1, 0
    %v3056 = vsel %vm3040, 1, 0
    %v3057 = vsel %vm3041, 1, 0
    %v3058 = vsel %vm3042, 1, 0
    %v3059 = vsel %vm3043, 1, 0
    %v3060 = vsel %vm3044, 1, 0
    %v3061 = vsel %vm3045, 1, 0
    %v3062 = vsel %vm3046, 1, 0
    %v3063 = vsel %vm3047, 1, 0
    %v3064 = vsel %vm3048, 1, 0
    %v3065 = vcvt.s32.f32 %v3049
    %v3066 = vcvt.s32.f32 %v3050
    %v3067 = vcvt.s32.f32 %v3051
    %v3068 = vcvt.s32.f32 %v3052
    %v3069 = vcvt.s32.f32 %v3053
    %v3070 = vcvt.s32.f32 %v3054
    %v3071 = vcvt.s32.f32 %v3055
    %v3072 = vcvt.s32.f32 %v3056
    %v3073 = vcvt.s32.f32 %v3057
    %v3074 = vcvt.s32.f32 %v3058
    %v3075 = vcvt.s32.f32 %v3059
    %v3076 = vcvt.s32.f32 %v3060
    %v3077 = vcvt.s32.f32 %v3061
    %v3078 = vcvt.s32.f32 %v3062
    %v3079 = vcvt.s32.f32 %v3063
    %v3080 = vcvt.s32.f32 %v3064
    %3082 = vset.pattern.permute.xlu0 1
    %3083 = vperm.xlu0 %3082, %v3065
    %v3084 = vpop.permute.xlu0 %3083
    %3087 = vset.pattern.permute.xlu0 1
    %3088 = vperm.xlu0 %3087, %v3066
    %v3089 = vpop.permute.xlu0 %3088
    %3092 = vset.pattern.permute.xlu0 1
    %3093 = vperm.xlu0 %3092, %v3067
    %v3094 = vpop.permute.xlu0 %3093
    %3097 = vset.pattern.permute.xlu0 1
    %3098 = vperm.xlu0 %3097, %v3068
    %v3099 = vpop.permute.xlu0 %3098
    %3102 = vset.pattern.permute.xlu0 1
    %3103 = vperm.xlu0 %3102, %v3069
    %v3104 = vpop.permute.xlu0 %3103
    %3107 = vset.pattern.permute.xlu0 1
    %3108 = vperm.xlu0 %3107, %v3070
    %v3109 = vpop.permute.xlu0 %3108
    %3112 = vset.pattern.permute.xlu0 1
    %3113 = vperm.xlu0 %3112, %v3071
    %v3114 = vpop.permute.xlu0 %3113
    %3117 = vset.pattern.permute.xlu0 1
    %3118 = vperm.xlu0 %3117, %v3072
    %v3119 = vpop.permute.xlu0 %3118
    %3122 = vset.pattern.permute.xlu0 1
    %3123 = vperm.xlu0 %3122, %v3073
    %v3124 = vpop.permute.xlu0 %3123
    %3127 = vset.pattern.permute.xlu0 1
    %3128 = vperm.xlu0 %3127, %v3074
    %v3129 = vpop.permute.xlu0 %3128
    %3132 = vset.pattern.permute.xlu0 1
    %3133 = vperm.xlu0 %3132, %v3075
    %v3134 = vpop.permute.xlu0 %3133
    %3137 = vset.pattern.permute.xlu0 1
    %3138 = vperm.xlu0 %3137, %v3076
    %v3139 = vpop.permute.xlu0 %3138
    %3142 = vset.pattern.permute.xlu0 1
    %3143 = vperm.xlu0 %3142, %v3077
    %v3144 = vpop.permute.xlu0 %3143
    %3147 = vset.pattern.permute.xlu0 1
    %3148 = vperm.xlu0 %3147, %v3078
    %v3149 = vpop.permute.xlu0 %3148
    %3152 = vset.pattern.permute.xlu0 1
    %3153 = vperm.xlu0 %3152, %v3079
    %v3154 = vpop.permute.xlu0 %3153
    %3157 = vset.pattern.permute.xlu0 1
    %3158 = vperm.xlu0 %3157, %v3080
    %v3159 = vpop.permute.xlu0 %3158
    %v3161 = vmul.f32 %v1625, %v3084
    %v3162 = vmul.f32 %v1627, %v3089
    %v3163 = vmul.f32 %v1629, %v3094
    %v3164 = vmul.f32 %v1631, %v3099
    %v3165 = vmul.f32 %v1633, %v3104
    %v3166 = vmul.f32 %v1635, %v3109
    %v3167 = vmul.f32 %v1637, %v3114
    %v3168 = vmul.f32 %v1639, %v3119
    %v3169 = vmul.f32 %v1641, %v3124
    %v3170 = vmul.f32 %v1643, %v3129
    %v3171 = vmul.f32 %v1645, %v3134
    %v3172 = vmul.f32 %v1647, %v3139
    %v3173 = vmul.f32 %v1649, %v3144
    %v3174 = vmul.f32 %v1651, %v3149
    %v3175 = vmul.f32 %v1653, %v3154
    %v3176 = vmul.f32 %v1655, %v3159
    %v3177 = vadd.f32 %v2937, %v3161
    %v3178 = vadd.f32 %v2938, %v3162
    %v3179 = vadd.f32 %v2939, %v3163
    %v3180 = vadd.f32 %v2940, %v3164
    %v3181 = vadd.f32 %v2941, %v3165
    %v3182 = vadd.f32 %v2942, %v3166
    %v3183 = vadd.f32 %v2943, %v3167
    %v3184 = vadd.f32 %v2944, %v3168
    %v3185 = vadd.f32 %v2945, %v3169
    %v3186 = vadd.f32 %v2946, %v3170
    %v3187 = vadd.f32 %v2947, %v3171
    %v3188 = vadd.f32 %v2948, %v3172
    %v3189 = vadd.f32 %v2949, %v3173
    %v3190 = vadd.f32 %v2950, %v3174
    %v3191 = vadd.f32 %v2951, %v3175
    %v3192 = vadd.f32 %v2952, %v3176
    %3193 = vrot.lane.b32.xlu0 %v3065, 127
    %v3194 = vpop.permute.xlu0 %3193
    %3195 = vrot.lane.b32.xlu0 %v3066, 127
    %v3196 = vpop.permute.xlu0 %3195
    %3197 = vrot.lane.b32.xlu0 %v3067, 127
    %v3198 = vpop.permute.xlu0 %3197
    %3199 = vrot.lane.b32.xlu0 %v3068, 127
    %v3200 = vpop.permute.xlu0 %3199
    %3201 = vrot.lane.b32.xlu0 %v3069, 127
    %v3202 = vpop.permute.xlu0 %3201
    %3203 = vrot.lane.b32.xlu0 %v3070, 127
    %v3204 = vpop.permute.xlu0 %3203
    %3205 = vrot.lane.b32.xlu0 %v3071, 127
    %v3206 = vpop.permute.xlu0 %3205
    %3207 = vrot.lane.b32.xlu0 %v3072, 127
    %v3208 = vpop.permute.xlu0 %3207
    %3209 = vrot.lane.b32.xlu0 %v3073, 127
    %v3210 = vpop.permute.xlu0 %3209
    %3211 = vrot.lane.b32.xlu0 %v3074, 127
    %v3212 = vpop.permute.xlu0 %3211
    %3213 = vrot.lane.b32.xlu0 %v3075, 127
    %v3214 = vpop.permute.xlu0 %3213
    %3215 = vrot.lane.b32.xlu0 %v3076, 127
    %v3216 = vpop.permute.xlu0 %3215
    %3217 = vrot.lane.b32.xlu0 %v3077, 127
    %v3218 = vpop.permute.xlu0 %3217
    %3219 = vrot.lane.b32.xlu0 %v3078, 127
    %v3220 = vpop.permute.xlu0 %3219
    %3221 = vrot.lane.b32.xlu0 %v3079, 127
    %v3222 = vpop.permute.xlu0 %3221
    %3223 = vrot.lane.b32.xlu0 %v3080, 127
    %v3224 = vpop.permute.xlu0 %3223
    %v3241 = vmul.f32 %v1723, %v3194
    %v3242 = vmul.f32 %v1728, %v3196
    %v3243 = vmul.f32 %v1733, %v3198
    %v3244 = vmul.f32 %v1738, %v3200
    %v3245 = vmul.f32 %v1743, %v3202
    %v3246 = vmul.f32 %v1748, %v3204
    %v3247 = vmul.f32 %v1753, %v3206
    %v3248 = vmul.f32 %v1758, %v3208
    %v3249 = vmul.f32 %v1763, %v3210
    %v3250 = vmul.f32 %v1768, %v3212
    %v3251 = vmul.f32 %v1773, %v3214
    %v3252 = vmul.f32 %v1778, %v3216
    %v3253 = vmul.f32 %v1783, %v3218
    %v3254 = vmul.f32 %v1788, %v3220
    %v3255 = vmul.f32 %v1793, %v3222
    %v3256 = vmul.f32 %v1798, %v3224
    %v3257 = vadd.f32 %v3017, %v3241
    %v3258 = vadd.f32 %v3018, %v3242
    %v3259 = vadd.f32 %v3019, %v3243
    %v3260 = vadd.f32 %v3020, %v3244
    %v3261 = vadd.f32 %v3021, %v3245
    %v3262 = vadd.f32 %v3022, %v3246
    %v3263 = vadd.f32 %v3023, %v3247
    %v3264 = vadd.f32 %v3024, %v3248
    %v3265 = vadd.f32 %v3025, %v3249
    %v3266 = vadd.f32 %v3026, %v3250
    %v3267 = vadd.f32 %v3027, %v3251
    %v3268 = vadd.f32 %v3028, %v3252
    %v3269 = vadd.f32 %v3029, %v3253
    %v3270 = vadd.f32 %v3030, %v3254
    %v3271 = vadd.f32 %v3031, %v3255
    %v3272 = vadd.f32 %v3032, %v3256
    %v3273 = vrcp.pop %v3257
    %v3274 = vrcp.pop %v3258
    %v3275 = vrcp.pop %v3259
    %v3276 = vrcp.pop %v3260
    %v3277 = vrcp.pop %v3261
    %v3278 = vrcp.pop %v3262
    %v3279 = vrcp.pop %v3263
    %v3280 = vrcp.pop %v3264
    %v3281 = vrcp.pop %v3265
    %v3282 = vrcp.pop %v3266
    %v3283 = vrcp.pop %v3267
    %v3284 = vrcp.pop %v3268
    %v3285 = vrcp.pop %v3269
    %v3286 = vrcp.pop %v3270
    %v3287 = vrcp.pop %v3271
    %v3288 = vrcp.pop %v3272
    %3290 = vset.pattern.permute.xlu0 0
    %3291 = vperm.xlu0 %3290, %v3273
    %v3292 = vpop.permute.xlu0 %3291
    %3295 = vset.pattern.permute.xlu0 0
    %3296 = vperm.xlu0 %3295, %v3274
    %v3297 = vpop.permute.xlu0 %3296
    %3300 = vset.pattern.permute.xlu0 0
    %3301 = vperm.xlu0 %3300, %v3275
    %v3302 = vpop.permute.xlu0 %3301
    %3305 = vset.pattern.permute.xlu0 0
    %3306 = vperm.xlu0 %3305, %v3276
    %v3307 = vpop.permute.xlu0 %3306
    %3310 = vset.pattern.permute.xlu0 0
    %3311 = vperm.xlu0 %3310, %v3277
    %v3312 = vpop.permute.xlu0 %3311
    %3315 = vset.pattern.permute.xlu0 0
    %3316 = vperm.xlu0 %3315, %v3278
    %v3317 = vpop.permute.xlu0 %3316
    %3320 = vset.pattern.permute.xlu0 0
    %3321 = vperm.xlu0 %3320, %v3279
    %v3322 = vpop.permute.xlu0 %3321
    %3325 = vset.pattern.permute.xlu0 0
    %3326 = vperm.xlu0 %3325, %v3280
    %v3327 = vpop.permute.xlu0 %3326
    %3330 = vset.pattern.permute.xlu0 0
    %3331 = vperm.xlu0 %3330, %v3281
    %v3332 = vpop.permute.xlu0 %3331
    %3335 = vset.pattern.permute.xlu0 0
    %3336 = vperm.xlu0 %3335, %v3282
    %v3337 = vpop.permute.xlu0 %3336
    %3340 = vset.pattern.permute.xlu0 0
    %3341 = vperm.xlu0 %3340, %v3283
    %v3342 = vpop.permute.xlu0 %3341
    %3345 = vset.pattern.permute.xlu0 0
    %3346 = vperm.xlu0 %3345, %v3284
    %v3347 = vpop.permute.xlu0 %3346
    %3350 = vset.pattern.permute.xlu0 0
    %3351 = vperm.xlu0 %3350, %v3285
    %v3352 = vpop.permute.xlu0 %3351
    %3355 = vset.pattern.permute.xlu0 0
    %3356 = vperm.xlu0 %3355, %v3286
    %v3357 = vpop.permute.xlu0 %3356
    %3360 = vset.pattern.permute.xlu0 0
    %3361 = vperm.xlu0 %3360, %v3287
    %v3362 = vpop.permute.xlu0 %3361
    %3365 = vset.pattern.permute.xlu0 0
    %3366 = vperm.xlu0 %3365, %v3288
    %v3367 = vpop.permute.xlu0 %3366
    %v3369 = vmul.f32 %v3177, %v3292
    %v3370 = vmul.f32 %v3178, %v3297
    %v3371 = vmul.f32 %v3179, %v3302
    %v3372 = vmul.f32 %v3180, %v3307
    %v3373 = vmul.f32 %v3181, %v3312
    %v3374 = vmul.f32 %v3182, %v3317
    %v3375 = vmul.f32 %v3183, %v3322
    %v3376 = vmul.f32 %v3184, %v3327
    %v3377 = vmul.f32 %v3185, %v3332
    %v3378 = vmul.f32 %v3186, %v3337
    %v3379 = vmul.f32 %v3187, %v3342
    %v3380 = vmul.f32 %v3188, %v3347
    %v3381 = vmul.f32 %v3189, %v3352
    %v3382 = vmul.f32 %v3190, %v3357
    %v3383 = vmul.f32 %v3191, %v3362
    %v3384 = vmul.f32 %v3192, %v3367
    %3385 = vst [vmem:[%s9] sm:$0xff] %v3369
    %3386 = vst [vmem:[%s9 + $0x8] sm:$0xff] %v3370
    %3387 = vst [vmem:[%s9 + $0x10] sm:$0xff] %v3371
    %3388 = vst [vmem:[%s9 + $0x18] sm:$0xff] %v3372
    %3389 = vst [vmem:[%s9 + $0x20] sm:$0xff] %v3373
    %3390 = vst [vmem:[%s9 + $0x28] sm:$0xff] %v3374
    %3391 = vst [vmem:[%s9 + $0x30] sm:$0xff] %v3375
    %3392 = vst [vmem:[%s9 + $0x38] sm:$0xff] %v3376
    %3393 = vst [vmem:[%s9 + $0x40] sm:$0xff] %v3377
    %3394 = vst [vmem:[%s9 + $0x48] sm:$0xff] %v3378
    %3395 = vst [vmem:[%s9 + $0x50] sm:$0xff] %v3379
    %3396 = vst [vmem:[%s9 + $0x58] sm:$0xff] %v3380
    %3397 = vst [vmem:[%s9 + $0x60] sm:$0xff] %v3381
    %3398 = vst [vmem:[%s9 + $0x68] sm:$0xff] %v3382
    %3399 = vst [vmem:[%s9 + $0x70] sm:$0xff] %v3383
    %3400 = vst [vmem:[%s9 + $0x78] sm:$0xff] %v3384
    %3401 = vrot.lane.b32.xlu0 %v2297, 127
    %v3402 = vpop.permute.xlu0 %3401
    %3403 = vrot.lane.b32.xlu0 %v2298, 127
    %v3404 = vpop.permute.xlu0 %3403
    %3405 = vrot.lane.b32.xlu0 %v2299, 127
    %v3406 = vpop.permute.xlu0 %3405
    %3407 = vrot.lane.b32.xlu0 %v2300, 127
    %v3408 = vpop.permute.xlu0 %3407
    %3409 = vrot.lane.b32.xlu0 %v2301, 127
    %v3410 = vpop.permute.xlu0 %3409
    %3411 = vrot.lane.b32.xlu0 %v2302, 127
    %v3412 = vpop.permute.xlu0 %3411
    %3413 = vrot.lane.b32.xlu0 %v2303, 127
    %v3414 = vpop.permute.xlu0 %3413
    %3415 = vrot.lane.b32.xlu0 %v2304, 127
    %v3416 = vpop.permute.xlu0 %3415
    %3417 = vrot.lane.b32.xlu0 %v2305, 127
    %v3418 = vpop.permute.xlu0 %3417
    %3419 = vrot.lane.b32.xlu0 %v2306, 127
    %v3420 = vpop.permute.xlu0 %3419
    %3421 = vrot.lane.b32.xlu0 %v2307, 127
    %v3422 = vpop.permute.xlu0 %3421
    %3423 = vrot.lane.b32.xlu0 %v2308, 127
    %v3424 = vpop.permute.xlu0 %3423
    %3425 = vrot.lane.b32.xlu0 %v2309, 127
    %v3426 = vpop.permute.xlu0 %3425
    %3427 = vrot.lane.b32.xlu0 %v2310, 127
    %v3428 = vpop.permute.xlu0 %3427
    %3429 = vrot.lane.b32.xlu0 %v2311, 127
    %v3430 = vpop.permute.xlu0 %3429
    %3431 = vrot.lane.b32.xlu0 %v2312, 127
    %v3432 = vpop.permute.xlu0 %3431
    %vm3433 = vcmask 7168
    %3434 = vst.msk [vmem:[%s8] sm:$0xff] %vm3433, %v3402
    %3435 = vst.msk [vmem:[%s8 + $0x8] sm:$0xff] %vm3433, %v3404
    %3436 = vst.msk [vmem:[%s8 + $0x10] sm:$0xff] %vm3433, %v3406
    %3437 = vst.msk [vmem:[%s8 + $0x18] sm:$0xff] %vm3433, %v3408
    %3438 = vst.msk [vmem:[%s8 + $0x20] sm:$0xff] %vm3433, %v3410
    %3439 = vst.msk [vmem:[%s8 + $0x28] sm:$0xff] %vm3433, %v3412
    %3440 = vst.msk [vmem:[%s8 + $0x30] sm:$0xff] %vm3433, %v3414
    %3441 = vst.msk [vmem:[%s8 + $0x38] sm:$0xff] %vm3433, %v3416
    %3442 = vst.msk [vmem:[%s8 + $0x40] sm:$0xff] %vm3433, %v3418
    %3443 = vst.msk [vmem:[%s8 + $0x48] sm:$0xff] %vm3433, %v3420
    %3444 = vst.msk [vmem:[%s8 + $0x50] sm:$0xff] %vm3433, %v3422
    %3445 = vst.msk [vmem:[%s8 + $0x58] sm:$0xff] %vm3433, %v3424
    %3446 = vst.msk [vmem:[%s8 + $0x60] sm:$0xff] %vm3433, %v3426
    %3447 = vst.msk [vmem:[%s8 + $0x68] sm:$0xff] %vm3433, %v3428
    %3448 = vst.msk [vmem:[%s8 + $0x70] sm:$0xff] %vm3433, %v3430
    %3449 = vst.msk [vmem:[%s8 + $0x78] sm:$0xff] %vm3433, %v3432
    // Predicated region
    $region42: #{qnetwork_forward.1} parent=1 // pred_check
      _
    $region43: #{qnetwork_forward.1} parent=1 // pred_check_branch
      %3451 = sbr.rel (0) target = $region45
    $region44: #{qnetwork_forward.1} parent=1 // pred_region
      _
    $region45: #{qnetwork_forward.1} parent=1 // pred_fallthru
      _
    // Predicated region
    $region46: #{qnetwork_forward.1} parent=1 // pred_check
      _
    $region47: #{qnetwork_forward.1} parent=1 // pred_check_branch
      %3453 = sbr.rel (0) target = $region49
    $region48: #{qnetwork_forward.1} parent=1 // pred_region
      _
    $region49: #{qnetwork_forward.1} parent=1 // pred_fallthru
      _
    // Predicated region
    $region50: #{qnetwork_forward.1} parent=1 // pred_check
      _
    $region51: #{qnetwork_forward.1} parent=1 // pred_check_branch
      %3455 = sbr.rel (0) target = $region53
    $region52: #{qnetwork_forward.1} parent=1 // pred_region
      _
    $region53: #{qnetwork_forward.1} parent=1 // pred_fallthru
      _
    // Predicated region
    $region54: #{qnetwork_forward.1} parent=1 // pred_check
      _
    $region55: #{qnetwork_forward.1} parent=1 // pred_check_branch
      %3457 = sbr.rel (0) target = $region57
    $region56: #{qnetwork_forward.1} parent=1 // pred_region
      _
    $region57: #{qnetwork_forward.1} parent=1 // pred_fallthru
      _
    %3458 = vsyncpa [#allocation3], 1
    %3459 = vsyncpa [#allocation5], 1

</llo_original>
